<compile_context>
chip_gen: v7x
topology: tpu7x:2x2x1
jax: 0.10.0
libtpu: 0.0.40
codegen_flags: <defaults>
</compile_context>

<pallas_src>
import math

import jax
import jax.numpy as jnp
from jax import lax
from jax.experimental import pallas as pl
from jax.experimental.pallas import tpu as pltpu

# ----------------------------- config (small) --------------------------------
VOCAB = 256
HIDDEN = 128
N_LAYERS = 2
N_HEADS = 2
HEAD_DIM = HIDDEN // N_HEADS          # 64
INTER = 512
MAX_POS = 64
LN_EPS = 1e-12
QA_PAD = 128                          # lane-dense padded width for the 2-col QA head


# ----------------------------- in-kernel helpers ------------------------------
def _layernorm(x, g, b):
    # One-pass statistics: E[x], E[x^2].
    mu = jnp.mean(x, axis=-1, keepdims=True)
    mu2 = jnp.mean(x * x, axis=-1, keepdims=True)
    var = mu2 - mu * mu
    return (x - mu) * lax.rsqrt(var + LN_EPS) * g + b


def _erf(x):
    # Abramowitz & Stegun 7.1.26 polynomial (max abs error ~1.5e-7); only uses
    # VPU/EUP-supported ops (abs, divide, exp, where).
    p = 0.3275911
    a1, a2, a3, a4, a5 = (0.254829592, -0.284496736, 1.421413741,
                          -1.453152027, 1.061405429)
    ax = jnp.abs(x)
    t = 1.0 / (1.0 + p * ax)
    poly = ((((a5 * t + a4) * t + a3) * t + a2) * t + a1) * t
    y = 1.0 - poly * jnp.exp(-ax * ax)
    return jnp.where(x < 0.0, -y, y)


def _gelu(x):
    # erf-based GELU (HF ELECTRA default "gelu").
    return 0.5 * x * (1.0 + _erf(x * 0.7071067811865476))


# ----------------------------- fused forward kernel ---------------------------
def _fused_forward_kernel(emb_ref, mask_ref, eg_ref, eb_ref,
                          wqkv_ref, bqkv_ref, wo_ref, bo_ref, g1_ref, b1_ref,
                          wi_ref, bi_ref, wo2_ref, bo2_ref, g2_ref, b2_ref,
                          qaw_ref, qab_ref, out_ref):
    # One grid step == one batch element's (S, H) token block; weights are fully
    # VMEM-resident (const index maps), layers loop statically below.
    x = emb_ref[...].astype(jnp.float32)                    # (S, H)
    h = _layernorm(x, eg_ref[...], eb_ref[...])             # embedding LayerNorm
    bias = mask_ref[0]                                      # (1, S) additive key mask
    scale = 1.0 / math.sqrt(HEAD_DIM)

    for l in range(N_LAYERS):                               # static (2 layers)
        # ---- self-attention: fused (unpadded) QKV projection, bf16 MXU -------
        h_bf = h.astype(jnp.bfloat16)
        qkv = jnp.dot(h_bf, wqkv_ref[l],
                      preferred_element_type=jnp.float32) + bqkv_ref[l]   # (S, 3H)

        attn = bo_ref[l]                                    # (1, H) f32, broadcasts
        # TODO(synk): at larger N_HEADS, replace this static head loop with a
        # batched lax.dot_general over a head batch dim.
        for hd in range(N_HEADS):
            c0 = hd * HEAD_DIM
            q = qkv[:, c0:c0 + HEAD_DIM].astype(jnp.bfloat16)
            k = qkv[:, HIDDEN + c0:HIDDEN + c0 + HEAD_DIM].astype(jnp.bfloat16)
            v = qkv[:, 2 * HIDDEN + c0:2 * HIDDEN + c0 + HEAD_DIM].astype(jnp.bfloat16)
            # scores: contract head dims directly (no transpose), bf16 -> f32 acc
            s = lax.dot_general(q, k, (((1,), (1,)), ((), ())),
                                preferred_element_type=jnp.float32) * scale
            s = s + bias                                    # broadcast over queries
            m = jnp.max(s, axis=-1, keepdims=True)
            p = jnp.exp(s - m)
            p = p / jnp.sum(p, axis=-1, keepdims=True)      # exact softmax divide
            ctx_h = jnp.dot(p.astype(jnp.bfloat16), v,
                            preferred_element_type=jnp.float32)   # (S, HEAD_DIM)
            # head merge folded into per-head row slice of W_o (no lane concat)
            attn = attn + jnp.dot(ctx_h.astype(jnp.bfloat16),
                                  wo_ref[l, c0:c0 + HEAD_DIM, :],
                                  preferred_element_type=jnp.float32)
        h = _layernorm(attn + h, g1_ref[l], b1_ref[l])

        # ---- feed-forward -----------------------------------------------------
        inter = jnp.dot(h.astype(jnp.bfloat16), wi_ref[l],
                        preferred_element_type=jnp.float32) + bi_ref[l]
        inter = _gelu(inter)
        ffn = jnp.dot(inter.astype(jnp.bfloat16), wo2_ref[l],
                      preferred_element_type=jnp.float32) + bo2_ref[l]
        h = _layernorm(ffn + h, g2_ref[l], b2_ref[l])

    # ---- QA head epilogue (lane-padded to 128 output columns) -----------------
    out_ref[...] = jnp.dot(h.astype(jnp.bfloat16), qaw_ref[...],
                           preferred_element_type=jnp.float32) + qab_ref[...]


def fused_electra_forward(h0, mask_bias, p):
    """h0: (B*S, H) post-embedding pre-LN; mask_bias: (B, 1, S) additive key mask."""
    B = mask_bias.shape[0]
    S = mask_bias.shape[2]
    BS, H = h0.shape
    assert BS == B * S and H == HIDDEN

    row = lambda b: (b, 0)
    zero2 = lambda b: (0, 0)
    zero3 = lambda b: (0, 0, 0)

    return pl.pallas_call(
        _fused_forward_kernel,
        out_shape=jax.ShapeDtypeStruct((BS, QA_PAD), jnp.float32),
        grid=(B,),
        in_specs=[
            pl.BlockSpec((S, H), row),                          # embeddings (pre-LN)
            pl.BlockSpec((1, 1, S), lambda b: (b, 0, 0)),       # additive key mask
            pl.BlockSpec((1, H), zero2),                        # emb LN gamma
            pl.BlockSpec((1, H), zero2),                        # emb LN beta
            pl.BlockSpec((N_LAYERS, H, 3 * H), zero3),          # fused W_qkv (bf16)
            pl.BlockSpec((N_LAYERS, 1, 3 * H), zero3),          # b_qkv
            pl.BlockSpec((N_LAYERS, H, H), zero3),              # W_o (bf16)
            pl.BlockSpec((N_LAYERS, 1, H), zero3),              # b_o
            pl.BlockSpec((N_LAYERS, 1, H), zero3),              # ln1 gamma
            pl.BlockSpec((N_LAYERS, 1, H), zero3),              # ln1 beta
            pl.BlockSpec((N_LAYERS, H, INTER), zero3),          # W_i (bf16)
            pl.BlockSpec((N_LAYERS, 1, INTER), zero3),          # b_i
            pl.BlockSpec((N_LAYERS, INTER, H), zero3),          # W_o2 (bf16)
            pl.BlockSpec((N_LAYERS, 1, H), zero3),              # b_o2
            pl.BlockSpec((N_LAYERS, 1, H), zero3),              # ln2 gamma
            pl.BlockSpec((N_LAYERS, 1, H), zero3),              # ln2 beta
            pl.BlockSpec((H, QA_PAD), zero2),                   # QA W padded (bf16)
            pl.BlockSpec((1, QA_PAD), zero2),                   # QA b padded
        ],
        out_specs=pl.BlockSpec((S, QA_PAD), row),
        compiler_params=pltpu.CompilerParams(
            dimension_semantics=("parallel",)),                 # both v7x TCs
    )(h0, mask_bias,
      p["emb_ln_g"], p["emb_ln_b"],
      p["wqkv"], p["bqkv"], p["wo"], p["bo"], p["ln1_g"], p["ln1_b"],
      p["wi"], p["bi"], p["wo2"], p["bo2"], p["ln2_g"], p["ln2_b"],
      p["qa_w_pad"], p["qa_b_pad"])


# ----------------------------- parameter init --------------------------------
def init_params(key):
    std = 0.02
    keys = iter(jax.random.split(key, 64))

    def nrm(shape):
        return (std * jax.random.normal(next(keys), shape)).astype(jnp.float32)

    wqkv, bqkv, wo, bo, g1, b1, wi, bi, wo2, bo2, g2, b2 = ([] for _ in range(12))
    for _ in range(N_LAYERS):
        wq, wk, wv = nrm((HIDDEN, HIDDEN)), nrm((HIDDEN, HIDDEN)), nrm((HIDDEN, HIDDEN))
        wqkv.append(jnp.concatenate([wq, wk, wv], axis=1))      # (H, 3H), unpadded
        bqkv.append(jnp.zeros((1, 3 * HIDDEN), jnp.float32))
        wo.append(nrm((HIDDEN, HIDDEN)))
        bo.append(jnp.zeros((1, HIDDEN), jnp.float32))
        g1.append(jnp.ones((1, HIDDEN), jnp.float32))
        b1.append(jnp.zeros((1, HIDDEN), jnp.float32))
        wi.append(nrm((HIDDEN, INTER)))
        bi.append(jnp.zeros((1, INTER), jnp.float32))
        wo2.append(nrm((INTER, HIDDEN)))
        bo2.append(jnp.zeros((1, HIDDEN), jnp.float32))
        g2.append(jnp.ones((1, HIDDEN), jnp.float32))
        b2.append(jnp.zeros((1, HIDDEN), jnp.float32))

    qa_w = nrm((HIDDEN, 2))
    qa_w_pad = jnp.zeros((HIDDEN, QA_PAD), jnp.float32).at[:, :2].set(qa_w)

    return {
        "word_emb": nrm((VOCAB, HIDDEN)),
        "pos_emb": nrm((MAX_POS, HIDDEN)),
        "type_emb": nrm((2, HIDDEN)),
        "emb_ln_g": jnp.ones((1, HIDDEN), jnp.float32),
        "emb_ln_b": jnp.zeros((1, HIDDEN), jnp.float32),
        # Weight matrices in bf16 (single-pass MXU, half the DMA); biases / LN f32.
        "wqkv": jnp.stack(wqkv).astype(jnp.bfloat16),
        "bqkv": jnp.stack(bqkv),
        "wo": jnp.stack(wo).astype(jnp.bfloat16),
        "bo": jnp.stack(bo),
        "ln1_g": jnp.stack(g1), "ln1_b": jnp.stack(b1),
        "wi": jnp.stack(wi).astype(jnp.bfloat16),
        "bi": jnp.stack(bi),
        "wo2": jnp.stack(wo2).astype(jnp.bfloat16),
        "bo2": jnp.stack(bo2),
        "ln2_g": jnp.stack(g2), "ln2_b": jnp.stack(b2),
        "qa_w_pad": qa_w_pad.astype(jnp.bfloat16),
        "qa_b_pad": jnp.zeros((1, QA_PAD), jnp.float32),
    }


# ----------------------------- forward pass -----------------------------------
def electra_qa_forward(params, input_ids, attention_mask,
                       start_positions=None, end_positions=None):
    B, S = input_ids.shape

    # Embedding lookups (gather glue); LayerNorm happens inside the fused kernel.
    # token_type_ids default to 0 in the reference wrapper (only ids+mask passed).
    pos_ids = jnp.arange(S)
    h0 = (params["word_emb"][input_ids]
          + params["pos_emb"][pos_ids][None, :, :]
          + params["type_emb"][0][None, None, :])              # (B, S, H)
    h0 = h0.reshape(B * S, HIDDEN).astype(jnp.float32)

    # Additive key mask (B, 1, S); broadcast over query rows inside the kernel.
    mask_bias = ((1.0 - attention_mask.astype(jnp.float32)) * -1e9).reshape(B, 1, S)

    logits_pad = fused_electra_forward(h0, mask_bias, params)  # (B*S, 128)
    logits = logits_pad[:, :2].reshape(B, S, 2)
    start_logits = logits[..., 0]                               # (B, S)
    end_logits = logits[..., 1]                                 # (B, S)

    if start_positions is None or end_positions is None:
        return start_logits, end_logits

    # QA loss (tiny; plain-JAX glue, matching HF clamp/ignore_index semantics).
    ignored_index = S
    sp = jnp.clip(start_positions, 0, ignored_index)
    ep = jnp.clip(end_positions, 0, ignored_index)

    def ce(lgts, targets):
        logp = jax.nn.log_softmax(lgts, axis=-1)
        valid = targets != ignored_index
        tgt = jnp.where(valid, targets, 0)
        nll = -jnp.take_along_axis(logp, tgt[:, None], axis=-1)[:, 0]
        nll = jnp.where(valid, nll, 0.0)
        return jnp.sum(nll) / jnp.maximum(jnp.sum(valid.astype(jnp.float32)), 1.0)

    total_loss = 0.5 * (ce(start_logits, sp) + ce(end_logits, ep))
    return total_loss, start_logits, end_logits


# ----------------------------- main -------------------------------------------
if __name__ == "__main__":
    key = jax.random.PRNGKey(0)
    pkey, ikey, skey, ekey = jax.random.split(key, 4)

    params = init_params(pkey)

    B, S = 2, 16
    input_ids = jax.random.randint(ikey, (B, S), 0, VOCAB, dtype=jnp.int32)
    attention_mask = jnp.concatenate(
        [jnp.ones((B, S - 4), jnp.int32), jnp.zeros((B, 4), jnp.int32)], axis=1)
    start_positions = jax.random.randint(skey, (B,), 0, S, dtype=jnp.int32)
    end_positions = jax.random.randint(ekey, (B,), 0, S, dtype=jnp.int32)

    fwd = jax.jit(electra_qa_forward)
    loss, start_logits, end_logits = fwd(
        params, input_ids, attention_mask, start_positions, end_positions)
    jax.block_until_ready((loss, start_logits, end_logits))

    assert start_logits.shape == (B, S) and end_logits.shape == (B, S)
    assert jnp.isfinite(loss)
    print("KERNEL_OK")
</pallas_src>

<mosaic_0001>
module attributes {stable_mosaic.version = 11 : i64} {
  func.func @_fused_forward_kernel(%arg0: i32, %arg1: memref<16x128xf32, #tpu.memory_space<vmem>>, %arg2: memref<1x1x16xf32, #tpu.memory_space<vmem>>, %arg3: memref<1x128xf32, #tpu.memory_space<vmem>>, %arg4: memref<1x128xf32, #tpu.memory_space<vmem>>, %arg5: memref<2x128x384xbf16, #tpu.memory_space<vmem>>, %arg6: memref<2x1x384xf32, #tpu.memory_space<vmem>>, %arg7: memref<2x128x128xbf16, #tpu.memory_space<vmem>>, %arg8: memref<2x1x128xf32, #tpu.memory_space<vmem>>, %arg9: memref<2x1x128xf32, #tpu.memory_space<vmem>>, %arg10: memref<2x1x128xf32, #tpu.memory_space<vmem>>, %arg11: memref<2x128x512xbf16, #tpu.memory_space<vmem>>, %arg12: memref<2x1x512xf32, #tpu.memory_space<vmem>>, %arg13: memref<2x512x128xbf16, #tpu.memory_space<vmem>>, %arg14: memref<2x1x128xf32, #tpu.memory_space<vmem>>, %arg15: memref<2x1x128xf32, #tpu.memory_space<vmem>>, %arg16: memref<2x1x128xf32, #tpu.memory_space<vmem>>, %arg17: memref<128x128xbf16, #tpu.memory_space<vmem>>, %arg18: memref<1x128xf32, #tpu.memory_space<vmem>>, %arg19: memref<16x128xf32, #tpu.memory_space<vmem>>) attributes {dimension_semantics = [#tpu.dimension_semantics<parallel>], iteration_bounds = array<i64: 2>, scalar_prefetch = 0 : i64, scratch_operands = 0 : i64, tpu.core_type = #tpu.core_type<tc>, window_params = [{transform_indices = @transform_0, window_bounds = array<i64: 16, 128>}, {transform_indices = @transform_1, window_bounds = array<i64: 1, 1, 16>}, {pipeline_mode = #tpu.pipeline_mode<synchronous>, transform_indices = @transform_2, window_bounds = array<i64: 1, 128>}, {pipeline_mode = #tpu.pipeline_mode<synchronous>, transform_indices = @transform_3, window_bounds = array<i64: 1, 128>}, {pipeline_mode = #tpu.pipeline_mode<synchronous>, transform_indices = @transform_4, window_bounds = array<i64: 2, 128, 384>}, {pipeline_mode = #tpu.pipeline_mode<synchronous>, transform_indices = @transform_5, window_bounds = array<i64: 2, 1, 384>}, {pipeline_mode = #tpu.pipeline_mode<synchronous>, transform_indices = @transform_6, window_bounds = array<i64: 2, 128, 128>}, {pipeline_mode = #tpu.pipeline_mode<synchronous>, transform_indices = @transform_7, window_bounds = array<i64: 2, 1, 128>}, {pipeline_mode = #tpu.pipeline_mode<synchronous>, transform_indices = @transform_8, window_bounds = array<i64: 2, 1, 128>}, {pipeline_mode = #tpu.pipeline_mode<synchronous>, transform_indices = @transform_9, window_bounds = array<i64: 2, 1, 128>}, {pipeline_mode = #tpu.pipeline_mode<synchronous>, transform_indices = @transform_10, window_bounds = array<i64: 2, 128, 512>}, {pipeline_mode = #tpu.pipeline_mode<synchronous>, transform_indices = @transform_11, window_bounds = array<i64: 2, 1, 512>}, {pipeline_mode = #tpu.pipeline_mode<synchronous>, transform_indices = @transform_12, window_bounds = array<i64: 2, 512, 128>}, {pipeline_mode = #tpu.pipeline_mode<synchronous>, transform_indices = @transform_13, window_bounds = array<i64: 2, 1, 128>}, {pipeline_mode = #tpu.pipeline_mode<synchronous>, transform_indices = @transform_14, window_bounds = array<i64: 2, 1, 128>}, {pipeline_mode = #tpu.pipeline_mode<synchronous>, transform_indices = @transform_15, window_bounds = array<i64: 2, 1, 128>}, {pipeline_mode = #tpu.pipeline_mode<synchronous>, transform_indices = @transform_16, window_bounds = array<i64: 128, 128>}, {pipeline_mode = #tpu.pipeline_mode<synchronous>, transform_indices = @transform_17, window_bounds = array<i64: 1, 128>}, {transform_indices = @transform_18, window_bounds = array<i64: 16, 128>}]} {
    %c0 = arith.constant 0 : index
    %c0_0 = arith.constant 0 : index
    %0 = vector.load %arg1[%c0, %c0_0] : memref<16x128xf32, #tpu.memory_space<vmem>>, vector<16x128xf32>
    %c0_1 = arith.constant 0 : index
    %c0_2 = arith.constant 0 : index
    %1 = vector.load %arg3[%c0_1, %c0_2] : memref<1x128xf32, #tpu.memory_space<vmem>>, vector<1x128xf32>
    %c0_3 = arith.constant 0 : index
    %c0_4 = arith.constant 0 : index
    %2 = vector.load %arg4[%c0_3, %c0_4] : memref<1x128xf32, #tpu.memory_space<vmem>>, vector<1x128xf32>
    %cst = arith.constant dense<0.000000e+00> : vector<16xf32>
    %3 = vector.multi_reduction <add>, %0, %cst [1] : vector<16x128xf32> to vector<16xf32>
    %4 = vector.shape_cast %3 : vector<16xf32> to vector<16x1xf32>
    %cst_5 = arith.constant 1.280000e+02 : f32
    %5 = vector.broadcast %cst_5 : f32 to vector<16x1xf32>
    %6 = arith.divf %4, %5 : vector<16x1xf32>
    %7 = arith.mulf %0, %0 : vector<16x128xf32>
    %cst_6 = arith.constant dense<0.000000e+00> : vector<16xf32>
    %8 = vector.multi_reduction <add>, %7, %cst_6 [1] : vector<16x128xf32> to vector<16xf32>
    %9 = vector.shape_cast %8 : vector<16xf32> to vector<16x1xf32>
    %cst_7 = arith.constant 1.280000e+02 : f32
    %10 = vector.broadcast %cst_7 : f32 to vector<16x1xf32>
    %11 = arith.divf %9, %10 : vector<16x1xf32>
    %12 = arith.mulf %6, %6 : vector<16x1xf32>
    %13 = arith.subf %11, %12 : vector<16x1xf32>
    %14 = vector.broadcast %6 : vector<16x1xf32> to vector<16x128xf32>
    %15 = arith.subf %0, %14 : vector<16x128xf32>
    %cst_8 = arith.constant 9.99999996E-13 : f32
    %16 = vector.broadcast %cst_8 : f32 to vector<16x1xf32>
    %17 = arith.addf %13, %16 : vector<16x1xf32>
    %18 = math.rsqrt %17 : vector<16x1xf32>
    %19 = vector.broadcast %18 : vector<16x1xf32> to vector<16x128xf32>
    %20 = arith.mulf %15, %19 : vector<16x128xf32>
    %21 = vector.broadcast %1 : vector<1x128xf32> to vector<16x128xf32>
    %22 = arith.mulf %20, %21 : vector<16x128xf32>
    %23 = vector.broadcast %2 : vector<1x128xf32> to vector<16x128xf32>
    %24 = arith.addf %22, %23 : vector<16x128xf32>
    %c0_9 = arith.constant 0 : index
    %c0_10 = arith.constant 0 : index
    %c0_11 = arith.constant 0 : index
    %25 = vector.load %arg2[%c0_9, %c0_10, %c0_11] : memref<1x1x16xf32, #tpu.memory_space<vmem>>, vector<1x1x16xf32>
    %26 = vector.shape_cast %25 : vector<1x1x16xf32> to vector<1x16xf32>
    %27 = arith.truncf %24 : vector<16x128xf32> to vector<16x128xbf16>
    %c0_12 = arith.constant 0 : index
    %c0_13 = arith.constant 0 : index
    %c0_14 = arith.constant 0 : index
    %28 = vector.load %arg5[%c0_12, %c0_13, %c0_14] : memref<2x128x384xbf16, #tpu.memory_space<vmem>>, vector<1x128x384xbf16>
    %29 = vector.shape_cast %28 : vector<1x128x384xbf16> to vector<128x384xbf16>
    %cst_15 = arith.constant dense<0.000000e+00> : vector<16x384xf32>
    %30 = tpu.matmul %27, %29, %cst_15 {dimension_numbers = #tpu.dot_dimension_numbers<[1], [0], [0], [1], [0, 0, 1, 1], [], []>} : vector<16x128xbf16>, vector<128x384xbf16>, vector<16x384xf32> -> vector<16x384xf32>
    %c0_16 = arith.constant 0 : index
    %c0_17 = arith.constant 0 : index
    %c0_18 = arith.constant 0 : index
    %31 = vector.load %arg6[%c0_16, %c0_17, %c0_18] : memref<2x1x384xf32, #tpu.memory_space<vmem>>, vector<1x1x384xf32>
    %32 = vector.shape_cast %31 : vector<1x1x384xf32> to vector<1x384xf32>
    %33 = vector.broadcast %32 : vector<1x384xf32> to vector<16x384xf32>
    %34 = arith.addf %30, %33 : vector<16x384xf32>
    %c0_19 = arith.constant 0 : index
    %c0_20 = arith.constant 0 : index
    %c0_21 = arith.constant 0 : index
    %35 = vector.load %arg8[%c0_19, %c0_20, %c0_21] : memref<2x1x128xf32, #tpu.memory_space<vmem>>, vector<1x1x128xf32>
    %36 = vector.shape_cast %35 : vector<1x1x128xf32> to vector<1x128xf32>
    %37 = vector.extract_strided_slice %34 {offsets = [0, 0], sizes = [16, 64], strides = [1, 1]} : vector<16x384xf32> to vector<16x64xf32>
    %38 = arith.truncf %37 : vector<16x64xf32> to vector<16x64xbf16>
    %39 = vector.extract_strided_slice %34 {offsets = [0, 128], sizes = [16, 64], strides = [1, 1]} : vector<16x384xf32> to vector<16x64xf32>
    %40 = arith.truncf %39 : vector<16x64xf32> to vector<16x64xbf16>
    %41 = vector.extract_strided_slice %34 {offsets = [0, 256], sizes = [16, 64], strides = [1, 1]} : vector<16x384xf32> to vector<16x64xf32>
    %42 = arith.truncf %41 : vector<16x64xf32> to vector<16x64xbf16>
    %cst_22 = arith.constant dense<0.000000e+00> : vector<16x16xf32>
    %43 = tpu.matmul %38, %40, %cst_22 {dimension_numbers = #tpu.dot_dimension_numbers<[1], [1], [0], [0], [0, 0, 1, 0], [], []>} : vector<16x64xbf16>, vector<16x64xbf16>, vector<16x16xf32> -> vector<16x16xf32>
    %cst_23 = arith.constant 1.250000e-01 : f32
    %44 = vector.broadcast %cst_23 : f32 to vector<16x16xf32>
    %45 = arith.mulf %43, %44 : vector<16x16xf32>
    %46 = vector.broadcast %26 : vector<1x16xf32> to vector<16x16xf32>
    %47 = arith.addf %45, %46 : vector<16x16xf32>
    %cst_24 = arith.constant dense<0xFF800000> : vector<16xf32>
    %48 = vector.multi_reduction <maximumf>, %47, %cst_24 [1] : vector<16x16xf32> to vector<16xf32>
    %49 = vector.shape_cast %48 : vector<16xf32> to vector<16x1xf32>
    %50 = vector.broadcast %49 : vector<16x1xf32> to vector<16x16xf32>
    %51 = arith.subf %47, %50 : vector<16x16xf32>
    %52 = math.exp %51 : vector<16x16xf32>
    %cst_25 = arith.constant dense<0.000000e+00> : vector<16xf32>
    %53 = vector.multi_reduction <add>, %52, %cst_25 [1] : vector<16x16xf32> to vector<16xf32>
    %54 = vector.shape_cast %53 : vector<16xf32> to vector<16x1xf32>
    %55 = vector.broadcast %54 : vector<16x1xf32> to vector<16x16xf32>
    %56 = arith.divf %52, %55 : vector<16x16xf32>
    %57 = arith.truncf %56 : vector<16x16xf32> to vector<16x16xbf16>
    %cst_26 = arith.constant dense<0.000000e+00> : vector<16x64xf32>
    %58 = tpu.matmul %57, %42, %cst_26 {dimension_numbers = #tpu.dot_dimension_numbers<[1], [0], [0], [1], [0, 0, 1, 1], [], []>} : vector<16x16xbf16>, vector<16x64xbf16>, vector<16x64xf32> -> vector<16x64xf32>
    %59 = arith.truncf %58 : vector<16x64xf32> to vector<16x64xbf16>
    %c0_27 = arith.constant 0 : index
    %c0_28 = arith.constant 0 : index
    %c0_29 = arith.constant 0 : index
    %60 = vector.load %arg7[%c0_27, %c0_28, %c0_29] : memref<2x128x128xbf16, #tpu.memory_space<vmem>>, vector<1x64x128xbf16>
    %61 = vector.shape_cast %60 : vector<1x64x128xbf16> to vector<64x128xbf16>
    %cst_30 = arith.constant dense<0.000000e+00> : vector<16x128xf32>
    %62 = tpu.matmul %59, %61, %cst_30 {dimension_numbers = #tpu.dot_dimension_numbers<[1], [0], [0], [1], [0, 0, 1, 1], [], []>} : vector<16x64xbf16>, vector<64x128xbf16>, vector<16x128xf32> -> vector<16x128xf32>
    %63 = vector.broadcast %36 : vector<1x128xf32> to vector<16x128xf32>
    %64 = arith.addf %63, %62 : vector<16x128xf32>
    %65 = vector.extract_strided_slice %34 {offsets = [0, 64], sizes = [16, 64], strides = [1, 1]} : vector<16x384xf32> to vector<16x64xf32>
    %66 = arith.truncf %65 : vector<16x64xf32> to vector<16x64xbf16>
    %67 = vector.extract_strided_slice %34 {offsets = [0, 192], sizes = [16, 64], strides = [1, 1]} : vector<16x384xf32> to vector<16x64xf32>
    %68 = arith.truncf %67 : vector<16x64xf32> to vector<16x64xbf16>
    %69 = vector.extract_strided_slice %34 {offsets = [0, 320], sizes = [16, 64], strides = [1, 1]} : vector<16x384xf32> to vector<16x64xf32>
    %70 = arith.truncf %69 : vector<16x64xf32> to vector<16x64xbf16>
    %cst_31 = arith.constant dense<0.000000e+00> : vector<16x16xf32>
    %71 = tpu.matmul %66, %68, %cst_31 {dimension_numbers = #tpu.dot_dimension_numbers<[1], [1], [0], [0], [0, 0, 1, 0], [], []>} : vector<16x64xbf16>, vector<16x64xbf16>, vector<16x16xf32> -> vector<16x16xf32>
    %cst_32 = arith.constant 1.250000e-01 : f32
    %72 = vector.broadcast %cst_32 : f32 to vector<16x16xf32>
    %73 = arith.mulf %71, %72 : vector<16x16xf32>
    %74 = vector.broadcast %26 : vector<1x16xf32> to vector<16x16xf32>
    %75 = arith.addf %73, %74 : vector<16x16xf32>
    %cst_33 = arith.constant dense<0xFF800000> : vector<16xf32>
    %76 = vector.multi_reduction <maximumf>, %75, %cst_33 [1] : vector<16x16xf32> to vector<16xf32>
    %77 = vector.shape_cast %76 : vector<16xf32> to vector<16x1xf32>
    %78 = vector.broadcast %77 : vector<16x1xf32> to vector<16x16xf32>
    %79 = arith.subf %75, %78 : vector<16x16xf32>
    %80 = math.exp %79 : vector<16x16xf32>
    %cst_34 = arith.constant dense<0.000000e+00> : vector<16xf32>
    %81 = vector.multi_reduction <add>, %80, %cst_34 [1] : vector<16x16xf32> to vector<16xf32>
    %82 = vector.shape_cast %81 : vector<16xf32> to vector<16x1xf32>
    %83 = vector.broadcast %82 : vector<16x1xf32> to vector<16x16xf32>
    %84 = arith.divf %80, %83 : vector<16x16xf32>
    %85 = arith.truncf %84 : vector<16x16xf32> to vector<16x16xbf16>
    %cst_35 = arith.constant dense<0.000000e+00> : vector<16x64xf32>
    %86 = tpu.matmul %85, %70, %cst_35 {dimension_numbers = #tpu.dot_dimension_numbers<[1], [0], [0], [1], [0, 0, 1, 1], [], []>} : vector<16x16xbf16>, vector<16x64xbf16>, vector<16x64xf32> -> vector<16x64xf32>
    %87 = arith.truncf %86 : vector<16x64xf32> to vector<16x64xbf16>
    %c0_36 = arith.constant 0 : index
    %c64 = arith.constant 64 : index
    %c0_37 = arith.constant 0 : index
    %88 = vector.load %arg7[%c0_36, %c64, %c0_37] : memref<2x128x128xbf16, #tpu.memory_space<vmem>>, vector<1x64x128xbf16>
    %89 = vector.shape_cast %88 : vector<1x64x128xbf16> to vector<64x128xbf16>
    %cst_38 = arith.constant dense<0.000000e+00> : vector<16x128xf32>
    %90 = tpu.matmul %87, %89, %cst_38 {dimension_numbers = #tpu.dot_dimension_numbers<[1], [0], [0], [1], [0, 0, 1, 1], [], []>} : vector<16x64xbf16>, vector<64x128xbf16>, vector<16x128xf32> -> vector<16x128xf32>
    %91 = arith.addf %64, %90 : vector<16x128xf32>
    %92 = arith.addf %91, %24 : vector<16x128xf32>
    %c0_39 = arith.constant 0 : index
    %c0_40 = arith.constant 0 : index
    %c0_41 = arith.constant 0 : index
    %93 = vector.load %arg9[%c0_39, %c0_40, %c0_41] : memref<2x1x128xf32, #tpu.memory_space<vmem>>, vector<1x1x128xf32>
    %94 = vector.shape_cast %93 : vector<1x1x128xf32> to vector<1x128xf32>
    %c0_42 = arith.constant 0 : index
    %c0_43 = arith.constant 0 : index
    %c0_44 = arith.constant 0 : index
    %95 = vector.load %arg10[%c0_42, %c0_43, %c0_44] : memref<2x1x128xf32, #tpu.memory_space<vmem>>, vector<1x1x128xf32>
    %96 = vector.shape_cast %95 : vector<1x1x128xf32> to vector<1x128xf32>
    %cst_45 = arith.constant dense<0.000000e+00> : vector<16xf32>
    %97 = vector.multi_reduction <add>, %92, %cst_45 [1] : vector<16x128xf32> to vector<16xf32>
    %98 = vector.shape_cast %97 : vector<16xf32> to vector<16x1xf32>
    %cst_46 = arith.constant 1.280000e+02 : f32
    %99 = vector.broadcast %cst_46 : f32 to vector<16x1xf32>
    %100 = arith.divf %98, %99 : vector<16x1xf32>
    %101 = arith.mulf %92, %92 : vector<16x128xf32>
    %cst_47 = arith.constant dense<0.000000e+00> : vector<16xf32>
    %102 = vector.multi_reduction <add>, %101, %cst_47 [1] : vector<16x128xf32> to vector<16xf32>
    %103 = vector.shape_cast %102 : vector<16xf32> to vector<16x1xf32>
    %cst_48 = arith.constant 1.280000e+02 : f32
    %104 = vector.broadcast %cst_48 : f32 to vector<16x1xf32>
    %105 = arith.divf %103, %104 : vector<16x1xf32>
    %106 = arith.mulf %100, %100 : vector<16x1xf32>
    %107 = arith.subf %105, %106 : vector<16x1xf32>
    %108 = vector.broadcast %100 : vector<16x1xf32> to vector<16x128xf32>
    %109 = arith.subf %92, %108 : vector<16x128xf32>
    %cst_49 = arith.constant 9.99999996E-13 : f32
    %110 = vector.broadcast %cst_49 : f32 to vector<16x1xf32>
    %111 = arith.addf %107, %110 : vector<16x1xf32>
    %112 = math.rsqrt %111 : vector<16x1xf32>
    %113 = vector.broadcast %112 : vector<16x1xf32> to vector<16x128xf32>
    %114 = arith.mulf %109, %113 : vector<16x128xf32>
    %115 = vector.broadcast %94 : vector<1x128xf32> to vector<16x128xf32>
    %116 = arith.mulf %114, %115 : vector<16x128xf32>
    %117 = vector.broadcast %96 : vector<1x128xf32> to vector<16x128xf32>
    %118 = arith.addf %116, %117 : vector<16x128xf32>
    %119 = arith.truncf %118 : vector<16x128xf32> to vector<16x128xbf16>
    %c0_50 = arith.constant 0 : index
    %c0_51 = arith.constant 0 : index
    %c0_52 = arith.constant 0 : index
    %120 = vector.load %arg11[%c0_50, %c0_51, %c0_52] : memref<2x128x512xbf16, #tpu.memory_space<vmem>>, vector<1x128x512xbf16>
    %121 = vector.shape_cast %120 : vector<1x128x512xbf16> to vector<128x512xbf16>
    %cst_53 = arith.constant dense<0.000000e+00> : vector<16x512xf32>
    %122 = tpu.matmul %119, %121, %cst_53 {dimension_numbers = #tpu.dot_dimension_numbers<[1], [0], [0], [1], [0, 0, 1, 1], [], []>} : vector<16x128xbf16>, vector<128x512xbf16>, vector<16x512xf32> -> vector<16x512xf32>
    %c0_54 = arith.constant 0 : index
    %c0_55 = arith.constant 0 : index
    %c0_56 = arith.constant 0 : index
    %123 = vector.load %arg12[%c0_54, %c0_55, %c0_56] : memref<2x1x512xf32, #tpu.memory_space<vmem>>, vector<1x1x512xf32>
    %124 = vector.shape_cast %123 : vector<1x1x512xf32> to vector<1x512xf32>
    %125 = vector.broadcast %124 : vector<1x512xf32> to vector<16x512xf32>
    %126 = arith.addf %122, %125 : vector<16x512xf32>
    %cst_57 = arith.constant 5.000000e-01 : f32
    %127 = vector.broadcast %cst_57 : f32 to vector<16x512xf32>
    %128 = arith.mulf %127, %126 : vector<16x512xf32>
    %cst_58 = arith.constant 0.707106769 : f32
    %129 = vector.broadcast %cst_58 : f32 to vector<16x512xf32>
    %130 = arith.mulf %126, %129 : vector<16x512xf32>
    %131 = math.absf %130 : vector<16x512xf32>
    %cst_59 = arith.constant 0.327591091 : f32
    %132 = vector.broadcast %cst_59 : f32 to vector<16x512xf32>
    %133 = arith.mulf %132, %131 : vector<16x512xf32>
    %cst_60 = arith.constant 1.000000e+00 : f32
    %134 = vector.broadcast %cst_60 : f32 to vector<16x512xf32>
    %135 = arith.addf %134, %133 : vector<16x512xf32>
    %cst_61 = arith.constant 1.000000e+00 : f32
    %136 = vector.broadcast %cst_61 : f32 to vector<16x512xf32>
    %137 = arith.divf %136, %135 : vector<16x512xf32>
    %cst_62 = arith.constant 1.06140542 : f32
    %138 = vector.broadcast %cst_62 : f32 to vector<16x512xf32>
    %139 = arith.mulf %138, %137 : vector<16x512xf32>
    %cst_63 = arith.constant -1.45315206 : f32
    %140 = vector.broadcast %cst_63 : f32 to vector<16x512xf32>
    %141 = arith.addf %139, %140 : vector<16x512xf32>
    %142 = arith.mulf %141, %137 : vector<16x512xf32>
    %cst_64 = arith.constant 1.42141378 : f32
    %143 = vector.broadcast %cst_64 : f32 to vector<16x512xf32>
    %144 = arith.addf %142, %143 : vector<16x512xf32>
    %145 = arith.mulf %144, %137 : vector<16x512xf32>
    %cst_65 = arith.constant -0.284496725 : f32
    %146 = vector.broadcast %cst_65 : f32 to vector<16x512xf32>
    %147 = arith.addf %145, %146 : vector<16x512xf32>
    %148 = arith.mulf %147, %137 : vector<16x512xf32>
    %cst_66 = arith.constant 0.254829586 : f32
    %149 = vector.broadcast %cst_66 : f32 to vector<16x512xf32>
    %150 = arith.addf %148, %149 : vector<16x512xf32>
    %151 = arith.mulf %150, %137 : vector<16x512xf32>
    %cst_67 = arith.constant 0.000000e+00 : f32
    %152 = vector.broadcast %cst_67 : f32 to vector<16x512xf32>
    %153 = arith.subf %152, %131 : vector<16x512xf32>
    %154 = arith.mulf %153, %131 : vector<16x512xf32>
    %155 = math.exp %154 : vector<16x512xf32>
    %156 = arith.mulf %151, %155 : vector<16x512xf32>
    %cst_68 = arith.constant 1.000000e+00 : f32
    %157 = vector.broadcast %cst_68 : f32 to vector<16x512xf32>
    %158 = arith.subf %157, %156 : vector<16x512xf32>
    %cst_69 = arith.constant 0.000000e+00 : f32
    %159 = vector.broadcast %cst_69 : f32 to vector<16x512xf32>
    %160 = arith.cmpf olt, %130, %159 : vector<16x512xf32>
    %cst_70 = arith.constant 0.000000e+00 : f32
    %161 = vector.broadcast %cst_70 : f32 to vector<16x512xf32>
    %162 = arith.subf %161, %158 : vector<16x512xf32>
    %163 = arith.select %160, %162, %158 : vector<16x512xi1>, vector<16x512xf32>
    %cst_71 = arith.constant 1.000000e+00 : f32
    %164 = vector.broadcast %cst_71 : f32 to vector<16x512xf32>
    %165 = arith.addf %164, %163 : vector<16x512xf32>
    %166 = arith.mulf %128, %165 : vector<16x512xf32>
    %167 = arith.truncf %166 : vector<16x512xf32> to vector<16x512xbf16>
    %c0_72 = arith.constant 0 : index
    %c0_73 = arith.constant 0 : index
    %c0_74 = arith.constant 0 : index
    %168 = vector.load %arg13[%c0_72, %c0_73, %c0_74] : memref<2x512x128xbf16, #tpu.memory_space<vmem>>, vector<1x512x128xbf16>
    %169 = vector.shape_cast %168 : vector<1x512x128xbf16> to vector<512x128xbf16>
    %cst_75 = arith.constant dense<0.000000e+00> : vector<16x128xf32>
    %170 = tpu.matmul %167, %169, %cst_75 {dimension_numbers = #tpu.dot_dimension_numbers<[1], [0], [0], [1], [0, 0, 1, 1], [], []>} : vector<16x512xbf16>, vector<512x128xbf16>, vector<16x128xf32> -> vector<16x128xf32>
    %c0_76 = arith.constant 0 : index
    %c0_77 = arith.constant 0 : index
    %c0_78 = arith.constant 0 : index
    %171 = vector.load %arg14[%c0_76, %c0_77, %c0_78] : memref<2x1x128xf32, #tpu.memory_space<vmem>>, vector<1x1x128xf32>
    %172 = vector.shape_cast %171 : vector<1x1x128xf32> to vector<1x128xf32>
    %173 = vector.broadcast %172 : vector<1x128xf32> to vector<16x128xf32>
    %174 = arith.addf %170, %173 : vector<16x128xf32>
    %175 = arith.addf %174, %118 : vector<16x128xf32>
    %c0_79 = arith.constant 0 : index
    %c0_80 = arith.constant 0 : index
    %c0_81 = arith.constant 0 : index
    %176 = vector.load %arg15[%c0_79, %c0_80, %c0_81] : memref<2x1x128xf32, #tpu.memory_space<vmem>>, vector<1x1x128xf32>
    %177 = vector.shape_cast %176 : vector<1x1x128xf32> to vector<1x128xf32>
    %c0_82 = arith.constant 0 : index
    %c0_83 = arith.constant 0 : index
    %c0_84 = arith.constant 0 : index
    %178 = vector.load %arg16[%c0_82, %c0_83, %c0_84] : memref<2x1x128xf32, #tpu.memory_space<vmem>>, vector<1x1x128xf32>
    %179 = vector.shape_cast %178 : vector<1x1x128xf32> to vector<1x128xf32>
    %cst_85 = arith.constant dense<0.000000e+00> : vector<16xf32>
    %180 = vector.multi_reduction <add>, %175, %cst_85 [1] : vector<16x128xf32> to vector<16xf32>
    %181 = vector.shape_cast %180 : vector<16xf32> to vector<16x1xf32>
    %cst_86 = arith.constant 1.280000e+02 : f32
    %182 = vector.broadcast %cst_86 : f32 to vector<16x1xf32>
    %183 = arith.divf %181, %182 : vector<16x1xf32>
    %184 = arith.mulf %175, %175 : vector<16x128xf32>
    %cst_87 = arith.constant dense<0.000000e+00> : vector<16xf32>
    %185 = vector.multi_reduction <add>, %184, %cst_87 [1] : vector<16x128xf32> to vector<16xf32>
    %186 = vector.shape_cast %185 : vector<16xf32> to vector<16x1xf32>
    %cst_88 = arith.constant 1.280000e+02 : f32
    %187 = vector.broadcast %cst_88 : f32 to vector<16x1xf32>
    %188 = arith.divf %186, %187 : vector<16x1xf32>
    %189 = arith.mulf %183, %183 : vector<16x1xf32>
    %190 = arith.subf %188, %189 : vector<16x1xf32>
    %191 = vector.broadcast %183 : vector<16x1xf32> to vector<16x128xf32>
    %192 = arith.subf %175, %191 : vector<16x128xf32>
    %cst_89 = arith.constant 9.99999996E-13 : f32
    %193 = vector.broadcast %cst_89 : f32 to vector<16x1xf32>
    %194 = arith.addf %190, %193 : vector<16x1xf32>
    %195 = math.rsqrt %194 : vector<16x1xf32>
    %196 = vector.broadcast %195 : vector<16x1xf32> to vector<16x128xf32>
    %197 = arith.mulf %192, %196 : vector<16x128xf32>
    %198 = vector.broadcast %177 : vector<1x128xf32> to vector<16x128xf32>
    %199 = arith.mulf %197, %198 : vector<16x128xf32>
    %200 = vector.broadcast %179 : vector<1x128xf32> to vector<16x128xf32>
    %201 = arith.addf %199, %200 : vector<16x128xf32>
    %202 = arith.truncf %201 : vector<16x128xf32> to vector<16x128xbf16>
    %c1 = arith.constant 1 : index
    %c0_90 = arith.constant 0 : index
    %c0_91 = arith.constant 0 : index
    %203 = vector.load %arg5[%c1, %c0_90, %c0_91] : memref<2x128x384xbf16, #tpu.memory_space<vmem>>, vector<1x128x384xbf16>
    %204 = vector.shape_cast %203 : vector<1x128x384xbf16> to vector<128x384xbf16>
    %cst_92 = arith.constant dense<0.000000e+00> : vector<16x384xf32>
    %205 = tpu.matmul %202, %204, %cst_92 {dimension_numbers = #tpu.dot_dimension_numbers<[1], [0], [0], [1], [0, 0, 1, 1], [], []>} : vector<16x128xbf16>, vector<128x384xbf16>, vector<16x384xf32> -> vector<16x384xf32>
    %c1_93 = arith.constant 1 : index
    %c0_94 = arith.constant 0 : index
    %c0_95 = arith.constant 0 : index
    %206 = vector.load %arg6[%c1_93, %c0_94, %c0_95] : memref<2x1x384xf32, #tpu.memory_space<vmem>>, vector<1x1x384xf32>
    %207 = vector.shape_cast %206 : vector<1x1x384xf32> to vector<1x384xf32>
    %208 = vector.broadcast %207 : vector<1x384xf32> to vector<16x384xf32>
    %209 = arith.addf %205, %208 : vector<16x384xf32>
    %c1_96 = arith.constant 1 : index
    %c0_97 = arith.constant 0 : index
    %c0_98 = arith.constant 0 : index
    %210 = vector.load %arg8[%c1_96, %c0_97, %c0_98] : memref<2x1x128xf32, #tpu.memory_space<vmem>>, vector<1x1x128xf32>
    %211 = vector.shape_cast %210 : vector<1x1x128xf32> to vector<1x128xf32>
    %212 = vector.extract_strided_slice %209 {offsets = [0, 0], sizes = [16, 64], strides = [1, 1]} : vector<16x384xf32> to vector<16x64xf32>
    %213 = arith.truncf %212 : vector<16x64xf32> to vector<16x64xbf16>
    %214 = vector.extract_strided_slice %209 {offsets = [0, 128], sizes = [16, 64], strides = [1, 1]} : vector<16x384xf32> to vector<16x64xf32>
    %215 = arith.truncf %214 : vector<16x64xf32> to vector<16x64xbf16>
    %216 = vector.extract_strided_slice %209 {offsets = [0, 256], sizes = [16, 64], strides = [1, 1]} : vector<16x384xf32> to vector<16x64xf32>
    %217 = arith.truncf %216 : vector<16x64xf32> to vector<16x64xbf16>
    %cst_99 = arith.constant dense<0.000000e+00> : vector<16x16xf32>
    %218 = tpu.matmul %213, %215, %cst_99 {dimension_numbers = #tpu.dot_dimension_numbers<[1], [1], [0], [0], [0, 0, 1, 0], [], []>} : vector<16x64xbf16>, vector<16x64xbf16>, vector<16x16xf32> -> vector<16x16xf32>
    %cst_100 = arith.constant 1.250000e-01 : f32
    %219 = vector.broadcast %cst_100 : f32 to vector<16x16xf32>
    %220 = arith.mulf %218, %219 : vector<16x16xf32>
    %221 = vector.broadcast %26 : vector<1x16xf32> to vector<16x16xf32>
    %222 = arith.addf %220, %221 : vector<16x16xf32>
    %cst_101 = arith.constant dense<0xFF800000> : vector<16xf32>
    %223 = vector.multi_reduction <maximumf>, %222, %cst_101 [1] : vector<16x16xf32> to vector<16xf32>
    %224 = vector.shape_cast %223 : vector<16xf32> to vector<16x1xf32>
    %225 = vector.broadcast %224 : vector<16x1xf32> to vector<16x16xf32>
    %226 = arith.subf %222, %225 : vector<16x16xf32>
    %227 = math.exp %226 : vector<16x16xf32>
    %cst_102 = arith.constant dense<0.000000e+00> : vector<16xf32>
    %228 = vector.multi_reduction <add>, %227, %cst_102 [1] : vector<16x16xf32> to vector<16xf32>
    %229 = vector.shape_cast %228 : vector<16xf32> to vector<16x1xf32>
    %230 = vector.broadcast %229 : vector<16x1xf32> to vector<16x16xf32>
    %231 = arith.divf %227, %230 : vector<16x16xf32>
    %232 = arith.truncf %231 : vector<16x16xf32> to vector<16x16xbf16>
    %cst_103 = arith.constant dense<0.000000e+00> : vector<16x64xf32>
    %233 = tpu.matmul %232, %217, %cst_103 {dimension_numbers = #tpu.dot_dimension_numbers<[1], [0], [0], [1], [0, 0, 1, 1], [], []>} : vector<16x16xbf16>, vector<16x64xbf16>, vector<16x64xf32> -> vector<16x64xf32>
    %234 = arith.truncf %233 : vector<16x64xf32> to vector<16x64xbf16>
    %c1_104 = arith.constant 1 : index
    %c0_105 = arith.constant 0 : index
    %c0_106 = arith.constant 0 : index
    %235 = vector.load %arg7[%c1_104, %c0_105, %c0_106] : memref<2x128x128xbf16, #tpu.memory_space<vmem>>, vector<1x64x128xbf16>
    %236 = vector.shape_cast %235 : vector<1x64x128xbf16> to vector<64x128xbf16>
    %cst_107 = arith.constant dense<0.000000e+00> : vector<16x128xf32>
    %237 = tpu.matmul %234, %236, %cst_107 {dimension_numbers = #tpu.dot_dimension_numbers<[1], [0], [0], [1], [0, 0, 1, 1], [], []>} : vector<16x64xbf16>, vector<64x128xbf16>, vector<16x128xf32> -> vector<16x128xf32>
    %238 = vector.broadcast %211 : vector<1x128xf32> to vector<16x128xf32>
    %239 = arith.addf %238, %237 : vector<16x128xf32>
    %240 = vector.extract_strided_slice %209 {offsets = [0, 64], sizes = [16, 64], strides = [1, 1]} : vector<16x384xf32> to vector<16x64xf32>
    %241 = arith.truncf %240 : vector<16x64xf32> to vector<16x64xbf16>
    %242 = vector.extract_strided_slice %209 {offsets = [0, 192], sizes = [16, 64], strides = [1, 1]} : vector<16x384xf32> to vector<16x64xf32>
    %243 = arith.truncf %242 : vector<16x64xf32> to vector<16x64xbf16>
    %244 = vector.extract_strided_slice %209 {offsets = [0, 320], sizes = [16, 64], strides = [1, 1]} : vector<16x384xf32> to vector<16x64xf32>
    %245 = arith.truncf %244 : vector<16x64xf32> to vector<16x64xbf16>
    %cst_108 = arith.constant dense<0.000000e+00> : vector<16x16xf32>
    %246 = tpu.matmul %241, %243, %cst_108 {dimension_numbers = #tpu.dot_dimension_numbers<[1], [1], [0], [0], [0, 0, 1, 0], [], []>} : vector<16x64xbf16>, vector<16x64xbf16>, vector<16x16xf32> -> vector<16x16xf32>
    %cst_109 = arith.constant 1.250000e-01 : f32
    %247 = vector.broadcast %cst_109 : f32 to vector<16x16xf32>
    %248 = arith.mulf %246, %247 : vector<16x16xf32>
    %249 = vector.broadcast %26 : vector<1x16xf32> to vector<16x16xf32>
    %250 = arith.addf %248, %249 : vector<16x16xf32>
    %cst_110 = arith.constant dense<0xFF800000> : vector<16xf32>
    %251 = vector.multi_reduction <maximumf>, %250, %cst_110 [1] : vector<16x16xf32> to vector<16xf32>
    %252 = vector.shape_cast %251 : vector<16xf32> to vector<16x1xf32>
    %253 = vector.broadcast %252 : vector<16x1xf32> to vector<16x16xf32>
    %254 = arith.subf %250, %253 : vector<16x16xf32>
    %255 = math.exp %254 : vector<16x16xf32>
    %cst_111 = arith.constant dense<0.000000e+00> : vector<16xf32>
    %256 = vector.multi_reduction <add>, %255, %cst_111 [1] : vector<16x16xf32> to vector<16xf32>
    %257 = vector.shape_cast %256 : vector<16xf32> to vector<16x1xf32>
    %258 = vector.broadcast %257 : vector<16x1xf32> to vector<16x16xf32>
    %259 = arith.divf %255, %258 : vector<16x16xf32>
    %260 = arith.truncf %259 : vector<16x16xf32> to vector<16x16xbf16>
    %cst_112 = arith.constant dense<0.000000e+00> : vector<16x64xf32>
    %261 = tpu.matmul %260, %245, %cst_112 {dimension_numbers = #tpu.dot_dimension_numbers<[1], [0], [0], [1], [0, 0, 1, 1], [], []>} : vector<16x16xbf16>, vector<16x64xbf16>, vector<16x64xf32> -> vector<16x64xf32>
    %262 = arith.truncf %261 : vector<16x64xf32> to vector<16x64xbf16>
    %c1_113 = arith.constant 1 : index
    %c64_114 = arith.constant 64 : index
    %c0_115 = arith.constant 0 : index
    %263 = vector.load %arg7[%c1_113, %c64_114, %c0_115] : memref<2x128x128xbf16, #tpu.memory_space<vmem>>, vector<1x64x128xbf16>
    %264 = vector.shape_cast %263 : vector<1x64x128xbf16> to vector<64x128xbf16>
    %cst_116 = arith.constant dense<0.000000e+00> : vector<16x128xf32>
    %265 = tpu.matmul %262, %264, %cst_116 {dimension_numbers = #tpu.dot_dimension_numbers<[1], [0], [0], [1], [0, 0, 1, 1], [], []>} : vector<16x64xbf16>, vector<64x128xbf16>, vector<16x128xf32> -> vector<16x128xf32>
    %266 = arith.addf %239, %265 : vector<16x128xf32>
    %267 = arith.addf %266, %201 : vector<16x128xf32>
    %c1_117 = arith.constant 1 : index
    %c0_118 = arith.constant 0 : index
    %c0_119 = arith.constant 0 : index
    %268 = vector.load %arg9[%c1_117, %c0_118, %c0_119] : memref<2x1x128xf32, #tpu.memory_space<vmem>>, vector<1x1x128xf32>
    %269 = vector.shape_cast %268 : vector<1x1x128xf32> to vector<1x128xf32>
    %c1_120 = arith.constant 1 : index
    %c0_121 = arith.constant 0 : index
    %c0_122 = arith.constant 0 : index
    %270 = vector.load %arg10[%c1_120, %c0_121, %c0_122] : memref<2x1x128xf32, #tpu.memory_space<vmem>>, vector<1x1x128xf32>
    %271 = vector.shape_cast %270 : vector<1x1x128xf32> to vector<1x128xf32>
    %cst_123 = arith.constant dense<0.000000e+00> : vector<16xf32>
    %272 = vector.multi_reduction <add>, %267, %cst_123 [1] : vector<16x128xf32> to vector<16xf32>
    %273 = vector.shape_cast %272 : vector<16xf32> to vector<16x1xf32>
    %cst_124 = arith.constant 1.280000e+02 : f32
    %274 = vector.broadcast %cst_124 : f32 to vector<16x1xf32>
    %275 = arith.divf %273, %274 : vector<16x1xf32>
    %276 = arith.mulf %267, %267 : vector<16x128xf32>
    %cst_125 = arith.constant dense<0.000000e+00> : vector<16xf32>
    %277 = vector.multi_reduction <add>, %276, %cst_125 [1] : vector<16x128xf32> to vector<16xf32>
    %278 = vector.shape_cast %277 : vector<16xf32> to vector<16x1xf32>
    %cst_126 = arith.constant 1.280000e+02 : f32
    %279 = vector.broadcast %cst_126 : f32 to vector<16x1xf32>
    %280 = arith.divf %278, %279 : vector<16x1xf32>
    %281 = arith.mulf %275, %275 : vector<16x1xf32>
    %282 = arith.subf %280, %281 : vector<16x1xf32>
    %283 = vector.broadcast %275 : vector<16x1xf32> to vector<16x128xf32>
    %284 = arith.subf %267, %283 : vector<16x128xf32>
    %cst_127 = arith.constant 9.99999996E-13 : f32
    %285 = vector.broadcast %cst_127 : f32 to vector<16x1xf32>
    %286 = arith.addf %282, %285 : vector<16x1xf32>
    %287 = math.rsqrt %286 : vector<16x1xf32>
    %288 = vector.broadcast %287 : vector<16x1xf32> to vector<16x128xf32>
    %289 = arith.mulf %284, %288 : vector<16x128xf32>
    %290 = vector.broadcast %269 : vector<1x128xf32> to vector<16x128xf32>
    %291 = arith.mulf %289, %290 : vector<16x128xf32>
    %292 = vector.broadcast %271 : vector<1x128xf32> to vector<16x128xf32>
    %293 = arith.addf %291, %292 : vector<16x128xf32>
    %294 = arith.truncf %293 : vector<16x128xf32> to vector<16x128xbf16>
    %c1_128 = arith.constant 1 : index
    %c0_129 = arith.constant 0 : index
    %c0_130 = arith.constant 0 : index
    %295 = vector.load %arg11[%c1_128, %c0_129, %c0_130] : memref<2x128x512xbf16, #tpu.memory_space<vmem>>, vector<1x128x512xbf16>
    %296 = vector.shape_cast %295 : vector<1x128x512xbf16> to vector<128x512xbf16>
    %cst_131 = arith.constant dense<0.000000e+00> : vector<16x512xf32>
    %297 = tpu.matmul %294, %296, %cst_131 {dimension_numbers = #tpu.dot_dimension_numbers<[1], [0], [0], [1], [0, 0, 1, 1], [], []>} : vector<16x128xbf16>, vector<128x512xbf16>, vector<16x512xf32> -> vector<16x512xf32>
    %c1_132 = arith.constant 1 : index
    %c0_133 = arith.constant 0 : index
    %c0_134 = arith.constant 0 : index
    %298 = vector.load %arg12[%c1_132, %c0_133, %c0_134] : memref<2x1x512xf32, #tpu.memory_space<vmem>>, vector<1x1x512xf32>
    %299 = vector.shape_cast %298 : vector<1x1x512xf32> to vector<1x512xf32>
    %300 = vector.broadcast %299 : vector<1x512xf32> to vector<16x512xf32>
    %301 = arith.addf %297, %300 : vector<16x512xf32>
    %cst_135 = arith.constant 5.000000e-01 : f32
    %302 = vector.broadcast %cst_135 : f32 to vector<16x512xf32>
    %303 = arith.mulf %302, %301 : vector<16x512xf32>
    %cst_136 = arith.constant 0.707106769 : f32
    %304 = vector.broadcast %cst_136 : f32 to vector<16x512xf32>
    %305 = arith.mulf %301, %304 : vector<16x512xf32>
    %306 = math.absf %305 : vector<16x512xf32>
    %cst_137 = arith.constant 0.327591091 : f32
    %307 = vector.broadcast %cst_137 : f32 to vector<16x512xf32>
    %308 = arith.mulf %307, %306 : vector<16x512xf32>
    %cst_138 = arith.constant 1.000000e+00 : f32
    %309 = vector.broadcast %cst_138 : f32 to vector<16x512xf32>
    %310 = arith.addf %309, %308 : vector<16x512xf32>
    %cst_139 = arith.constant 1.000000e+00 : f32
    %311 = vector.broadcast %cst_139 : f32 to vector<16x512xf32>
    %312 = arith.divf %311, %310 : vector<16x512xf32>
    %cst_140 = arith.constant 1.06140542 : f32
    %313 = vector.broadcast %cst_140 : f32 to vector<16x512xf32>
    %314 = arith.mulf %313, %312 : vector<16x512xf32>
    %cst_141 = arith.constant -1.45315206 : f32
    %315 = vector.broadcast %cst_141 : f32 to vector<16x512xf32>
    %316 = arith.addf %314, %315 : vector<16x512xf32>
    %317 = arith.mulf %316, %312 : vector<16x512xf32>
    %cst_142 = arith.constant 1.42141378 : f32
    %318 = vector.broadcast %cst_142 : f32 to vector<16x512xf32>
    %319 = arith.addf %317, %318 : vector<16x512xf32>
    %320 = arith.mulf %319, %312 : vector<16x512xf32>
    %cst_143 = arith.constant -0.284496725 : f32
    %321 = vector.broadcast %cst_143 : f32 to vector<16x512xf32>
    %322 = arith.addf %320, %321 : vector<16x512xf32>
    %323 = arith.mulf %322, %312 : vector<16x512xf32>
    %cst_144 = arith.constant 0.254829586 : f32
    %324 = vector.broadcast %cst_144 : f32 to vector<16x512xf32>
    %325 = arith.addf %323, %324 : vector<16x512xf32>
    %326 = arith.mulf %325, %312 : vector<16x512xf32>
    %cst_145 = arith.constant 0.000000e+00 : f32
    %327 = vector.broadcast %cst_145 : f32 to vector<16x512xf32>
    %328 = arith.subf %327, %306 : vector<16x512xf32>
    %329 = arith.mulf %328, %306 : vector<16x512xf32>
    %330 = math.exp %329 : vector<16x512xf32>
    %331 = arith.mulf %326, %330 : vector<16x512xf32>
    %cst_146 = arith.constant 1.000000e+00 : f32
    %332 = vector.broadcast %cst_146 : f32 to vector<16x512xf32>
    %333 = arith.subf %332, %331 : vector<16x512xf32>
    %cst_147 = arith.constant 0.000000e+00 : f32
    %334 = vector.broadcast %cst_147 : f32 to vector<16x512xf32>
    %335 = arith.cmpf olt, %305, %334 : vector<16x512xf32>
    %cst_148 = arith.constant 0.000000e+00 : f32
    %336 = vector.broadcast %cst_148 : f32 to vector<16x512xf32>
    %337 = arith.subf %336, %333 : vector<16x512xf32>
    %338 = arith.select %335, %337, %333 : vector<16x512xi1>, vector<16x512xf32>
    %cst_149 = arith.constant 1.000000e+00 : f32
    %339 = vector.broadcast %cst_149 : f32 to vector<16x512xf32>
    %340 = arith.addf %339, %338 : vector<16x512xf32>
    %341 = arith.mulf %303, %340 : vector<16x512xf32>
    %342 = arith.truncf %341 : vector<16x512xf32> to vector<16x512xbf16>
    %c1_150 = arith.constant 1 : index
    %c0_151 = arith.constant 0 : index
    %c0_152 = arith.constant 0 : index
    %343 = vector.load %arg13[%c1_150, %c0_151, %c0_152] : memref<2x512x128xbf16, #tpu.memory_space<vmem>>, vector<1x512x128xbf16>
    %344 = vector.shape_cast %343 : vector<1x512x128xbf16> to vector<512x128xbf16>
    %cst_153 = arith.constant dense<0.000000e+00> : vector<16x128xf32>
    %345 = tpu.matmul %342, %344, %cst_153 {dimension_numbers = #tpu.dot_dimension_numbers<[1], [0], [0], [1], [0, 0, 1, 1], [], []>} : vector<16x512xbf16>, vector<512x128xbf16>, vector<16x128xf32> -> vector<16x128xf32>
    %c1_154 = arith.constant 1 : index
    %c0_155 = arith.constant 0 : index
    %c0_156 = arith.constant 0 : index
    %346 = vector.load %arg14[%c1_154, %c0_155, %c0_156] : memref<2x1x128xf32, #tpu.memory_space<vmem>>, vector<1x1x128xf32>
    %347 = vector.shape_cast %346 : vector<1x1x128xf32> to vector<1x128xf32>
    %348 = vector.broadcast %347 : vector<1x128xf32> to vector<16x128xf32>
    %349 = arith.addf %345, %348 : vector<16x128xf32>
    %350 = arith.addf %349, %293 : vector<16x128xf32>
    %c1_157 = arith.constant 1 : index
    %c0_158 = arith.constant 0 : index
    %c0_159 = arith.constant 0 : index
    %351 = vector.load %arg15[%c1_157, %c0_158, %c0_159] : memref<2x1x128xf32, #tpu.memory_space<vmem>>, vector<1x1x128xf32>
    %352 = vector.shape_cast %351 : vector<1x1x128xf32> to vector<1x128xf32>
    %c1_160 = arith.constant 1 : index
    %c0_161 = arith.constant 0 : index
    %c0_162 = arith.constant 0 : index
    %353 = vector.load %arg16[%c1_160, %c0_161, %c0_162] : memref<2x1x128xf32, #tpu.memory_space<vmem>>, vector<1x1x128xf32>
    %354 = vector.shape_cast %353 : vector<1x1x128xf32> to vector<1x128xf32>
    %cst_163 = arith.constant dense<0.000000e+00> : vector<16xf32>
    %355 = vector.multi_reduction <add>, %350, %cst_163 [1] : vector<16x128xf32> to vector<16xf32>
    %356 = vector.shape_cast %355 : vector<16xf32> to vector<16x1xf32>
    %cst_164 = arith.constant 1.280000e+02 : f32
    %357 = vector.broadcast %cst_164 : f32 to vector<16x1xf32>
    %358 = arith.divf %356, %357 : vector<16x1xf32>
    %359 = arith.mulf %350, %350 : vector<16x128xf32>
    %cst_165 = arith.constant dense<0.000000e+00> : vector<16xf32>
    %360 = vector.multi_reduction <add>, %359, %cst_165 [1] : vector<16x128xf32> to vector<16xf32>
    %361 = vector.shape_cast %360 : vector<16xf32> to vector<16x1xf32>
    %cst_166 = arith.constant 1.280000e+02 : f32
    %362 = vector.broadcast %cst_166 : f32 to vector<16x1xf32>
    %363 = arith.divf %361, %362 : vector<16x1xf32>
    %364 = arith.mulf %358, %358 : vector<16x1xf32>
    %365 = arith.subf %363, %364 : vector<16x1xf32>
    %366 = vector.broadcast %358 : vector<16x1xf32> to vector<16x128xf32>
    %367 = arith.subf %350, %366 : vector<16x128xf32>
    %cst_167 = arith.constant 9.99999996E-13 : f32
    %368 = vector.broadcast %cst_167 : f32 to vector<16x1xf32>
    %369 = arith.addf %365, %368 : vector<16x1xf32>
    %370 = math.rsqrt %369 : vector<16x1xf32>
    %371 = vector.broadcast %370 : vector<16x1xf32> to vector<16x128xf32>
    %372 = arith.mulf %367, %371 : vector<16x128xf32>
    %373 = vector.broadcast %352 : vector<1x128xf32> to vector<16x128xf32>
    %374 = arith.mulf %372, %373 : vector<16x128xf32>
    %375 = vector.broadcast %354 : vector<1x128xf32> to vector<16x128xf32>
    %376 = arith.addf %374, %375 : vector<16x128xf32>
    %377 = arith.truncf %376 : vector<16x128xf32> to vector<16x128xbf16>
    %c0_168 = arith.constant 0 : index
    %c0_169 = arith.constant 0 : index
    %378 = vector.load %arg17[%c0_168, %c0_169] : memref<128x128xbf16, #tpu.memory_space<vmem>>, vector<128x128xbf16>
    %cst_170 = arith.constant dense<0.000000e+00> : vector<16x128xf32>
    %379 = tpu.matmul %377, %378, %cst_170 {dimension_numbers = #tpu.dot_dimension_numbers<[1], [0], [0], [1], [0, 0, 1, 1], [], []>} : vector<16x128xbf16>, vector<128x128xbf16>, vector<16x128xf32> -> vector<16x128xf32>
    %c0_171 = arith.constant 0 : index
    %c0_172 = arith.constant 0 : index
    %380 = vector.load %arg18[%c0_171, %c0_172] : memref<1x128xf32, #tpu.memory_space<vmem>>, vector<1x128xf32>
    %381 = vector.broadcast %380 : vector<1x128xf32> to vector<16x128xf32>
    %382 = arith.addf %379, %381 : vector<16x128xf32>
    %c0_173 = arith.constant 0 : index
    %c0_174 = arith.constant 0 : index
    %383 = vector.load %arg19[%c0_173, %c0_174] : memref<16x128xf32, #tpu.memory_space<vmem>>, vector<16x128xf32>
    tpu.vector_store %arg19[%c0_173, %c0_174], %382 {strides = array<i32>} : memref<16x128xf32, #tpu.memory_space<vmem>>, vector<16x128xf32>,
    return
  }
  func.func @transform_0(%arg0: i32) -> (i32, i32) {
    %c0_i32 = arith.constant 0 : i32
    %c0_i32_0 = arith.constant 0 : i32
    return %arg0, %c0_i32 : i32, i32
  }
  func.func @transform_1(%arg0: i32) -> (i32, i32, i32) {
    %c0_i32 = arith.constant 0 : i32
    %c0_i32_0 = arith.constant 0 : i32
    %c0_i32_1 = arith.constant 0 : i32
    return %arg0, %c0_i32, %c0_i32_0 : i32, i32, i32
  }
  func.func @transform_2(%arg0: i32) -> (i32, i32) {
    %c0_i32 = arith.constant 0 : i32
    %c0_i32_0 = arith.constant 0 : i32
    %c0_i32_1 = arith.constant 0 : i32
    return %c0_i32, %c0_i32_0 : i32, i32
  }
  func.func @transform_3(%arg0: i32) -> (i32, i32) {
    %c0_i32 = arith.constant 0 : i32
    %c0_i32_0 = arith.constant 0 : i32
    %c0_i32_1 = arith.constant 0 : i32
    return %c0_i32, %c0_i32_0 : i32, i32
  }
  func.func @transform_4(%arg0: i32) -> (i32, i32, i32) {
    %c0_i32 = arith.constant 0 : i32
    %c0_i32_0 = arith.constant 0 : i32
    %c0_i32_1 = arith.constant 0 : i32
    %c0_i32_2 = arith.constant 0 : i32
    return %c0_i32, %c0_i32_0, %c0_i32_1 : i32, i32, i32
  }
  func.func @transform_5(%arg0: i32) -> (i32, i32, i32) {
    %c0_i32 = arith.constant 0 : i32
    %c0_i32_0 = arith.constant 0 : i32
    %c0_i32_1 = arith.constant 0 : i32
    %c0_i32_2 = arith.constant 0 : i32
    return %c0_i32, %c0_i32_0, %c0_i32_1 : i32, i32, i32
  }
  func.func @transform_6(%arg0: i32) -> (i32, i32, i32) {
    %c0_i32 = arith.constant 0 : i32
    %c0_i32_0 = arith.constant 0 : i32
    %c0_i32_1 = arith.constant 0 : i32
    %c0_i32_2 = arith.constant 0 : i32
    return %c0_i32, %c0_i32_0, %c0_i32_1 : i32, i32, i32
  }
  func.func @transform_7(%arg0: i32) -> (i32, i32, i32) {
    %c0_i32 = arith.constant 0 : i32
    %c0_i32_0 = arith.constant 0 : i32
    %c0_i32_1 = arith.constant 0 : i32
    %c0_i32_2 = arith.constant 0 : i32
    return %c0_i32, %c0_i32_0, %c0_i32_1 : i32, i32, i32
  }
  func.func @transform_8(%arg0: i32) -> (i32, i32, i32) {
    %c0_i32 = arith.constant 0 : i32
    %c0_i32_0 = arith.constant 0 : i32
    %c0_i32_1 = arith.constant 0 : i32
    %c0_i32_2 = arith.constant 0 : i32
    return %c0_i32, %c0_i32_0, %c0_i32_1 : i32, i32, i32
  }
  func.func @transform_9(%arg0: i32) -> (i32, i32, i32) {
    %c0_i32 = arith.constant 0 : i32
    %c0_i32_0 = arith.constant 0 : i32
    %c0_i32_1 = arith.constant 0 : i32
    %c0_i32_2 = arith.constant 0 : i32
    return %c0_i32, %c0_i32_0, %c0_i32_1 : i32, i32, i32
  }
  func.func @transform_10(%arg0: i32) -> (i32, i32, i32) {
    %c0_i32 = arith.constant 0 : i32
    %c0_i32_0 = arith.constant 0 : i32
    %c0_i32_1 = arith.constant 0 : i32
    %c0_i32_2 = arith.constant 0 : i32
    return %c0_i32, %c0_i32_0, %c0_i32_1 : i32, i32, i32
  }
  func.func @transform_11(%arg0: i32) -> (i32, i32, i32) {
    %c0_i32 = arith.constant 0 : i32
    %c0_i32_0 = arith.constant 0 : i32
    %c0_i32_1 = arith.constant 0 : i32
    %c0_i32_2 = arith.constant 0 : i32
    return %c0_i32, %c0_i32_0, %c0_i32_1 : i32, i32, i32
  }
  func.func @transform_12(%arg0: i32) -> (i32, i32, i32) {
    %c0_i32 = arith.constant 0 : i32
    %c0_i32_0 = arith.constant 0 : i32
    %c0_i32_1 = arith.constant 0 : i32
    %c0_i32_2 = arith.constant 0 : i32
    return %c0_i32, %c0_i32_0, %c0_i32_1 : i32, i32, i32
  }
  func.func @transform_13(%arg0: i32) -> (i32, i32, i32) {
    %c0_i32 = arith.constant 0 : i32
    %c0_i32_0 = arith.constant 0 : i32
    %c0_i32_1 = arith.constant 0 : i32
    %c0_i32_2 = arith.constant 0 : i32
    return %c0_i32, %c0_i32_0, %c0_i32_1 : i32, i32, i32
  }
  func.func @transform_14(%arg0: i32) -> (i32, i32, i32) {
    %c0_i32 = arith.constant 0 : i32
    %c0_i32_0 = arith.constant 0 : i32
    %c0_i32_1 = arith.constant 0 : i32
    %c0_i32_2 = arith.constant 0 : i32
    return %c0_i32, %c0_i32_0, %c0_i32_1 : i32, i32, i32
  }
  func.func @transform_15(%arg0: i32) -> (i32, i32, i32) {
    %c0_i32 = arith.constant 0 : i32
    %c0_i32_0 = arith.constant 0 : i32
    %c0_i32_1 = arith.constant 0 : i32
    %c0_i32_2 = arith.constant 0 : i32
    return %c0_i32, %c0_i32_0, %c0_i32_1 : i32, i32, i32
  }
  func.func @transform_16(%arg0: i32) -> (i32, i32) {
    %c0_i32 = arith.constant 0 : i32
    %c0_i32_0 = arith.constant 0 : i32
    %c0_i32_1 = arith.constant 0 : i32
    return %c0_i32, %c0_i32_0 : i32, i32
  }
  func.func @transform_17(%arg0: i32) -> (i32, i32) {
    %c0_i32 = arith.constant 0 : i32
    %c0_i32_0 = arith.constant 0 : i32
    %c0_i32_1 = arith.constant 0 : i32
    return %c0_i32, %c0_i32_0 : i32, i32
  }
  func.func @transform_18(%arg0: i32) -> (i32, i32) {
    %c0_i32 = arith.constant 0 : i32
    %c0_i32_0 = arith.constant 0 : i32
    return %arg0, %c0_i32 : i32, i32
  }
}

</mosaic_0001>

<llo_original>
// kernel: electra_qa_forward.1
$region0: #{electra_qa_forward.1}
  #allocation0 [shape = 'u32[]', space=smem, size = 0x4, offset = 0x4, fixed_abs, tag = 'smem constant byte address 0x4 - core index']
  #allocation1 [shape = 'u32[144,128]{1,0:T(1,128)}', space=vmem, size = 0x12000, scoped, tag = 'internal scratch']
  %s0 = inlined_call_operand.vmem [shape: f32[32,128], index: 0, kind: input, shape index: {}]
  %s1 = inlined_call_operand.vmem [shape: f32[2,1,16], index: 1, kind: input, shape index: {}]
  %s2 = inlined_call_operand.vmem [shape: f32[1,128], index: 2, kind: input, shape index: {}]
  %s3 = inlined_call_operand.vmem [shape: f32[1,128], index: 3, kind: input, shape index: {}]
  %s4 = inlined_call_operand.hbm [shape: bf16[2,128,384], index: 4, kind: input, shape index: {}]
  %s5 = inlined_call_operand.vmem [shape: f32[2,1,384], index: 5, kind: input, shape index: {}]
  %s6 = inlined_call_operand.hbm [shape: bf16[2,128,128], index: 6, kind: input, shape index: {}]
  %s7 = inlined_call_operand.vmem [shape: f32[2,1,128], index: 7, kind: input, shape index: {}]
  %s8 = inlined_call_operand.vmem [shape: f32[2,1,128], index: 8, kind: input, shape index: {}]
  %s9 = inlined_call_operand.vmem [shape: f32[2,1,128], index: 9, kind: input, shape index: {}]
  %s10 = inlined_call_operand.vmem [shape: bf16[2,128,512], index: 10, kind: input, shape index: {}]
  %s11 = inlined_call_operand.vmem [shape: f32[2,1,512], index: 11, kind: input, shape index: {}]
  %s12 = inlined_call_operand.hbm [shape: bf16[2,512,128], index: 12, kind: input, shape index: {}]
  %s13 = inlined_call_operand.vmem [shape: f32[2,1,128], index: 13, kind: input, shape index: {}]
  %s14 = inlined_call_operand.hbm [shape: f32[2,1,128], index: 14, kind: input, shape index: {}]
  %s15 = inlined_call_operand.hbm [shape: f32[2,1,128], index: 15, kind: input, shape index: {}]
  %s16 = inlined_call_operand.vmem [shape: bf16[128,128], index: 16, kind: input, shape index: {}]
  %s17 = inlined_call_operand.hbm [shape: f32[1,128], index: 17, kind: input, shape index: {}]
  %s18 = inlined_call_operand.vmem [shape: f32[32,128], index: 18, kind: output, shape index: {}]
  %s19 = sld [smem:[#allocation0]]
  $region129: #{electra_qa_forward.1} parent=0
    _
  %s21 = ssub.s32 1, %s19
  %s22 = scalar_select 0, %s21, %s19
  $region1: #{electra_qa_forward.1} parent=0
    #allocation2 [shape = 'u8[196608]{0}', space=vmem, size = 0x30000, scoped, tag = 'input window, operand 4, single buffered']
    #allocation3 [shape = 's32[2]{0}', space=sflag, size = 0x8, scoped, tag = 'scoped memory for electra_qa_forward.1']
    #allocation4 [shape = 'u8[65536]{0}', space=vmem, size = 0x10000, scoped, tag = 'input window, operand 6, single buffered']
    #allocation5 [shape = 's32[1]{0}', space=sflag, size = 0x4, scoped, tag = 'scoped memory for electra_qa_forward.1']
    #allocation6 [shape = 'u8[262144]{0}', space=vmem, size = 0x40000, scoped, tag = 'input window, operand 12, single buffered']
    #allocation7 [shape = 'u8[1024]{0}', space=vmem, size = 0x400, scoped, tag = 'input window, operand 14, single buffered']
    #allocation8 [shape = 's32[1]{0}', space=sflag, size = 0x4, scoped, tag = 'scoped memory for electra_qa_forward.1']
    #allocation9 [shape = 'u8[1024]{0}', space=vmem, size = 0x400, scoped, tag = 'input window, operand 15, single buffered']
    #allocation10 [shape = 'u8[512]{0}', space=vmem, size = 0x400, scoped, tag = 'input window, operand 17, single buffered']
    #allocation11 [shape = 's32[1]{0}', space=sflag, size = 0x4, scoped, tag = 'scoped memory for electra_qa_forward.1']
    %23 = vsyncpa [#allocation3], 0
    %24 = vsyncpa [#allocation5], 0
    %25 = vsyncpa [#allocation8], 0
    %26 = vsyncpa [#allocation11], 0
    loop: start=0, step=1, limit=4
    $region2: #{electra_qa_forward.1} parent=1 // loop_pre_header
      _
    $region3: #{electra_qa_forward.1} parent=1 // loop_header
      %s28 = sphi 0, %s32
      %p29 = scmp.ge.s32.totalorder %s28, 4
      %s38 = sphi 0, %s40
      %s41 = sphi 0, %s38
      %s42 = sphi 0, %s41
      %s58 = sphi 0, %s42
      %s64 = sphi 0, %s66
      %s67 = sphi 0, %s64
      %s68 = sphi 0, %s67
      %s84 = sphi 0, %s68
      %s88 = sphi 0, %s88
      %s90 = sphi 0, %s88
      %s91 = sphi 0, %s90
      %s105 = sphi 0, %s91
      %s109 = sphi 0, %s109
      %s111 = sphi 0, %s109
      %s112 = sphi 0, %s111
      %s126 = sphi 0, %s112
      %s130 = sphi 0, %s130
      %s132 = sphi 0, %s130
      %s133 = sphi 0, %s132
      %s147 = sphi 0, %s133
      %s151 = sphi 0, %s151
      %s153 = sphi 0, %s151
      %s154 = sphi 0, %s153
      %s168 = sphi 0, %s154
      %s172 = sphi 0, %s172
      %s174 = sphi 0, %s172
      %s175 = sphi 0, %s174
      %s189 = sphi 0, %s175
      %s193 = sphi 0, %s193
      %s195 = sphi 0, %s193
      %s196 = sphi 0, %s195
      %s210 = sphi 0, %s196
      %s214 = sphi 0, %s214
      %s216 = sphi 0, %s214
      %s217 = sphi 0, %s216
      %s231 = sphi 0, %s217
      %s235 = sphi 0, %s235
      %s237 = sphi 0, %s235
      %s238 = sphi 0, %s237
      %s252 = sphi 0, %s238
      %s256 = sphi 0, %s256
      %s258 = sphi 0, %s256
      %s259 = sphi 0, %s258
      %s273 = sphi 0, %s259
      %s277 = sphi 0, %s277
      %s279 = sphi 0, %s277
      %s280 = sphi 0, %s279
      %s294 = sphi 0, %s280
      %s298 = sphi 0, %s298
      %s300 = sphi 0, %s298
      %s301 = sphi 0, %s300
      %s315 = sphi 0, %s301
      %s319 = sphi 0, %s319
      %s321 = sphi 0, %s319
      %s322 = sphi 0, %s321
      %s336 = sphi 0, %s322
      %s340 = sphi 0, %s340
      %s342 = sphi 0, %s340
      %s343 = sphi 0, %s342
      %s357 = sphi 0, %s343
      %s361 = sphi 0, %s361
      %s363 = sphi 0, %s361
      %s364 = sphi 0, %s363
      %s378 = sphi 0, %s364
      %s382 = sphi 0, %s382
      %s384 = sphi 0, %s382
      %s385 = sphi 0, %s384
      %s399 = sphi 0, %s385
      %s403 = sphi 0, %s403
      %s405 = sphi 0, %s403
      %s406 = sphi 0, %s405
      %s420 = sphi 0, %s406
      %s426 = sphi 0, %s428
      %s429 = sphi 0, %s426
      %s430 = sphi 0, %s429
      %s446 = sphi 0, %s430
    $region4: #{electra_qa_forward.1} parent=1 // loop_header_branch
      %31 = sbr.rel (%p29) target = $region8
    $region5: #{electra_qa_forward.1} parent=1 // loop_body
      %s33 = ssub.s32 %s28, 1
      %s34 = ssub.s32 %s28, 2
      %s35 = sadd.s32 %s28, 1
      %s36 = ssub.s32 %s28, %s35
      %p37 = scmp.eq.s32.totalorder %s36, 0
      %s39 = sadd.s32 %s38, 1
      %s40 = scalar_select %p37, %s38, %s39
      %p43 = pneg %p37
      %p44 = scmp.eq.s32.totalorder %s28, 1
      %p45 = por %p43, %p44
      %p46 = scmp.ne.s32.totalorder %s38, %s41
      %p47 = scmp.eq.s32.totalorder %s28, 0
      %p48 = por %p46, %p47
      %p49 = scmp.ne.s32.totalorder %s38, %s41
      %p50 = scmp.eq.s32.totalorder %s33, 1
      %p51 = por %p49, %p50
      %p52 = scmp.ne.s32.totalorder %s41, %s42
      %p53 = scmp.eq.s32.totalorder %s33, 0
      %p54 = por %p52, %p53
      %p55 = scmp.ne.s32.totalorder %s41, %s42
      %p56 = scmp.eq.s32.totalorder %s34, 1
      %p57 = por %p55, %p56
      %p59 = scmp.ne.s32.totalorder %s42, %s58
      %p60 = scmp.eq.s32.totalorder %s34, 0
      %p61 = por %p59, %p60
      %s62 = ssub.s32 %s28, %s35
      %p63 = scmp.eq.s32.totalorder %s62, 0
      %s65 = sadd.s32 %s64, 1
      %s66 = scalar_select %p63, %s64, %s65
      %p69 = pneg %p63
      %p70 = scmp.eq.s32.totalorder %s28, 1
      %p71 = por %p69, %p70
      %p72 = scmp.ne.s32.totalorder %s64, %s67
      %p73 = scmp.eq.s32.totalorder %s28, 0
      %p74 = por %p72, %p73
      %p75 = scmp.ne.s32.totalorder %s64, %s67
      %p76 = scmp.eq.s32.totalorder %s33, 1
      %p77 = por %p75, %p76
      %p78 = scmp.ne.s32.totalorder %s67, %s68
      %p79 = scmp.eq.s32.totalorder %s33, 0
      %p80 = por %p78, %p79
      %p81 = scmp.ne.s32.totalorder %s67, %s68
      %p82 = scmp.eq.s32.totalorder %s34, 1
      %p83 = por %p81, %p82
      %p85 = scmp.ne.s32.totalorder %s68, %s84
      %p86 = scmp.eq.s32.totalorder %s34, 0
      %p87 = por %p85, %p86
      %s89 = sadd.s32 %s88, 1
      %p92 = scmp.eq.s32.totalorder %s28, 1
      %p93 = scmp.ne.s32.totalorder %s88, %s90
      %p94 = scmp.eq.s32.totalorder %s28, 0
      %p95 = por %p93, %p94
      %p96 = scmp.ne.s32.totalorder %s88, %s90
      %p97 = scmp.eq.s32.totalorder %s33, 1
      %p98 = por %p96, %p97
      %p99 = scmp.ne.s32.totalorder %s90, %s91
      %p100 = scmp.eq.s32.totalorder %s33, 0
      %p101 = por %p99, %p100
      %p102 = scmp.ne.s32.totalorder %s90, %s91
      %p103 = scmp.eq.s32.totalorder %s34, 1
      %p104 = por %p102, %p103
      %p106 = scmp.ne.s32.totalorder %s91, %s105
      %p107 = scmp.eq.s32.totalorder %s34, 0
      %p108 = por %p106, %p107
      %s110 = sadd.s32 %s109, 1
      %p113 = scmp.eq.s32.totalorder %s28, 1
      %p114 = scmp.ne.s32.totalorder %s109, %s111
      %p115 = scmp.eq.s32.totalorder %s28, 0
      %p116 = por %p114, %p115
      %p117 = scmp.ne.s32.totalorder %s109, %s111
      %p118 = scmp.eq.s32.totalorder %s33, 1
      %p119 = por %p117, %p118
      %p120 = scmp.ne.s32.totalorder %s111, %s112
      %p121 = scmp.eq.s32.totalorder %s33, 0
      %p122 = por %p120, %p121
      %p123 = scmp.ne.s32.totalorder %s111, %s112
      %p124 = scmp.eq.s32.totalorder %s34, 1
      %p125 = por %p123, %p124
      %p127 = scmp.ne.s32.totalorder %s112, %s126
      %p128 = scmp.eq.s32.totalorder %s34, 0
      %p129 = por %p127, %p128
      %s131 = sadd.s32 %s130, 1
      %p134 = scmp.eq.s32.totalorder %s28, 1
      %p135 = scmp.ne.s32.totalorder %s130, %s132
      %p136 = scmp.eq.s32.totalorder %s28, 0
      %p137 = por %p135, %p136
      %p138 = scmp.ne.s32.totalorder %s130, %s132
      %p139 = scmp.eq.s32.totalorder %s33, 1
      %p140 = por %p138, %p139
      %p141 = scmp.ne.s32.totalorder %s132, %s133
      %p142 = scmp.eq.s32.totalorder %s33, 0
      %p143 = por %p141, %p142
      %p144 = scmp.ne.s32.totalorder %s132, %s133
      %p145 = scmp.eq.s32.totalorder %s34, 1
      %p146 = por %p144, %p145
      %p148 = scmp.ne.s32.totalorder %s133, %s147
      %p149 = scmp.eq.s32.totalorder %s34, 0
      %p150 = por %p148, %p149
      %s152 = sadd.s32 %s151, 1
      %p155 = scmp.eq.s32.totalorder %s28, 1
      %p156 = scmp.ne.s32.totalorder %s151, %s153
      %p157 = scmp.eq.s32.totalorder %s28, 0
      %p158 = por %p156, %p157
      %p159 = scmp.ne.s32.totalorder %s151, %s153
      %p160 = scmp.eq.s32.totalorder %s33, 1
      %p161 = por %p159, %p160
      %p162 = scmp.ne.s32.totalorder %s153, %s154
      %p163 = scmp.eq.s32.totalorder %s33, 0
      %p164 = por %p162, %p163
      %p165 = scmp.ne.s32.totalorder %s153, %s154
      %p166 = scmp.eq.s32.totalorder %s34, 1
      %p167 = por %p165, %p166
      %p169 = scmp.ne.s32.totalorder %s154, %s168
      %p170 = scmp.eq.s32.totalorder %s34, 0
      %p171 = por %p169, %p170
      %s173 = sadd.s32 %s172, 1
      %p176 = scmp.eq.s32.totalorder %s28, 1
      %p177 = scmp.ne.s32.totalorder %s172, %s174
      %p178 = scmp.eq.s32.totalorder %s28, 0
      %p179 = por %p177, %p178
      %p180 = scmp.ne.s32.totalorder %s172, %s174
      %p181 = scmp.eq.s32.totalorder %s33, 1
      %p182 = por %p180, %p181
      %p183 = scmp.ne.s32.totalorder %s174, %s175
      %p184 = scmp.eq.s32.totalorder %s33, 0
      %p185 = por %p183, %p184
      %p186 = scmp.ne.s32.totalorder %s174, %s175
      %p187 = scmp.eq.s32.totalorder %s34, 1
      %p188 = por %p186, %p187
      %p190 = scmp.ne.s32.totalorder %s175, %s189
      %p191 = scmp.eq.s32.totalorder %s34, 0
      %p192 = por %p190, %p191
      %s194 = sadd.s32 %s193, 1
      %p197 = scmp.eq.s32.totalorder %s28, 1
      %p198 = scmp.ne.s32.totalorder %s193, %s195
      %p199 = scmp.eq.s32.totalorder %s28, 0
      %p200 = por %p198, %p199
      %p201 = scmp.ne.s32.totalorder %s193, %s195
      %p202 = scmp.eq.s32.totalorder %s33, 1
      %p203 = por %p201, %p202
      %p204 = scmp.ne.s32.totalorder %s195, %s196
      %p205 = scmp.eq.s32.totalorder %s33, 0
      %p206 = por %p204, %p205
      %p207 = scmp.ne.s32.totalorder %s195, %s196
      %p208 = scmp.eq.s32.totalorder %s34, 1
      %p209 = por %p207, %p208
      %p211 = scmp.ne.s32.totalorder %s196, %s210
      %p212 = scmp.eq.s32.totalorder %s34, 0
      %p213 = por %p211, %p212
      %s215 = sadd.s32 %s214, 1
      %p218 = scmp.eq.s32.totalorder %s28, 1
      %p219 = scmp.ne.s32.totalorder %s214, %s216
      %p220 = scmp.eq.s32.totalorder %s28, 0
      %p221 = por %p219, %p220
      %p222 = scmp.ne.s32.totalorder %s214, %s216
      %p223 = scmp.eq.s32.totalorder %s33, 1
      %p224 = por %p222, %p223
      %p225 = scmp.ne.s32.totalorder %s216, %s217
      %p226 = scmp.eq.s32.totalorder %s33, 0
      %p227 = por %p225, %p226
      %p228 = scmp.ne.s32.totalorder %s216, %s217
      %p229 = scmp.eq.s32.totalorder %s34, 1
      %p230 = por %p228, %p229
      %p232 = scmp.ne.s32.totalorder %s217, %s231
      %p233 = scmp.eq.s32.totalorder %s34, 0
      %p234 = por %p232, %p233
      %s236 = sadd.s32 %s235, 1
      %p239 = scmp.eq.s32.totalorder %s28, 1
      %p240 = scmp.ne.s32.totalorder %s235, %s237
      %p241 = scmp.eq.s32.totalorder %s28, 0
      %p242 = por %p240, %p241
      %p243 = scmp.ne.s32.totalorder %s235, %s237
      %p244 = scmp.eq.s32.totalorder %s33, 1
      %p245 = por %p243, %p244
      %p246 = scmp.ne.s32.totalorder %s237, %s238
      %p247 = scmp.eq.s32.totalorder %s33, 0
      %p248 = por %p246, %p247
      %p249 = scmp.ne.s32.totalorder %s237, %s238
      %p250 = scmp.eq.s32.totalorder %s34, 1
      %p251 = por %p249, %p250
      %p253 = scmp.ne.s32.totalorder %s238, %s252
      %p254 = scmp.eq.s32.totalorder %s34, 0
      %p255 = por %p253, %p254
      %s257 = sadd.s32 %s256, 1
      %p260 = scmp.eq.s32.totalorder %s28, 1
      %p261 = scmp.ne.s32.totalorder %s256, %s258
      %p262 = scmp.eq.s32.totalorder %s28, 0
      %p263 = por %p261, %p262
      %p264 = scmp.ne.s32.totalorder %s256, %s258
      %p265 = scmp.eq.s32.totalorder %s33, 1
      %p266 = por %p264, %p265
      %p267 = scmp.ne.s32.totalorder %s258, %s259
      %p268 = scmp.eq.s32.totalorder %s33, 0
      %p269 = por %p267, %p268
      %p270 = scmp.ne.s32.totalorder %s258, %s259
      %p271 = scmp.eq.s32.totalorder %s34, 1
      %p272 = por %p270, %p271
      %p274 = scmp.ne.s32.totalorder %s259, %s273
      %p275 = scmp.eq.s32.totalorder %s34, 0
      %p276 = por %p274, %p275
      %s278 = sadd.s32 %s277, 1
      %p281 = scmp.eq.s32.totalorder %s28, 1
      %p282 = scmp.ne.s32.totalorder %s277, %s279
      %p283 = scmp.eq.s32.totalorder %s28, 0
      %p284 = por %p282, %p283
      %p285 = scmp.ne.s32.totalorder %s277, %s279
      %p286 = scmp.eq.s32.totalorder %s33, 1
      %p287 = por %p285, %p286
      %p288 = scmp.ne.s32.totalorder %s279, %s280
      %p289 = scmp.eq.s32.totalorder %s33, 0
      %p290 = por %p288, %p289
      %p291 = scmp.ne.s32.totalorder %s279, %s280
      %p292 = scmp.eq.s32.totalorder %s34, 1
      %p293 = por %p291, %p292
      %p295 = scmp.ne.s32.totalorder %s280, %s294
      %p296 = scmp.eq.s32.totalorder %s34, 0
      %p297 = por %p295, %p296
      %s299 = sadd.s32 %s298, 1
      %p302 = scmp.eq.s32.totalorder %s28, 1
      %p303 = scmp.ne.s32.totalorder %s298, %s300
      %p304 = scmp.eq.s32.totalorder %s28, 0
      %p305 = por %p303, %p304
      %p306 = scmp.ne.s32.totalorder %s298, %s300
      %p307 = scmp.eq.s32.totalorder %s33, 1
      %p308 = por %p306, %p307
      %p309 = scmp.ne.s32.totalorder %s300, %s301
      %p310 = scmp.eq.s32.totalorder %s33, 0
      %p311 = por %p309, %p310
      %p312 = scmp.ne.s32.totalorder %s300, %s301
      %p313 = scmp.eq.s32.totalorder %s34, 1
      %p314 = por %p312, %p313
      %p316 = scmp.ne.s32.totalorder %s301, %s315
      %p317 = scmp.eq.s32.totalorder %s34, 0
      %p318 = por %p316, %p317
      %s320 = sadd.s32 %s319, 1
      %p323 = scmp.eq.s32.totalorder %s28, 1
      %p324 = scmp.ne.s32.totalorder %s319, %s321
      %p325 = scmp.eq.s32.totalorder %s28, 0
      %p326 = por %p324, %p325
      %p327 = scmp.ne.s32.totalorder %s319, %s321
      %p328 = scmp.eq.s32.totalorder %s33, 1
      %p329 = por %p327, %p328
      %p330 = scmp.ne.s32.totalorder %s321, %s322
      %p331 = scmp.eq.s32.totalorder %s33, 0
      %p332 = por %p330, %p331
      %p333 = scmp.ne.s32.totalorder %s321, %s322
      %p334 = scmp.eq.s32.totalorder %s34, 1
      %p335 = por %p333, %p334
      %p337 = scmp.ne.s32.totalorder %s322, %s336
      %p338 = scmp.eq.s32.totalorder %s34, 0
      %p339 = por %p337, %p338
      %s341 = sadd.s32 %s340, 1
      %p344 = scmp.eq.s32.totalorder %s28, 1
      %p345 = scmp.ne.s32.totalorder %s340, %s342
      %p346 = scmp.eq.s32.totalorder %s28, 0
      %p347 = por %p345, %p346
      %p348 = scmp.ne.s32.totalorder %s340, %s342
      %p349 = scmp.eq.s32.totalorder %s33, 1
      %p350 = por %p348, %p349
      %p351 = scmp.ne.s32.totalorder %s342, %s343
      %p352 = scmp.eq.s32.totalorder %s33, 0
      %p353 = por %p351, %p352
      %p354 = scmp.ne.s32.totalorder %s342, %s343
      %p355 = scmp.eq.s32.totalorder %s34, 1
      %p356 = por %p354, %p355
      %p358 = scmp.ne.s32.totalorder %s343, %s357
      %p359 = scmp.eq.s32.totalorder %s34, 0
      %p360 = por %p358, %p359
      %s362 = sadd.s32 %s361, 1
      %p365 = scmp.eq.s32.totalorder %s28, 1
      %p366 = scmp.ne.s32.totalorder %s361, %s363
      %p367 = scmp.eq.s32.totalorder %s28, 0
      %p368 = por %p366, %p367
      %p369 = scmp.ne.s32.totalorder %s361, %s363
      %p370 = scmp.eq.s32.totalorder %s33, 1
      %p371 = por %p369, %p370
      %p372 = scmp.ne.s32.totalorder %s363, %s364
      %p373 = scmp.eq.s32.totalorder %s33, 0
      %p374 = por %p372, %p373
      %p375 = scmp.ne.s32.totalorder %s363, %s364
      %p376 = scmp.eq.s32.totalorder %s34, 1
      %p377 = por %p375, %p376
      %p379 = scmp.ne.s32.totalorder %s364, %s378
      %p380 = scmp.eq.s32.totalorder %s34, 0
      %p381 = por %p379, %p380
      %s383 = sadd.s32 %s382, 1
      %p386 = scmp.eq.s32.totalorder %s28, 1
      %p387 = scmp.ne.s32.totalorder %s382, %s384
      %p388 = scmp.eq.s32.totalorder %s28, 0
      %p389 = por %p387, %p388
      %p390 = scmp.ne.s32.totalorder %s382, %s384
      %p391 = scmp.eq.s32.totalorder %s33, 1
      %p392 = por %p390, %p391
      %p393 = scmp.ne.s32.totalorder %s384, %s385
      %p394 = scmp.eq.s32.totalorder %s33, 0
      %p395 = por %p393, %p394
      %p396 = scmp.ne.s32.totalorder %s384, %s385
      %p397 = scmp.eq.s32.totalorder %s34, 1
      %p398 = por %p396, %p397
      %p400 = scmp.ne.s32.totalorder %s385, %s399
      %p401 = scmp.eq.s32.totalorder %s34, 0
      %p402 = por %p400, %p401
      %s404 = sadd.s32 %s403, 1
      %p407 = scmp.eq.s32.totalorder %s28, 1
      %p408 = scmp.ne.s32.totalorder %s403, %s405
      %p409 = scmp.eq.s32.totalorder %s28, 0
      %p410 = por %p408, %p409
      %p411 = scmp.ne.s32.totalorder %s403, %s405
      %p412 = scmp.eq.s32.totalorder %s33, 1
      %p413 = por %p411, %p412
      %p414 = scmp.ne.s32.totalorder %s405, %s406
      %p415 = scmp.eq.s32.totalorder %s33, 0
      %p416 = por %p414, %p415
      %p417 = scmp.ne.s32.totalorder %s405, %s406
      %p418 = scmp.eq.s32.totalorder %s34, 1
      %p419 = por %p417, %p418
      %p421 = scmp.ne.s32.totalorder %s406, %s420
      %p422 = scmp.eq.s32.totalorder %s34, 0
      %p423 = por %p421, %p422
      %s424 = ssub.s32 %s28, %s35
      %p425 = scmp.eq.s32.totalorder %s424, 0
      %s427 = sadd.s32 %s426, 1
      %s428 = scalar_select %p425, %s426, %s427
      %p431 = pneg %p425
      %p432 = scmp.eq.s32.totalorder %s28, 1
      %p433 = por %p431, %p432
      %p434 = scmp.ne.s32.totalorder %s426, %s429
      %p435 = scmp.eq.s32.totalorder %s28, 0
      %p436 = por %p434, %p435
      %p437 = scmp.ne.s32.totalorder %s426, %s429
      %p438 = scmp.eq.s32.totalorder %s33, 1
      %p439 = por %p437, %p438
      %p440 = scmp.ne.s32.totalorder %s429, %s430
      %p441 = scmp.eq.s32.totalorder %s33, 0
      %p442 = por %p440, %p441
      %p443 = scmp.ne.s32.totalorder %s429, %s430
      %p444 = scmp.eq.s32.totalorder %s34, 1
      %p445 = por %p443, %p444
      %p447 = scmp.ne.s32.totalorder %s430, %s446
      %p448 = scmp.eq.s32.totalorder %s34, 0
      %p449 = por %p447, %p448
      %p450 = scmp.le.s32.totalorder 1, %s28
      %p451 = scmp.lt.s32.totalorder %s28, 3
      %p452 = pnand %p450, %p451
      %p453 = pneg %p452
      // Predicated region
      $region9: #{electra_qa_forward.1} parent=5 // pred_check
        _
      $region10: #{electra_qa_forward.1} parent=5 // pred_check_branch
        %455 = sbr.rel (%p452) target = $region12
      $region11: #{electra_qa_forward.1} parent=5 // pred_region
        %s456 = ssub.s32 %s28, 1
        // Predicated region
        $region13: #{electra_qa_forward.1} parent=11 // pred_check
          %p457 = pneg %p101
        $region14: #{electra_qa_forward.1} parent=11 // pred_check_branch
          %459 = sbr.rel (%p457) target = $region16
        $region15: #{electra_qa_forward.1} parent=11 // pred_region
          _
        $region16: #{electra_qa_forward.1} parent=11 // pred_fallthru
          _
        // Predicated region
        $region17: #{electra_qa_forward.1} parent=11 // pred_check
          %p460 = pneg %p122
        $region18: #{electra_qa_forward.1} parent=11 // pred_check_branch
          %462 = sbr.rel (%p460) target = $region20
        $region19: #{electra_qa_forward.1} parent=11 // pred_region
          _
        $region20: #{electra_qa_forward.1} parent=11 // pred_fallthru
          _
        // Predicated region
        $region21: #{electra_qa_forward.1} parent=11 // pred_check
          %p463 = pneg %p143
        $region22: #{electra_qa_forward.1} parent=11 // pred_check_branch
          %465 = sbr.rel (%p463) target = $region24
        $region23: #{electra_qa_forward.1} parent=11 // pred_region
          %s467 = ssub.s32 6144, 6144
          %468 = vsyncadd [#allocation3], %s467
          %s469 = sshll.u32 [#allocation2], 4
          %s470 = int_to_ptr.vmem [resolvable:$true] %s469
          %475 = dma.hbm_to_vmem [thread:$0]  %s4, 6144, %s470, [#allocation3], 192, 192, 12
        $region24: #{electra_qa_forward.1} parent=11 // pred_fallthru
          _
        // Predicated region
        $region25: #{electra_qa_forward.1} parent=11 // pred_check
          %p476 = pneg %p164
        $region26: #{electra_qa_forward.1} parent=11 // pred_check_branch
          %478 = sbr.rel (%p476) target = $region28
        $region27: #{electra_qa_forward.1} parent=11 // pred_region
          _
        $region28: #{electra_qa_forward.1} parent=11 // pred_fallthru
          _
        // Predicated region
        $region29: #{electra_qa_forward.1} parent=11 // pred_check
          %p479 = pneg %p185
        $region30: #{electra_qa_forward.1} parent=11 // pred_check_branch
          %481 = sbr.rel (%p479) target = $region32
        $region31: #{electra_qa_forward.1} parent=11 // pred_region
          %s483 = ssub.s32 2048, 2048
          %484 = vsyncadd [#allocation5], %s483
          %s485 = sshll.u32 [#allocation4], 4
          %s486 = int_to_ptr.vmem [resolvable:$true] %s485
          %491 = dma.hbm_to_vmem [thread:$0]  %s6, 2048, %s486, [#allocation5], 64, 64, 4
        $region32: #{electra_qa_forward.1} parent=11 // pred_fallthru
          _
        // Predicated region
        $region33: #{electra_qa_forward.1} parent=11 // pred_check
          %p492 = pneg %p206
        $region34: #{electra_qa_forward.1} parent=11 // pred_check_branch
          %494 = sbr.rel (%p492) target = $region36
        $region35: #{electra_qa_forward.1} parent=11 // pred_region
          _
        $region36: #{electra_qa_forward.1} parent=11 // pred_fallthru
          _
        // Predicated region
        $region37: #{electra_qa_forward.1} parent=11 // pred_check
          %p495 = pneg %p227
        $region38: #{electra_qa_forward.1} parent=11 // pred_check_branch
          %497 = sbr.rel (%p495) target = $region40
        $region39: #{electra_qa_forward.1} parent=11 // pred_region
          _
        $region40: #{electra_qa_forward.1} parent=11 // pred_fallthru
          _
        // Predicated region
        $region41: #{electra_qa_forward.1} parent=11 // pred_check
          %p498 = pneg %p248
        $region42: #{electra_qa_forward.1} parent=11 // pred_check_branch
          %500 = sbr.rel (%p498) target = $region44
        $region43: #{electra_qa_forward.1} parent=11 // pred_region
          _
        $region44: #{electra_qa_forward.1} parent=11 // pred_fallthru
          _
        // Predicated region
        $region45: #{electra_qa_forward.1} parent=11 // pred_check
          %p501 = pneg %p269
        $region46: #{electra_qa_forward.1} parent=11 // pred_check_branch
          %503 = sbr.rel (%p501) target = $region48
        $region47: #{electra_qa_forward.1} parent=11 // pred_region
          _
        $region48: #{electra_qa_forward.1} parent=11 // pred_fallthru
          _
        // Predicated region
        $region49: #{electra_qa_forward.1} parent=11 // pred_check
          %p504 = pneg %p290
        $region50: #{electra_qa_forward.1} parent=11 // pred_check_branch
          %506 = sbr.rel (%p504) target = $region52
        $region51: #{electra_qa_forward.1} parent=11 // pred_region
          _
        $region52: #{electra_qa_forward.1} parent=11 // pred_fallthru
          _
        // Predicated region
        $region53: #{electra_qa_forward.1} parent=11 // pred_check
          %p507 = pneg %p311
        $region54: #{electra_qa_forward.1} parent=11 // pred_check_branch
          %509 = sbr.rel (%p507) target = $region56
        $region55: #{electra_qa_forward.1} parent=11 // pred_region
          %s511 = ssub.s32 8192, 8192
          %512 = vsyncadd [#allocation5], %s511
          %s513 = sshll.u32 [#allocation6], 4
          %s514 = int_to_ptr.vmem [resolvable:$true] %s513
          %519 = dma.hbm_to_vmem [thread:$0]  %s12, 8192, %s514, [#allocation5], 64, 64, 4
        $region56: #{electra_qa_forward.1} parent=11 // pred_fallthru
          _
        // Predicated region
        $region57: #{electra_qa_forward.1} parent=11 // pred_check
          %p520 = pneg %p332
        $region58: #{electra_qa_forward.1} parent=11 // pred_check_branch
          %522 = sbr.rel (%p520) target = $region60
        $region59: #{electra_qa_forward.1} parent=11 // pred_region
          _
        $region60: #{electra_qa_forward.1} parent=11 // pred_fallthru
          _
        // Predicated region
        $region61: #{electra_qa_forward.1} parent=11 // pred_check
          %p523 = pneg %p353
        $region62: #{electra_qa_forward.1} parent=11 // pred_check_branch
          %525 = sbr.rel (%p523) target = $region64
        $region63: #{electra_qa_forward.1} parent=11 // pred_region
          %s527 = ssub.s32 32, 32
          %528 = vsyncadd [#allocation8], %s527
          %s529 = sshll.u32 [#allocation7], 4
          %s530 = int_to_ptr.vmem [resolvable:$true] %s529
          %535 = dma.hbm_to_vmem [thread:$0]  %s14, 32, %s530, [#allocation8], 16, 16, 1
        $region64: #{electra_qa_forward.1} parent=11 // pred_fallthru
          _
        // Predicated region
        $region65: #{electra_qa_forward.1} parent=11 // pred_check
          %p536 = pneg %p374
        $region66: #{electra_qa_forward.1} parent=11 // pred_check_branch
          %538 = sbr.rel (%p536) target = $region68
        $region67: #{electra_qa_forward.1} parent=11 // pred_region
          %s540 = ssub.s32 32, 32
          %541 = vsyncadd [#allocation8], %s540
          %s542 = sshll.u32 [#allocation9], 4
          %s543 = int_to_ptr.vmem [resolvable:$true] %s542
          %548 = dma.hbm_to_vmem [thread:$0]  %s15, 32, %s543, [#allocation8], 16, 16, 1
        $region68: #{electra_qa_forward.1} parent=11 // pred_fallthru
          _
        // Predicated region
        $region69: #{electra_qa_forward.1} parent=11 // pred_check
          %p549 = pneg %p395
        $region70: #{electra_qa_forward.1} parent=11 // pred_check_branch
          %551 = sbr.rel (%p549) target = $region72
        $region71: #{electra_qa_forward.1} parent=11 // pred_region
          _
        $region72: #{electra_qa_forward.1} parent=11 // pred_fallthru
          _
        // Predicated region
        $region73: #{electra_qa_forward.1} parent=11 // pred_check
          %p552 = pneg %p416
        $region74: #{electra_qa_forward.1} parent=11 // pred_check_branch
          %554 = sbr.rel (%p552) target = $region76
        $region75: #{electra_qa_forward.1} parent=11 // pred_region
          %s556 = ssub.s32 16, 16
          %557 = vsyncadd [#allocation11], %s556
          %s559 = sshll.u32 [#allocation10], 4
          %s560 = int_to_ptr.vmem [resolvable:$true] %s559
          %562 = dma.hbm_to_vmem [thread:$0]  %s17, 16, %s560, [#allocation11]
        $region76: #{electra_qa_forward.1} parent=11 // pred_fallthru
          _
      $region12: #{electra_qa_forward.1} parent=5 // pred_fallthru
        _
      %p563 = scmp.lt.s32.totalorder %s28, 2
      // Predicated region
      $region77: #{electra_qa_forward.1} parent=5 // pred_check
        %p564 = pneg %p563
      $region78: #{electra_qa_forward.1} parent=5 // pred_check_branch
        %566 = sbr.rel (%p564) target = $region80
      $region79: #{electra_qa_forward.1} parent=5 // pred_region
        // Predicated region
        $region81: #{electra_qa_forward.1} parent=79 // pred_check
          %p567 = pneg %p48
        $region82: #{electra_qa_forward.1} parent=79 // pred_check_branch
          %569 = sbr.rel (%p567) target = $region84
        $region83: #{electra_qa_forward.1} parent=79 // pred_region
          %s570 = smul.u32 2, %s28
          %p571 = scmp.lt.s32.totalorder %s570, 3
          %s572 = scalar_select %p571, %s570, 3
          %s573 = smul.addr %s572, 8
          %s574 = scalar_lea.vmem %s0, %s573
          %s575 = smul.u32 2, %s28
        $region84: #{electra_qa_forward.1} parent=79 // pred_fallthru
          _
        // Predicated region
        $region85: #{electra_qa_forward.1} parent=79 // pred_check
          %p576 = pneg %p74
        $region86: #{electra_qa_forward.1} parent=79 // pred_check_branch
          %578 = sbr.rel (%p576) target = $region88
        $region87: #{electra_qa_forward.1} parent=79 // pred_region
          %p579 = scmp.lt.s32.totalorder %s28, 1
          %s580 = scalar_select %p579, %s28, 1
          %s581 = scalar_lea.vmem %s1, %s580
        $region88: #{electra_qa_forward.1} parent=79 // pred_fallthru
          _
      $region80: #{electra_qa_forward.1} parent=5 // pred_fallthru
        _
      %p582 = scmp.le.s32.totalorder 1, %s28
      %p583 = scmp.lt.s32.totalorder %s28, 3
      %p584 = pnand %p582, %p583
      %p585 = pneg %p584
      // Predicated region
      $region89: #{electra_qa_forward.1} parent=5 // pred_check
        _
      $region90: #{electra_qa_forward.1} parent=5 // pred_check_branch
        %587 = sbr.rel (%p584) target = $region92
      $region91: #{electra_qa_forward.1} parent=5 // pred_region
        %s588 = ssub.s32 %s28, 1
        // Predicated region
        $region93: #{electra_qa_forward.1} parent=91 // pred_check
          %p589 = pneg %p143
        $region94: #{electra_qa_forward.1} parent=91 // pred_check_branch
          %591 = sbr.rel (%p589) target = $region96
        $region95: #{electra_qa_forward.1} parent=91 // pred_region
          %592 = dma.done [#allocation3], 6144
        $region96: #{electra_qa_forward.1} parent=91 // pred_fallthru
          _
        // Predicated region
        $region97: #{electra_qa_forward.1} parent=91 // pred_check
          %p593 = pneg %p185
        $region98: #{electra_qa_forward.1} parent=91 // pred_check_branch
          %595 = sbr.rel (%p593) target = $region100
        $region99: #{electra_qa_forward.1} parent=91 // pred_region
          %596 = dma.done [#allocation5], 2048
        $region100: #{electra_qa_forward.1} parent=91 // pred_fallthru
          _
        // Predicated region
        $region101: #{electra_qa_forward.1} parent=91 // pred_check
          %p597 = pneg %p311
        $region102: #{electra_qa_forward.1} parent=91 // pred_check_branch
          %599 = sbr.rel (%p597) target = $region104
        $region103: #{electra_qa_forward.1} parent=91 // pred_region
          %600 = dma.done [#allocation5], 8192
        $region104: #{electra_qa_forward.1} parent=91 // pred_fallthru
          _
        // Predicated region
        $region105: #{electra_qa_forward.1} parent=91 // pred_check
          %p601 = pneg %p353
        $region106: #{electra_qa_forward.1} parent=91 // pred_check_branch
          %603 = sbr.rel (%p601) target = $region108
        $region107: #{electra_qa_forward.1} parent=91 // pred_region
          %604 = dma.done [#allocation8], 32
        $region108: #{electra_qa_forward.1} parent=91 // pred_fallthru
          _
        // Predicated region
        $region109: #{electra_qa_forward.1} parent=91 // pred_check
          %p605 = pneg %p374
        $region110: #{electra_qa_forward.1} parent=91 // pred_check_branch
          %607 = sbr.rel (%p605) target = $region112
        $region111: #{electra_qa_forward.1} parent=91 // pred_region
          %608 = dma.done [#allocation8], 32
        $region112: #{electra_qa_forward.1} parent=91 // pred_fallthru
          _
        // Predicated region
        $region113: #{electra_qa_forward.1} parent=91 // pred_check
          %p609 = pneg %p416
        $region114: #{electra_qa_forward.1} parent=91 // pred_check_branch
          %611 = sbr.rel (%p609) target = $region116
        $region115: #{electra_qa_forward.1} parent=91 // pred_region
          %612 = dma.done [#allocation11], 16
        $region116: #{electra_qa_forward.1} parent=91 // pred_fallthru
          _
        %s613 = smul.u32 2, %s33
        %p614 = scmp.lt.s32.totalorder %s613, 3
        %s615 = scalar_select %p614, %s613, 3
        %s616 = smul.addr %s615, 8
        %s617 = scalar_lea.vmem %s0, %s616
        %p618 = pneg %p54
        %p619 = pneg %p51
        %p620 = scmp.lt.s32.totalorder %s33, 1
        %s621 = scalar_select %p620, %s33, 1
        %s622 = scalar_lea.vmem %s1, %s621
        %p623 = pneg %p80
        %p624 = pneg %p77
        %p625 = pneg %p101
        %p626 = pneg %p98
        %p627 = pneg %p122
        %p628 = pneg %p119
        %p629 = pneg %p143
        %p630 = pneg %p140
        %p631 = pneg %p164
        %p632 = pneg %p161
        %p633 = pneg %p185
        %p634 = pneg %p182
        %p635 = pneg %p206
        %p636 = pneg %p203
        %p637 = pneg %p227
        %p638 = pneg %p224
        %p639 = pneg %p248
        %p640 = pneg %p245
        %p641 = pneg %p269
        %p642 = pneg %p266
        %p643 = pneg %p290
        %p644 = pneg %p287
        %p645 = pneg %p311
        %p646 = pneg %p308
        %p647 = pneg %p332
        %p648 = pneg %p329
        %p649 = pneg %p353
        %p650 = pneg %p350
        %p651 = pneg %p374
        %p652 = pneg %p371
        %p653 = pneg %p395
        %p654 = pneg %p392
        %p655 = pneg %p416
        %p656 = pneg %p413
        %p657 = pneg %p442
        %p658 = pneg %p439
        %s659 = smul.u32 2, %s33
        %p660 = scmp.lt.s32.totalorder %s659, 3
        %s661 = scalar_select %p660, %s659, 3
        %s662 = smul.addr %s661, 8
        %s663 = scalar_lea.vmem %s18, %s662
        %s664 = smul.u32 2, %s33
        %p665 = scmp.lt.s32.totalorder %s664, 3
        %s666 = scalar_select %p665, %s664, 3
        %s667 = smul.addr %s666, 8
        %s668 = scalar_lea.vmem %s0, %s667
        %s669 = smul.u32 2, %s33
        %p670 = scmp.lt.s32.totalorder %s33, 1
        %s671 = scalar_select %p670, %s33, 1
        %s672 = scalar_lea.vmem %s1, %s671
        %s673 = smul.u32 2, %s33
        %p674 = scmp.lt.s32.totalorder %s673, 3
        %s675 = scalar_select %p674, %s673, 3
        %s676 = smul.addr %s675, 8
        %s677 = scalar_lea.vmem %s18, %s676
        %s678 = smul.u32 2, %s33
        %v680 = vld [vmem:[%s668] sm:$0xff]
        %v681 = vld [vmem:[%s668 + $0x8] sm:$0xff]
        %v682 = vld [vmem:[%s2] sm:$0x1]
        %v683 = vld [vmem:[%s3] sm:$0x1]
        %684 = vadd.xlane.f32.xlu0 %v680
        %v685 = vpop.xlane.xlu0 %684
        %686 = vadd.xlane.f32.xlu0 %v681
        %v687 = vpop.xlane.xlu0 %686
        %v688 = vrcp.pop 128.0
        %v689 = vmul.f32 %v685, %v688
        %v690 = vmul.f32 %v687, %v688
        %v691 = vmul.f32 %v680, %v680
        %v692 = vmul.f32 %v681, %v681
        %693 = vadd.xlane.f32.xlu0 %v691
        %v694 = vpop.xlane.xlu0 %693
        %695 = vadd.xlane.f32.xlu0 %v692
        %v696 = vpop.xlane.xlu0 %695
        %v697 = vmul.f32 %v694, %v688
        %v698 = vmul.f32 %v696, %v688
        %v699 = vmul.f32 %v689, %v689
        %v700 = vmul.f32 %v690, %v690
        %v701 = vsub.f32 %v697, %v699
        %v702 = vsub.f32 %v698, %v700
        %v703 = vsub.f32 %v680, %v689
        %v704 = vsub.f32 %v681, %v690
        %v705 = vadd.f32 %v701, 1e-12
        %v706 = vadd.f32 %v702, 1e-12
        %v707 = vrsqrt.pop %v705
        %v708 = vrsqrt.pop %v706
        %v709 = vmul.f32 %v703, %v707
        %v710 = vmul.f32 %v704, %v708
        %v712 = vlaneseq
        %v713 = vshrl.u32 %v712, 7
        %v714 = vsub.s32 0, %v713
        %v715 = vrot.slane %v682, %v714
        %v717 = vmul.f32 %v709, %v715
        %v718 = vmul.f32 %v710, %v715
        %v720 = vlaneseq
        %v721 = vshrl.u32 %v720, 7
        %v722 = vsub.s32 0, %v721
        %v723 = vrot.slane %v683, %v722
        %v725 = vadd.f32 %v717, %v723
        %v726 = vadd.f32 %v718, %v723
        %v727 = vld [vmem:[%s672] sm:$0x1]
        %v728 = vpack.c.bf16 %v726, %v725
        %v729 = vld [vmem:[#allocation2] sm:$0xff]
        %v730 = vld [vmem:[#allocation2 + $0x8] sm:$0xf]
        %v731 = vld [vmem:[#allocation2 + $0xc] sm:$0xff]
        %v732 = vld [vmem:[#allocation2 + $0x14] sm:$0xf]
        %v733 = vld [vmem:[#allocation2 + $0x18] sm:$0xff]
        %v734 = vld [vmem:[#allocation2 + $0x20] sm:$0xf]
        %v735 = vld [vmem:[#allocation2 + $0x24] sm:$0xff]
        %v736 = vld [vmem:[#allocation2 + $0x2c] sm:$0xf]
        %v737 = vld [vmem:[#allocation2 + $0x30] sm:$0xff]
        %v738 = vld [vmem:[#allocation2 + $0x38] sm:$0xf]
        %v739 = vld [vmem:[#allocation2 + $0x3c] sm:$0xff]
        %v740 = vld [vmem:[#allocation2 + $0x44] sm:$0xf]
        %v741 = vld [vmem:[#allocation2 + $0x48] sm:$0xff]
        %v742 = vld [vmem:[#allocation2 + $0x50] sm:$0xf]
        %v743 = vld [vmem:[#allocation2 + $0x54] sm:$0xff]
        %v744 = vld [vmem:[#allocation2 + $0x5c] sm:$0xf]
        %v745 = vld [vmem:[#allocation2 + $0x60] sm:$0xff]
        %v746 = vld [vmem:[#allocation2 + $0x68] sm:$0xf]
        %v747 = vld [vmem:[#allocation2 + $0x6c] sm:$0xff]
        %v748 = vld [vmem:[#allocation2 + $0x74] sm:$0xf]
        %v749 = vld [vmem:[#allocation2 + $0x78] sm:$0xff]
        %v750 = vld [vmem:[#allocation2 + $0x80] sm:$0xf]
        %v751 = vld [vmem:[#allocation2 + $0x84] sm:$0xff]
        %v752 = vld [vmem:[#allocation2 + $0x8c] sm:$0xf]
        %v753 = vld [vmem:[#allocation2 + $0x90] sm:$0xff]
        %v754 = vld [vmem:[#allocation2 + $0x98] sm:$0xf]
        %v755 = vld [vmem:[#allocation2 + $0x9c] sm:$0xff]
        %v756 = vld [vmem:[#allocation2 + $0xa4] sm:$0xf]
        %v757 = vld [vmem:[#allocation2 + $0xa8] sm:$0xff]
        %v758 = vld [vmem:[#allocation2 + $0xb0] sm:$0xf]
        %v759 = vld [vmem:[#allocation2 + $0xb4] sm:$0xff]
        %v760 = vld [vmem:[#allocation2 + $0xbc] sm:$0xf]
        %v761 = vld [vmem:[%s5] sm:$0x7]
        %v763 = vlaneseq
        %v764 = vshrl.u32 %v763, 7
        %v765 = vsub.s32 0, %v764
        %v766 = vrot.slane %v761, %v765
        %v767 = vlaneseq
        %v768 = vshrl.u32 %v767, 7
        %v769 = vsub.s32 1, %v768
        %v770 = vrot.slane %v761, %v769
        %v771 = vlaneseq
        %v772 = vshrl.u32 %v771, 7
        %v773 = vsub.s32 2, %v772
        %v774 = vrot.slane %v761, %v773
        %v810 = vunpack.c.l.b16 %v729
        %v811 = vunpack.c.h.b16 %v729
        %v812 = vunpack.c.l.b16 %v730
        %v813 = vunpack.c.l.b16 %v731
        %v814 = vunpack.c.h.b16 %v731
        %v815 = vunpack.c.l.b16 %v732
        %v816 = vunpack.c.l.b16 %v733
        %v817 = vunpack.c.h.b16 %v733
        %v818 = vunpack.c.l.b16 %v734
        %v819 = vunpack.c.l.b16 %v735
        %v820 = vunpack.c.h.b16 %v735
        %v821 = vunpack.c.l.b16 %v736
        %v822 = vunpack.c.l.b16 %v737
        %v823 = vunpack.c.h.b16 %v737
        %v824 = vunpack.c.l.b16 %v738
        %v825 = vunpack.c.l.b16 %v739
        %v826 = vunpack.c.h.b16 %v739
        %v827 = vunpack.c.l.b16 %v740
        %v828 = vunpack.c.l.b16 %v741
        %v829 = vunpack.c.h.b16 %v741
        %v830 = vunpack.c.l.b16 %v742
        %v831 = vunpack.c.l.b16 %v743
        %v832 = vunpack.c.h.b16 %v743
        %v833 = vunpack.c.l.b16 %v744
        %v834 = vunpack.c.l.b16 %v745
        %v835 = vunpack.c.h.b16 %v745
        %v836 = vunpack.c.l.b16 %v746
        %v837 = vunpack.c.l.b16 %v747
        %v838 = vunpack.c.h.b16 %v747
        %v839 = vunpack.c.l.b16 %v748
        %v840 = vunpack.c.l.b16 %v749
        %v841 = vunpack.c.h.b16 %v749
        %v842 = vunpack.c.l.b16 %v750
        %v843 = vunpack.c.l.b16 %v751
        %v844 = vunpack.c.h.b16 %v751
        %v845 = vunpack.c.l.b16 %v752
        %v846 = vunpack.c.l.b16 %v753
        %v847 = vunpack.c.h.b16 %v753
        %v848 = vunpack.c.l.b16 %v754
        %v849 = vunpack.c.l.b16 %v755
        %v850 = vunpack.c.h.b16 %v755
        %v851 = vunpack.c.l.b16 %v756
        %v852 = vunpack.c.l.b16 %v757
        %v853 = vunpack.c.h.b16 %v757
        %v854 = vunpack.c.l.b16 %v758
        %v855 = vunpack.c.l.b16 %v759
        %v856 = vunpack.c.h.b16 %v759
        %v857 = vunpack.c.l.b16 %v760
        %v858 = vpack.c.b16 %v813, %v810
        %v859 = vpack.c.b16 %v814, %v811
        %v860 = vpack.c.b16 %v815, %v812
        %v861 = vpack.c.b16 %v819, %v816
        %v862 = vpack.c.b16 %v820, %v817
        %v863 = vpack.c.b16 %v821, %v818
        %v864 = vpack.c.b16 %v825, %v822
        %v865 = vpack.c.b16 %v826, %v823
        %v866 = vpack.c.b16 %v827, %v824
        %v867 = vpack.c.b16 %v831, %v828
        %v868 = vpack.c.b16 %v832, %v829
        %v869 = vpack.c.b16 %v833, %v830
        %v870 = vpack.c.b16 %v837, %v834
        %v871 = vpack.c.b16 %v838, %v835
        %v872 = vpack.c.b16 %v839, %v836
        %v873 = vpack.c.b16 %v843, %v840
        %v874 = vpack.c.b16 %v844, %v841
        %v875 = vpack.c.b16 %v845, %v842
        %v876 = vpack.c.b16 %v849, %v846
        %v877 = vpack.c.b16 %v850, %v847
        %v878 = vpack.c.b16 %v851, %v848
        %v879 = vpack.c.b16 %v855, %v852
        %v880 = vpack.c.b16 %v856, %v853
        %v881 = vpack.c.b16 %v857, %v854
        %906 = vmatprep.subr.bf16.mxu0 %v859
        %907 = vmatpush1.bf16.msra.mxu0 %v858
        %908 = vmatprep.subr.bf16.mxu0 %v862
        %909 = vmatpush1.bf16.msra.mxu0 %v861
        %910 = vmatprep.subr.bf16.mxu0 %v865
        %911 = vmatpush1.bf16.msra.mxu0 %v864
        %912 = vmatprep.subr.bf16.mxu0 %v868
        %913 = vmatpush1.bf16.msra.mxu0 %v867
        %914 = vmatprep.subr.bf16.mxu0 %v871
        %915 = vmatpush1.bf16.msra.mxu0 %v870
        %916 = vmatprep.subr.bf16.mxu0 %v874
        %917 = vmatpush1.bf16.msra.mxu0 %v873
        %918 = vmatprep.subr.bf16.mxu0 %v877
        %919 = vmatpush1.bf16.msra.mxu0 %v876
        %920 = vmatprep.subr.bf16.mxu0 %v880
        %921 = vmatpush1.bf16.msra.mxu0 %v879
        %922 = vmatprep.subr.bf16.mxu0 0
        %923 = vmatpush1.bf16.msra.mxu0 0
        %924 = vmatprep.subr.bf16.mxu0 0
        %925 = vmatpush1.bf16.msra.mxu0 0
        %926 = vmatprep.subr.bf16.mxu0 0
        %927 = vmatpush1.bf16.msra.mxu0 0
        %928 = vmatprep.subr.bf16.mxu0 0
        %929 = vmatpush1.bf16.msra.mxu0 0
        %930 = vmatprep.subr.bf16.mxu0 0
        %931 = vmatpush1.bf16.msra.mxu0 0
        %932 = vmatprep.subr.bf16.mxu0 0
        %933 = vmatpush1.bf16.msra.mxu0 0
        %934 = vmatprep.subr.bf16.mxu0 0
        %935 = vmatpush1.bf16.msra.mxu0 0
        %936 = vmatprep.subr.bf16.mxu0 0
        %937 = vmatpush1.bf16.msra.mxu0 0
        %938 = vmatprep.mubr.bf16.mxu0 0
        %939 = vmatmul.mubr.bf16.gmra.mrb[0].mxu0 %v728
        %v940 = vpop.f32.mrb[0].mxu0
        %v941 = vadd.f32 %v766, %v940
        %v942 = vpop.f32.mrb[0].mxu0
        %v943 = vadd.f32 %v770, %v942
        %v944 = vpop.f32.mrb[0].mxu0
        %v945 = vadd.f32 %v766, %v944
        %v946 = vpop.f32.mrb[0].mxu0
        %v947 = vadd.f32 %v770, %v946
        %948 = vdwg.mxu0
        %949 = vmatprep.subr.bf16.mxu0 0
        %950 = vmatpush1.bf16.msra.mxu0 %v860
        %951 = vmatprep.subr.bf16.mxu0 0
        %952 = vmatpush1.bf16.msra.mxu0 %v863
        %953 = vmatprep.subr.bf16.mxu0 0
        %954 = vmatpush1.bf16.msra.mxu0 %v866
        %955 = vmatprep.subr.bf16.mxu0 0
        %956 = vmatpush1.bf16.msra.mxu0 %v869
        %957 = vmatprep.subr.bf16.mxu0 0
        %958 = vmatpush1.bf16.msra.mxu0 %v872
        %959 = vmatprep.subr.bf16.mxu0 0
        %960 = vmatpush1.bf16.msra.mxu0 %v875
        %961 = vmatprep.subr.bf16.mxu0 0
        %962 = vmatpush1.bf16.msra.mxu0 %v878
        %963 = vmatprep.subr.bf16.mxu0 0
        %964 = vmatpush1.bf16.msra.mxu0 %v881
        %965 = vmatprep.subr.bf16.mxu0 0
        %966 = vmatpush1.bf16.msra.mxu0 0
        %967 = vmatprep.subr.bf16.mxu0 0
        %968 = vmatpush1.bf16.msra.mxu0 0
        %969 = vmatprep.subr.bf16.mxu0 0
        %970 = vmatpush1.bf16.msra.mxu0 0
        %971 = vmatprep.subr.bf16.mxu0 0
        %972 = vmatpush1.bf16.msra.mxu0 0
        %973 = vmatprep.subr.bf16.mxu0 0
        %974 = vmatpush1.bf16.msra.mxu0 0
        %975 = vmatprep.subr.bf16.mxu0 0
        %976 = vmatpush1.bf16.msra.mxu0 0
        %977 = vmatprep.subr.bf16.mxu0 0
        %978 = vmatpush1.bf16.msra.mxu0 0
        %979 = vmatprep.subr.bf16.mxu0 0
        %980 = vmatpush1.bf16.msra.mxu0 0
        %981 = vmatprep.mubr.bf16.mxu0 0
        %982 = vmatmul.mubr.bf16.gmra.mrb[0].mxu0 %v728
        %v983 = vpop.f32.mrb[0].mxu0
        %v984 = vadd.f32 %v774, %v983
        %v985 = vpop.f32.mrb[0].mxu0
        %v986 = vpop.f32.mrb[0].mxu0
        %v987 = vadd.f32 %v774, %v986
        %v988 = vpop.f32.mrb[0].mxu0
        %989 = vdwg.mxu0
        %v990 = vld [vmem:[%s7] sm:$0x1]
        %v991 = vpack.c.bf16 %v945, %v941
        %v992 = vpack.c.bf16 %v947, %v943
        %v993 = vpack.c.bf16 %v987, %v984
        %vm994 = vcmask 523264
        %v996 = vsel %vm994, %v991, 0
        %v999 = vsel %vm994, %v992, 0
        %1001 = vmatprep.subr.bf16.mxu0 0
        %1002 = vmatpush1.bf16.xpose.msra.mxu0 %v999
        %1003 = vmatprep.subr.bf16.mxu0 0
        %1004 = vmatpush1.bf16.xpose.msra.mxu0 0
        %1005 = vmatprep.subr.bf16.mxu0 0
        %1006 = vmatpush1.bf16.xpose.msra.mxu0 0
        %1007 = vmatprep.subr.bf16.mxu0 0
        %1008 = vmatpush1.bf16.xpose.msra.mxu0 0
        %1009 = vmatprep.subr.bf16.mxu0 0
        %1010 = vmatpush1.bf16.xpose.msra.mxu0 0
        %1011 = vmatprep.subr.bf16.mxu0 0
        %1012 = vmatpush1.bf16.xpose.msra.mxu0 0
        %1013 = vmatprep.subr.bf16.mxu0 0
        %1014 = vmatpush1.bf16.xpose.msra.mxu0 0
        %1015 = vmatprep.subr.bf16.mxu0 0
        %1016 = vmatpush1.bf16.xpose.msra.mxu0 0
        %1017 = vmatprep.subr.bf16.mxu0 0
        %1018 = vmatpush1.bf16.xpose.msra.mxu0 0
        %1019 = vmatprep.subr.bf16.mxu0 0
        %1020 = vmatpush1.bf16.xpose.msra.mxu0 0
        %1021 = vmatprep.subr.bf16.mxu0 0
        %1022 = vmatpush1.bf16.xpose.msra.mxu0 0
        %1023 = vmatprep.subr.bf16.mxu0 0
        %1024 = vmatpush1.bf16.xpose.msra.mxu0 0
        %1025 = vmatprep.subr.bf16.mxu0 0
        %1026 = vmatpush1.bf16.xpose.msra.mxu0 0
        %1027 = vmatprep.subr.bf16.mxu0 0
        %1028 = vmatpush1.bf16.xpose.msra.mxu0 0
        %1029 = vmatprep.subr.bf16.mxu0 0
        %1030 = vmatpush1.bf16.xpose.msra.mxu0 0
        %1031 = vmatprep.subr.bf16.mxu0 0
        %1032 = vmatpush1.bf16.xpose.msra.mxu0 0
        %1033 = vmatprep.mubr.bf16.mxu0 0
        %1034 = vmatmul.mubr.bf16.gmra.mrb[0].mxu0 %v996
        %v1035 = vpop.f32.mrb[0].mxu0
        %v1036 = vadd.f32 0.0, %v1035
        %v1037 = vpop.f32.mrb[0].mxu0
        %v1038 = vpop.f32.mrb[0].mxu0
        %v1039 = vadd.f32 0.0, %v1038
        %v1040 = vpop.f32.mrb[0].mxu0
        %1041 = vdwg.mxu0
        %v1042 = vmul.f32 %v1036, 0.125
        %v1043 = vmul.f32 %v1039, 0.125
        %v1045 = vlaneseq
        %v1046 = vshrl.u32 %v1045, 7
        %v1047 = vsub.s32 0, %v1046
        %v1048 = vrot.slane %v727, %v1047
        %v1050 = vadd.f32 %v1042, %v1048
        %v1051 = vadd.f32 %v1043, %v1048
        %vm1052 = vcmask 130048
        %v1053 = vsel %vm1052, %v1050, -inf
        %1054 = vmax.xlane.f32.xlu0 %v1053
        %v1055 = vpop.xlane.xlu0 %1054
        %v1056 = vsel %vm1052, %v1051, -inf
        %1057 = vmax.xlane.f32.xlu0 %v1056
        %v1058 = vpop.xlane.xlu0 %1057
        %v1059 = vsub.f32 %v1050, %v1055
        %v1060 = vsub.f32 %v1051, %v1058
        %v1061 = vmul.f32 %v1059, 1.442695
        %v1062 = vpow.pop %v1061
        %v1063 = vmul.f32 %v1060, 1.442695
        %v1064 = vpow.pop %v1063
        %v1065 = vsel %vm1052, %v1062, 0.0
        %1066 = vadd.xlane.f32.xlu0 %v1065
        %v1067 = vpop.xlane.xlu0 %1066
        %v1068 = vsel %vm1052, %v1064, 0.0
        %1069 = vadd.xlane.f32.xlu0 %v1068
        %v1070 = vpop.xlane.xlu0 %1069
        %v1071 = vrcp.pop %v1067
        %v1072 = vmul.f32 %v1062, %v1071
        %v1073 = vrcp.pop %v1070
        %v1074 = vmul.f32 %v1064, %v1073
        %v1075 = vpack.c.bf16 %v1074, %v1072
        %v1077 = vsel %vm1052, %v1075, 0
        %1079 = vmatprep.subr.bf16.mxu0 0
        %1080 = vmatpush1.bf16.msra.mxu0 %v993
        %1081 = vmatprep.subr.bf16.mxu0 0
        %1082 = vmatpush1.bf16.msra.mxu0 0
        %1083 = vmatprep.subr.bf16.mxu0 0
        %1084 = vmatpush1.bf16.msra.mxu0 0
        %1085 = vmatprep.subr.bf16.mxu0 0
        %1086 = vmatpush1.bf16.msra.mxu0 0
        %1087 = vmatprep.subr.bf16.mxu0 0
        %1088 = vmatpush1.bf16.msra.mxu0 0
        %1089 = vmatprep.subr.bf16.mxu0 0
        %1090 = vmatpush1.bf16.msra.mxu0 0
        %1091 = vmatprep.subr.bf16.mxu0 0
        %1092 = vmatpush1.bf16.msra.mxu0 0
        %1093 = vmatprep.subr.bf16.mxu0 0
        %1094 = vmatpush1.bf16.msra.mxu0 0
        %1095 = vmatprep.subr.bf16.mxu0 0
        %1096 = vmatpush1.bf16.msra.mxu0 0
        %1097 = vmatprep.subr.bf16.mxu0 0
        %1098 = vmatpush1.bf16.msra.mxu0 0
        %1099 = vmatprep.subr.bf16.mxu0 0
        %1100 = vmatpush1.bf16.msra.mxu0 0
        %1101 = vmatprep.subr.bf16.mxu0 0
        %1102 = vmatpush1.bf16.msra.mxu0 0
        %1103 = vmatprep.subr.bf16.mxu0 0
        %1104 = vmatpush1.bf16.msra.mxu0 0
        %1105 = vmatprep.subr.bf16.mxu0 0
        %1106 = vmatpush1.bf16.msra.mxu0 0
        %1107 = vmatprep.subr.bf16.mxu0 0
        %1108 = vmatpush1.bf16.msra.mxu0 0
        %1109 = vmatprep.subr.bf16.mxu0 0
        %1110 = vmatpush1.bf16.msra.mxu0 0
        %1111 = vmatprep.mubr.bf16.mxu0 0
        %1112 = vmatmul.mubr.bf16.gmra.mrb[0].mxu0 %v1077
        %v1113 = vpop.f32.mrb[0].mxu0
        %v1114 = vadd.f32 0.0, %v1113
        %v1115 = vpop.f32.mrb[0].mxu0
        %v1116 = vpop.f32.mrb[0].mxu0
        %v1117 = vadd.f32 0.0, %v1116
        %v1118 = vpop.f32.mrb[0].mxu0
        %1119 = vdwg.mxu0
        %v1120 = vpack.c.bf16 %v1117, %v1114
        %v1121 = vld [vmem:[#allocation4] sm:$0xf]
        %v1122 = vld [vmem:[#allocation4 + $0x4] sm:$0xf]
        %v1123 = vld [vmem:[#allocation4 + $0x8] sm:$0xf]
        %v1124 = vld [vmem:[#allocation4 + $0xc] sm:$0xf]
        %v1125 = vld [vmem:[#allocation4 + $0x10] sm:$0xf]
        %v1126 = vld [vmem:[#allocation4 + $0x14] sm:$0xf]
        %v1127 = vld [vmem:[#allocation4 + $0x18] sm:$0xf]
        %v1128 = vld [vmem:[#allocation4 + $0x1c] sm:$0xf]
        %v1137 = vunpack.c.l.b16 %v1121
        %v1138 = vunpack.c.l.b16 %v1122
        %v1139 = vunpack.c.l.b16 %v1123
        %v1140 = vunpack.c.l.b16 %v1124
        %v1141 = vunpack.c.l.b16 %v1125
        %v1142 = vunpack.c.l.b16 %v1126
        %v1143 = vunpack.c.l.b16 %v1127
        %v1144 = vunpack.c.l.b16 %v1128
        %v1145 = vpack.c.b16 %v1138, %v1137
        %v1146 = vpack.c.b16 %v1140, %v1139
        %v1147 = vpack.c.b16 %v1142, %v1141
        %v1148 = vpack.c.b16 %v1144, %v1143
        %v1154 = vsel %vm994, %v1120, 0
        %1156 = vmatprep.subr.bf16.mxu0 0
        %1157 = vmatpush1.bf16.msra.mxu0 %v1145
        %1158 = vmatprep.subr.bf16.mxu0 0
        %1159 = vmatpush1.bf16.msra.mxu0 %v1146
        %1160 = vmatprep.subr.bf16.mxu0 0
        %1161 = vmatpush1.bf16.msra.mxu0 %v1147
        %1162 = vmatprep.subr.bf16.mxu0 0
        %1163 = vmatpush1.bf16.msra.mxu0 %v1148
        %1164 = vmatprep.subr.bf16.mxu0 0
        %1165 = vmatpush1.bf16.msra.mxu0 0
        %1166 = vmatprep.subr.bf16.mxu0 0
        %1167 = vmatpush1.bf16.msra.mxu0 0
        %1168 = vmatprep.subr.bf16.mxu0 0
        %1169 = vmatpush1.bf16.msra.mxu0 0
        %1170 = vmatprep.subr.bf16.mxu0 0
        %1171 = vmatpush1.bf16.msra.mxu0 0
        %1172 = vmatprep.subr.bf16.mxu0 0
        %1173 = vmatpush1.bf16.msra.mxu0 0
        %1174 = vmatprep.subr.bf16.mxu0 0
        %1175 = vmatpush1.bf16.msra.mxu0 0
        %1176 = vmatprep.subr.bf16.mxu0 0
        %1177 = vmatpush1.bf16.msra.mxu0 0
        %1178 = vmatprep.subr.bf16.mxu0 0
        %1179 = vmatpush1.bf16.msra.mxu0 0
        %1180 = vmatprep.subr.bf16.mxu0 0
        %1181 = vmatpush1.bf16.msra.mxu0 0
        %1182 = vmatprep.subr.bf16.mxu0 0
        %1183 = vmatpush1.bf16.msra.mxu0 0
        %1184 = vmatprep.subr.bf16.mxu0 0
        %1185 = vmatpush1.bf16.msra.mxu0 0
        %1186 = vmatprep.subr.bf16.mxu0 0
        %1187 = vmatpush1.bf16.msra.mxu0 0
        %1188 = vmatprep.mubr.bf16.mxu0 0
        %1189 = vmatmul.mubr.bf16.gmra.mrb[0].mxu0 %v1154
        %v1190 = vpop.f32.mrb[0].mxu0
        %v1191 = vadd.f32 0.0, %v1190
        %v1192 = vpop.f32.mrb[0].mxu0
        %v1193 = vpop.f32.mrb[0].mxu0
        %v1194 = vadd.f32 0.0, %v1193
        %v1195 = vpop.f32.mrb[0].mxu0
        %1196 = vdwg.mxu0
        %v1198 = vlaneseq
        %v1199 = vshrl.u32 %v1198, 7
        %v1200 = vsub.s32 0, %v1199
        %v1201 = vrot.slane %v990, %v1200
        %v1203 = vadd.f32 %v1201, %v1191
        %v1204 = vadd.f32 %v1201, %v1194
        %1206 = vrot.lane.b32.xlu0 %v991, 64
        %v1207 = vpop.permute.xlu0 %1206
        %1209 = vrot.lane.b32.xlu0 %v992, 64
        %v1210 = vpop.permute.xlu0 %1209
        %v1212 = vsel %vm994, %v1207, 0
        %v1215 = vsel %vm994, %v1210, 0
        %1217 = vmatprep.subr.bf16.mxu0 0
        %1218 = vmatpush1.bf16.xpose.msra.mxu0 %v1215
        %1219 = vmatprep.subr.bf16.mxu0 0
        %1220 = vmatpush1.bf16.xpose.msra.mxu0 0
        %1221 = vmatprep.subr.bf16.mxu0 0
        %1222 = vmatpush1.bf16.xpose.msra.mxu0 0
        %1223 = vmatprep.subr.bf16.mxu0 0
        %1224 = vmatpush1.bf16.xpose.msra.mxu0 0
        %1225 = vmatprep.subr.bf16.mxu0 0
        %1226 = vmatpush1.bf16.xpose.msra.mxu0 0
        %1227 = vmatprep.subr.bf16.mxu0 0
        %1228 = vmatpush1.bf16.xpose.msra.mxu0 0
        %1229 = vmatprep.subr.bf16.mxu0 0
        %1230 = vmatpush1.bf16.xpose.msra.mxu0 0
        %1231 = vmatprep.subr.bf16.mxu0 0
        %1232 = vmatpush1.bf16.xpose.msra.mxu0 0
        %1233 = vmatprep.subr.bf16.mxu0 0
        %1234 = vmatpush1.bf16.xpose.msra.mxu0 0
        %1235 = vmatprep.subr.bf16.mxu0 0
        %1236 = vmatpush1.bf16.xpose.msra.mxu0 0
        %1237 = vmatprep.subr.bf16.mxu0 0
        %1238 = vmatpush1.bf16.xpose.msra.mxu0 0
        %1239 = vmatprep.subr.bf16.mxu0 0
        %1240 = vmatpush1.bf16.xpose.msra.mxu0 0
        %1241 = vmatprep.subr.bf16.mxu0 0
        %1242 = vmatpush1.bf16.xpose.msra.mxu0 0
        %1243 = vmatprep.subr.bf16.mxu0 0
        %1244 = vmatpush1.bf16.xpose.msra.mxu0 0
        %1245 = vmatprep.subr.bf16.mxu0 0
        %1246 = vmatpush1.bf16.xpose.msra.mxu0 0
        %1247 = vmatprep.subr.bf16.mxu0 0
        %1248 = vmatpush1.bf16.xpose.msra.mxu0 0
        %1249 = vmatprep.mubr.bf16.mxu0 0
        %1250 = vmatmul.mubr.bf16.gmra.mrb[0].mxu0 %v1212
        %v1251 = vpop.f32.mrb[0].mxu0
        %v1252 = vadd.f32 0.0, %v1251
        %v1253 = vpop.f32.mrb[0].mxu0
        %v1254 = vpop.f32.mrb[0].mxu0
        %v1255 = vadd.f32 0.0, %v1254
        %v1256 = vpop.f32.mrb[0].mxu0
        %1257 = vdwg.mxu0
        %v1258 = vmul.f32 %v1252, 0.125
        %v1259 = vmul.f32 %v1255, 0.125
        %v1260 = vadd.f32 %v1258, %v1048
        %v1261 = vadd.f32 %v1259, %v1048
        %v1262 = vsel %vm1052, %v1260, -inf
        %1263 = vmax.xlane.f32.xlu0 %v1262
        %v1264 = vpop.xlane.xlu0 %1263
        %v1265 = vsel %vm1052, %v1261, -inf
        %1266 = vmax.xlane.f32.xlu0 %v1265
        %v1267 = vpop.xlane.xlu0 %1266
        %v1268 = vsub.f32 %v1260, %v1264
        %v1269 = vsub.f32 %v1261, %v1267
        %v1270 = vmul.f32 %v1268, 1.442695
        %v1271 = vpow.pop %v1270
        %v1272 = vmul.f32 %v1269, 1.442695
        %v1273 = vpow.pop %v1272
        %v1274 = vsel %vm1052, %v1271, 0.0
        %1275 = vadd.xlane.f32.xlu0 %v1274
        %v1276 = vpop.xlane.xlu0 %1275
        %v1277 = vsel %vm1052, %v1273, 0.0
        %1278 = vadd.xlane.f32.xlu0 %v1277
        %v1279 = vpop.xlane.xlu0 %1278
        %v1280 = vrcp.pop %v1276
        %v1281 = vmul.f32 %v1271, %v1280
        %v1282 = vrcp.pop %v1279
        %v1283 = vmul.f32 %v1273, %v1282
        %v1284 = vpack.c.bf16 %v1283, %v1281
        %1286 = vrot.lane.b32.xlu0 %v993, 64
        %v1287 = vpop.permute.xlu0 %1286
        %v1290 = vsel %vm1052, %v1284, 0
        %1292 = vmatprep.subr.bf16.mxu0 0
        %1293 = vmatpush1.bf16.msra.mxu0 %v1287
        %1294 = vmatprep.subr.bf16.mxu0 0
        %1295 = vmatpush1.bf16.msra.mxu0 0
        %1296 = vmatprep.subr.bf16.mxu0 0
        %1297 = vmatpush1.bf16.msra.mxu0 0
        %1298 = vmatprep.subr.bf16.mxu0 0
        %1299 = vmatpush1.bf16.msra.mxu0 0
        %1300 = vmatprep.subr.bf16.mxu0 0
        %1301 = vmatpush1.bf16.msra.mxu0 0
        %1302 = vmatprep.subr.bf16.mxu0 0
        %1303 = vmatpush1.bf16.msra.mxu0 0
        %1304 = vmatprep.subr.bf16.mxu0 0
        %1305 = vmatpush1.bf16.msra.mxu0 0
        %1306 = vmatprep.subr.bf16.mxu0 0
        %1307 = vmatpush1.bf16.msra.mxu0 0
        %1308 = vmatprep.subr.bf16.mxu0 0
        %1309 = vmatpush1.bf16.msra.mxu0 0
        %1310 = vmatprep.subr.bf16.mxu0 0
        %1311 = vmatpush1.bf16.msra.mxu0 0
        %1312 = vmatprep.subr.bf16.mxu0 0
        %1313 = vmatpush1.bf16.msra.mxu0 0
        %1314 = vmatprep.subr.bf16.mxu0 0
        %1315 = vmatpush1.bf16.msra.mxu0 0
        %1316 = vmatprep.subr.bf16.mxu0 0
        %1317 = vmatpush1.bf16.msra.mxu0 0
        %1318 = vmatprep.subr.bf16.mxu0 0
        %1319 = vmatpush1.bf16.msra.mxu0 0
        %1320 = vmatprep.subr.bf16.mxu0 0
        %1321 = vmatpush1.bf16.msra.mxu0 0
        %1322 = vmatprep.subr.bf16.mxu0 0
        %1323 = vmatpush1.bf16.msra.mxu0 0
        %1324 = vmatprep.mubr.bf16.mxu0 0
        %1325 = vmatmul.mubr.bf16.gmra.mrb[0].mxu0 %v1290
        %v1326 = vpop.f32.mrb[0].mxu0
        %v1327 = vadd.f32 0.0, %v1326
        %v1328 = vpop.f32.mrb[0].mxu0
        %v1329 = vpop.f32.mrb[0].mxu0
        %v1330 = vadd.f32 0.0, %v1329
        %v1331 = vpop.f32.mrb[0].mxu0
        %1332 = vdwg.mxu0
        %v1333 = vpack.c.bf16 %v1330, %v1327
        %v1334 = vld [vmem:[#allocation4 + $0x20] sm:$0xf]
        %v1335 = vld [vmem:[#allocation4 + $0x24] sm:$0xf]
        %v1336 = vld [vmem:[#allocation4 + $0x28] sm:$0xf]
        %v1337 = vld [vmem:[#allocation4 + $0x2c] sm:$0xf]
        %v1338 = vld [vmem:[#allocation4 + $0x30] sm:$0xf]
        %v1339 = vld [vmem:[#allocation4 + $0x34] sm:$0xf]
        %v1340 = vld [vmem:[#allocation4 + $0x38] sm:$0xf]
        %v1341 = vld [vmem:[#allocation4 + $0x3c] sm:$0xf]
        %v1350 = vunpack.c.l.b16 %v1334
        %v1351 = vunpack.c.l.b16 %v1335
        %v1352 = vunpack.c.l.b16 %v1336
        %v1353 = vunpack.c.l.b16 %v1337
        %v1354 = vunpack.c.l.b16 %v1338
        %v1355 = vunpack.c.l.b16 %v1339
        %v1356 = vunpack.c.l.b16 %v1340
        %v1357 = vunpack.c.l.b16 %v1341
        %v1358 = vpack.c.b16 %v1351, %v1350
        %v1359 = vpack.c.b16 %v1353, %v1352
        %v1360 = vpack.c.b16 %v1355, %v1354
        %v1361 = vpack.c.b16 %v1357, %v1356
        %v1367 = vsel %vm994, %v1333, 0
        %1369 = vmatprep.subr.bf16.mxu0 0
        %1370 = vmatpush1.bf16.msra.mxu0 %v1358
        %1371 = vmatprep.subr.bf16.mxu0 0
        %1372 = vmatpush1.bf16.msra.mxu0 %v1359
        %1373 = vmatprep.subr.bf16.mxu0 0
        %1374 = vmatpush1.bf16.msra.mxu0 %v1360
        %1375 = vmatprep.subr.bf16.mxu0 0
        %1376 = vmatpush1.bf16.msra.mxu0 %v1361
        %1377 = vmatprep.subr.bf16.mxu0 0
        %1378 = vmatpush1.bf16.msra.mxu0 0
        %1379 = vmatprep.subr.bf16.mxu0 0
        %1380 = vmatpush1.bf16.msra.mxu0 0
        %1381 = vmatprep.subr.bf16.mxu0 0
        %1382 = vmatpush1.bf16.msra.mxu0 0
        %1383 = vmatprep.subr.bf16.mxu0 0
        %1384 = vmatpush1.bf16.msra.mxu0 0
        %1385 = vmatprep.subr.bf16.mxu0 0
        %1386 = vmatpush1.bf16.msra.mxu0 0
        %1387 = vmatprep.subr.bf16.mxu0 0
        %1388 = vmatpush1.bf16.msra.mxu0 0
        %1389 = vmatprep.subr.bf16.mxu0 0
        %1390 = vmatpush1.bf16.msra.mxu0 0
        %1391 = vmatprep.subr.bf16.mxu0 0
        %1392 = vmatpush1.bf16.msra.mxu0 0
        %1393 = vmatprep.subr.bf16.mxu0 0
        %1394 = vmatpush1.bf16.msra.mxu0 0
        %1395 = vmatprep.subr.bf16.mxu0 0
        %1396 = vmatpush1.bf16.msra.mxu0 0
        %1397 = vmatprep.subr.bf16.mxu0 0
        %1398 = vmatpush1.bf16.msra.mxu0 0
        %1399 = vmatprep.subr.bf16.mxu0 0
        %1400 = vmatpush1.bf16.msra.mxu0 0
        %1401 = vmatprep.mubr.bf16.mxu0 0
        %1402 = vmatmul.mubr.bf16.gmra.mrb[0].mxu0 %v1367
        %v1403 = vpop.f32.mrb[0].mxu0
        %v1404 = vadd.f32 0.0, %v1403
        %v1405 = vpop.f32.mrb[0].mxu0
        %v1406 = vpop.f32.mrb[0].mxu0
        %v1407 = vadd.f32 0.0, %v1406
        %v1408 = vpop.f32.mrb[0].mxu0
        %1409 = vdwg.mxu0
        %v1410 = vadd.f32 %v1203, %v1404
        %v1411 = vadd.f32 %v1204, %v1407
        %v1412 = vadd.f32 %v1410, %v725
        %v1413 = vadd.f32 %v1411, %v726
        %v1414 = vld [vmem:[%s8] sm:$0x1]
        %v1415 = vld [vmem:[%s9] sm:$0x1]
        %1416 = vadd.xlane.f32.xlu0 %v1412
        %v1417 = vpop.xlane.xlu0 %1416
        %1418 = vadd.xlane.f32.xlu0 %v1413
        %v1419 = vpop.xlane.xlu0 %1418
        %v1420 = vmul.f32 %v1417, %v688
        %v1421 = vmul.f32 %v1419, %v688
        %v1422 = vmul.f32 %v1412, %v1412
        %v1423 = vmul.f32 %v1413, %v1413
        %1424 = vadd.xlane.f32.xlu0 %v1422
        %v1425 = vpop.xlane.xlu0 %1424
        %1426 = vadd.xlane.f32.xlu0 %v1423
        %v1427 = vpop.xlane.xlu0 %1426
        %v1428 = vmul.f32 %v1425, %v688
        %v1429 = vmul.f32 %v1427, %v688
        %v1430 = vmul.f32 %v1420, %v1420
        %v1431 = vmul.f32 %v1421, %v1421
        %v1432 = vsub.f32 %v1428, %v1430
        %v1433 = vsub.f32 %v1429, %v1431
        %v1434 = vsub.f32 %v1412, %v1420
        %v1435 = vsub.f32 %v1413, %v1421
        %v1436 = vadd.f32 %v1432, 1e-12
        %v1437 = vadd.f32 %v1433, 1e-12
        %v1438 = vrsqrt.pop %v1436
        %v1439 = vrsqrt.pop %v1437
        %v1440 = vmul.f32 %v1434, %v1438
        %v1441 = vmul.f32 %v1435, %v1439
        %v1443 = vlaneseq
        %v1444 = vshrl.u32 %v1443, 7
        %v1445 = vsub.s32 0, %v1444
        %v1446 = vrot.slane %v1414, %v1445
        %v1448 = vmul.f32 %v1440, %v1446
        %v1449 = vmul.f32 %v1441, %v1446
        %v1451 = vlaneseq
        %v1452 = vshrl.u32 %v1451, 7
        %v1453 = vsub.s32 0, %v1452
        %v1454 = vrot.slane %v1415, %v1453
        %v1456 = vadd.f32 %v1448, %v1454
        %v1457 = vadd.f32 %v1449, %v1454
        %v1458 = vpack.c.bf16 %v1457, %v1456
        %v1459 = vld [vmem:[%s10] sm:$0xff]
        %v1460 = vld [vmem:[%s10 + $0x8] sm:$0xff]
        %v1461 = vld [vmem:[%s10 + $0x10] sm:$0xff]
        %v1462 = vld [vmem:[%s10 + $0x18] sm:$0xff]
        %v1463 = vld [vmem:[%s10 + $0x20] sm:$0xff]
        %v1464 = vld [vmem:[%s10 + $0x28] sm:$0xff]
        %v1465 = vld [vmem:[%s10 + $0x30] sm:$0xff]
        %v1466 = vld [vmem:[%s10 + $0x38] sm:$0xff]
        %v1467 = vld [vmem:[%s10 + $0x40] sm:$0xff]
        %v1468 = vld [vmem:[%s10 + $0x48] sm:$0xff]
        %v1469 = vld [vmem:[%s10 + $0x50] sm:$0xff]
        %v1470 = vld [vmem:[%s10 + $0x58] sm:$0xff]
        %v1471 = vld [vmem:[%s10 + $0x60] sm:$0xff]
        %v1472 = vld [vmem:[%s10 + $0x68] sm:$0xff]
        %v1473 = vld [vmem:[%s10 + $0x70] sm:$0xff]
        %v1474 = vld [vmem:[%s10 + $0x78] sm:$0xff]
        %v1475 = vld [vmem:[%s10 + $0x80] sm:$0xff]
        %v1476 = vld [vmem:[%s10 + $0x88] sm:$0xff]
        %v1477 = vld [vmem:[%s10 + $0x90] sm:$0xff]
        %v1478 = vld [vmem:[%s10 + $0x98] sm:$0xff]
        %v1479 = vld [vmem:[%s10 + $0xa0] sm:$0xff]
        %v1480 = vld [vmem:[%s10 + $0xa8] sm:$0xff]
        %v1481 = vld [vmem:[%s10 + $0xb0] sm:$0xff]
        %v1482 = vld [vmem:[%s10 + $0xb8] sm:$0xff]
        %v1483 = vld [vmem:[%s10 + $0xc0] sm:$0xff]
        %v1484 = vld [vmem:[%s10 + $0xc8] sm:$0xff]
        %v1485 = vld [vmem:[%s10 + $0xd0] sm:$0xff]
        %v1486 = vld [vmem:[%s10 + $0xd8] sm:$0xff]
        %v1487 = vld [vmem:[%s10 + $0xe0] sm:$0xff]
        %v1488 = vld [vmem:[%s10 + $0xe8] sm:$0xff]
        %v1489 = vld [vmem:[%s10 + $0xf0] sm:$0xff]
        %v1490 = vld [vmem:[%s10 + $0xf8] sm:$0xff]
        %v1491 = vld [vmem:[%s11] sm:$0xf]
        %v1493 = vlaneseq
        %v1494 = vshrl.u32 %v1493, 7
        %v1495 = vsub.s32 0, %v1494
        %v1496 = vrot.slane %v1491, %v1495
        %v1497 = vlaneseq
        %v1498 = vshrl.u32 %v1497, 7
        %v1499 = vsub.s32 1, %v1498
        %v1500 = vrot.slane %v1491, %v1499
        %v1501 = vlaneseq
        %v1502 = vshrl.u32 %v1501, 7
        %v1503 = vsub.s32 2, %v1502
        %v1504 = vrot.slane %v1491, %v1503
        %v1505 = vlaneseq
        %v1506 = vshrl.u32 %v1505, 7
        %v1507 = vsub.s32 3, %v1506
        %v1508 = vrot.slane %v1491, %v1507
        %v1545 = vunpack.c.l.b16 %v1459
        %v1546 = vunpack.c.h.b16 %v1459
        %v1547 = vunpack.c.l.b16 %v1460
        %v1548 = vunpack.c.h.b16 %v1460
        %v1549 = vunpack.c.l.b16 %v1461
        %v1550 = vunpack.c.h.b16 %v1461
        %v1551 = vunpack.c.l.b16 %v1462
        %v1552 = vunpack.c.h.b16 %v1462
        %v1553 = vunpack.c.l.b16 %v1463
        %v1554 = vunpack.c.h.b16 %v1463
        %v1555 = vunpack.c.l.b16 %v1464
        %v1556 = vunpack.c.h.b16 %v1464
        %v1557 = vunpack.c.l.b16 %v1465
        %v1558 = vunpack.c.h.b16 %v1465
        %v1559 = vunpack.c.l.b16 %v1466
        %v1560 = vunpack.c.h.b16 %v1466
        %v1561 = vunpack.c.l.b16 %v1467
        %v1562 = vunpack.c.h.b16 %v1467
        %v1563 = vunpack.c.l.b16 %v1468
        %v1564 = vunpack.c.h.b16 %v1468
        %v1565 = vunpack.c.l.b16 %v1469
        %v1566 = vunpack.c.h.b16 %v1469
        %v1567 = vunpack.c.l.b16 %v1470
        %v1568 = vunpack.c.h.b16 %v1470
        %v1569 = vunpack.c.l.b16 %v1471
        %v1570 = vunpack.c.h.b16 %v1471
        %v1571 = vunpack.c.l.b16 %v1472
        %v1572 = vunpack.c.h.b16 %v1472
        %v1573 = vunpack.c.l.b16 %v1473
        %v1574 = vunpack.c.h.b16 %v1473
        %v1575 = vunpack.c.l.b16 %v1474
        %v1576 = vunpack.c.h.b16 %v1474
        %v1577 = vunpack.c.l.b16 %v1475
        %v1578 = vunpack.c.h.b16 %v1475
        %v1579 = vunpack.c.l.b16 %v1476
        %v1580 = vunpack.c.h.b16 %v1476
        %v1581 = vunpack.c.l.b16 %v1477
        %v1582 = vunpack.c.h.b16 %v1477
        %v1583 = vunpack.c.l.b16 %v1478
        %v1584 = vunpack.c.h.b16 %v1478
        %v1585 = vunpack.c.l.b16 %v1479
        %v1586 = vunpack.c.h.b16 %v1479
        %v1587 = vunpack.c.l.b16 %v1480
        %v1588 = vunpack.c.h.b16 %v1480
        %v1589 = vunpack.c.l.b16 %v1481
        %v1590 = vunpack.c.h.b16 %v1481
        %v1591 = vunpack.c.l.b16 %v1482
        %v1592 = vunpack.c.h.b16 %v1482
        %v1593 = vunpack.c.l.b16 %v1483
        %v1594 = vunpack.c.h.b16 %v1483
        %v1595 = vunpack.c.l.b16 %v1484
        %v1596 = vunpack.c.h.b16 %v1484
        %v1597 = vunpack.c.l.b16 %v1485
        %v1598 = vunpack.c.h.b16 %v1485
        %v1599 = vunpack.c.l.b16 %v1486
        %v1600 = vunpack.c.h.b16 %v1486
        %v1601 = vunpack.c.l.b16 %v1487
        %v1602 = vunpack.c.h.b16 %v1487
        %v1603 = vunpack.c.l.b16 %v1488
        %v1604 = vunpack.c.h.b16 %v1488
        %v1605 = vunpack.c.l.b16 %v1489
        %v1606 = vunpack.c.h.b16 %v1489
        %v1607 = vunpack.c.l.b16 %v1490
        %v1608 = vunpack.c.h.b16 %v1490
        %v1609 = vpack.c.b16 %v1549, %v1545
        %v1610 = vpack.c.b16 %v1550, %v1546
        %v1611 = vpack.c.b16 %v1551, %v1547
        %v1612 = vpack.c.b16 %v1552, %v1548
        %v1613 = vpack.c.b16 %v1557, %v1553
        %v1614 = vpack.c.b16 %v1558, %v1554
        %v1615 = vpack.c.b16 %v1559, %v1555
        %v1616 = vpack.c.b16 %v1560, %v1556
        %v1617 = vpack.c.b16 %v1565, %v1561
        %v1618 = vpack.c.b16 %v1566, %v1562
        %v1619 = vpack.c.b16 %v1567, %v1563
        %v1620 = vpack.c.b16 %v1568, %v1564
        %v1621 = vpack.c.b16 %v1573, %v1569
        %v1622 = vpack.c.b16 %v1574, %v1570
        %v1623 = vpack.c.b16 %v1575, %v1571
        %v1624 = vpack.c.b16 %v1576, %v1572
        %v1625 = vpack.c.b16 %v1581, %v1577
        %v1626 = vpack.c.b16 %v1582, %v1578
        %v1627 = vpack.c.b16 %v1583, %v1579
        %v1628 = vpack.c.b16 %v1584, %v1580
        %v1629 = vpack.c.b16 %v1589, %v1585
        %v1630 = vpack.c.b16 %v1590, %v1586
        %v1631 = vpack.c.b16 %v1591, %v1587
        %v1632 = vpack.c.b16 %v1592, %v1588
        %v1633 = vpack.c.b16 %v1597, %v1593
        %v1634 = vpack.c.b16 %v1598, %v1594
        %v1635 = vpack.c.b16 %v1599, %v1595
        %v1636 = vpack.c.b16 %v1600, %v1596
        %v1637 = vpack.c.b16 %v1605, %v1601
        %v1638 = vpack.c.b16 %v1606, %v1602
        %v1639 = vpack.c.b16 %v1607, %v1603
        %v1640 = vpack.c.b16 %v1608, %v1604
        %1673 = vmatprep.subr.bf16.mxu0 %v1610
        %1674 = vmatpush1.bf16.msra.mxu0 %v1609
        %1675 = vmatprep.subr.bf16.mxu0 %v1614
        %1676 = vmatpush1.bf16.msra.mxu0 %v1613
        %1677 = vmatprep.subr.bf16.mxu0 %v1618
        %1678 = vmatpush1.bf16.msra.mxu0 %v1617
        %1679 = vmatprep.subr.bf16.mxu0 %v1622
        %1680 = vmatpush1.bf16.msra.mxu0 %v1621
        %1681 = vmatprep.subr.bf16.mxu0 %v1626
        %1682 = vmatpush1.bf16.msra.mxu0 %v1625
        %1683 = vmatprep.subr.bf16.mxu0 %v1630
        %1684 = vmatpush1.bf16.msra.mxu0 %v1629
        %1685 = vmatprep.subr.bf16.mxu0 %v1634
        %1686 = vmatpush1.bf16.msra.mxu0 %v1633
        %1687 = vmatprep.subr.bf16.mxu0 %v1638
        %1688 = vmatpush1.bf16.msra.mxu0 %v1637
        %1689 = vmatprep.subr.bf16.mxu0 0
        %1690 = vmatpush1.bf16.msra.mxu0 0
        %1691 = vmatprep.subr.bf16.mxu0 0
        %1692 = vmatpush1.bf16.msra.mxu0 0
        %1693 = vmatprep.subr.bf16.mxu0 0
        %1694 = vmatpush1.bf16.msra.mxu0 0
        %1695 = vmatprep.subr.bf16.mxu0 0
        %1696 = vmatpush1.bf16.msra.mxu0 0
        %1697 = vmatprep.subr.bf16.mxu0 0
        %1698 = vmatpush1.bf16.msra.mxu0 0
        %1699 = vmatprep.subr.bf16.mxu0 0
        %1700 = vmatpush1.bf16.msra.mxu0 0
        %1701 = vmatprep.subr.bf16.mxu0 0
        %1702 = vmatpush1.bf16.msra.mxu0 0
        %1703 = vmatprep.subr.bf16.mxu0 0
        %1704 = vmatpush1.bf16.msra.mxu0 0
        %1705 = vmatprep.mubr.bf16.mxu0 0
        %1706 = vmatmul.mubr.bf16.gmra.mrb[0].mxu0 %v1458
        %v1707 = vpop.f32.mrb[0].mxu0
        %v1708 = vadd.f32 %v1496, %v1707
        %v1709 = vpop.f32.mrb[0].mxu0
        %v1710 = vadd.f32 %v1500, %v1709
        %v1711 = vpop.f32.mrb[0].mxu0
        %v1712 = vadd.f32 %v1496, %v1711
        %v1713 = vpop.f32.mrb[0].mxu0
        %v1714 = vadd.f32 %v1500, %v1713
        %1715 = vdwg.mxu0
        %1716 = vmatprep.subr.bf16.mxu0 %v1612
        %1717 = vmatpush1.bf16.msra.mxu0 %v1611
        %1718 = vmatprep.subr.bf16.mxu0 %v1616
        %1719 = vmatpush1.bf16.msra.mxu0 %v1615
        %1720 = vmatprep.subr.bf16.mxu0 %v1620
        %1721 = vmatpush1.bf16.msra.mxu0 %v1619
        %1722 = vmatprep.subr.bf16.mxu0 %v1624
        %1723 = vmatpush1.bf16.msra.mxu0 %v1623
        %1724 = vmatprep.subr.bf16.mxu0 %v1628
        %1725 = vmatpush1.bf16.msra.mxu0 %v1627
        %1726 = vmatprep.subr.bf16.mxu0 %v1632
        %1727 = vmatpush1.bf16.msra.mxu0 %v1631
        %1728 = vmatprep.subr.bf16.mxu0 %v1636
        %1729 = vmatpush1.bf16.msra.mxu0 %v1635
        %1730 = vmatprep.subr.bf16.mxu0 %v1640
        %1731 = vmatpush1.bf16.msra.mxu0 %v1639
        %1732 = vmatprep.subr.bf16.mxu0 0
        %1733 = vmatpush1.bf16.msra.mxu0 0
        %1734 = vmatprep.subr.bf16.mxu0 0
        %1735 = vmatpush1.bf16.msra.mxu0 0
        %1736 = vmatprep.subr.bf16.mxu0 0
        %1737 = vmatpush1.bf16.msra.mxu0 0
        %1738 = vmatprep.subr.bf16.mxu0 0
        %1739 = vmatpush1.bf16.msra.mxu0 0
        %1740 = vmatprep.subr.bf16.mxu0 0
        %1741 = vmatpush1.bf16.msra.mxu0 0
        %1742 = vmatprep.subr.bf16.mxu0 0
        %1743 = vmatpush1.bf16.msra.mxu0 0
        %1744 = vmatprep.subr.bf16.mxu0 0
        %1745 = vmatpush1.bf16.msra.mxu0 0
        %1746 = vmatprep.subr.bf16.mxu0 0
        %1747 = vmatpush1.bf16.msra.mxu0 0
        %1748 = vmatprep.mubr.bf16.mxu0 0
        %1749 = vmatmul.mubr.bf16.gmra.mrb[0].mxu0 %v1458
        %v1750 = vpop.f32.mrb[0].mxu0
        %v1751 = vadd.f32 %v1504, %v1750
        %v1752 = vpop.f32.mrb[0].mxu0
        %v1753 = vadd.f32 %v1508, %v1752
        %v1754 = vpop.f32.mrb[0].mxu0
        %v1755 = vadd.f32 %v1504, %v1754
        %v1756 = vpop.f32.mrb[0].mxu0
        %v1757 = vadd.f32 %v1508, %v1756
        %1758 = vdwg.mxu0
        %v1759 = vmul.f32 %v1708, 0.5
        %v1760 = vmul.f32 %v1710, 0.5
        %v1761 = vmul.f32 %v1751, 0.5
        %v1762 = vmul.f32 %v1753, 0.5
        %v1763 = vmul.f32 %v1712, 0.5
        %v1764 = vmul.f32 %v1714, 0.5
        %v1765 = vmul.f32 %v1755, 0.5
        %v1766 = vmul.f32 %v1757, 0.5
        %v1767 = vmul.f32 %v1708, 0.70710677
        %v1768 = vmul.f32 %v1710, 0.70710677
        %v1769 = vmul.f32 %v1751, 0.70710677
        %v1770 = vmul.f32 %v1753, 0.70710677
        %v1771 = vmul.f32 %v1712, 0.70710677
        %v1772 = vmul.f32 %v1714, 0.70710677
        %v1773 = vmul.f32 %v1755, 0.70710677
        %v1774 = vmul.f32 %v1757, 0.70710677
        %v1775 = vand.u32 2147483647, %v1767
        %v1776 = vand.u32 2147483647, %v1768
        %v1777 = vand.u32 2147483647, %v1769
        %v1778 = vand.u32 2147483647, %v1770
        %v1779 = vand.u32 2147483647, %v1771
        %v1780 = vand.u32 2147483647, %v1772
        %v1781 = vand.u32 2147483647, %v1773
        %v1782 = vand.u32 2147483647, %v1774
        %v1783 = vmul.f32 %v1775, 0.3275911
        %v1784 = vmul.f32 %v1776, 0.3275911
        %v1785 = vmul.f32 %v1777, 0.3275911
        %v1786 = vmul.f32 %v1778, 0.3275911
        %v1787 = vmul.f32 %v1779, 0.3275911
        %v1788 = vmul.f32 %v1780, 0.3275911
        %v1789 = vmul.f32 %v1781, 0.3275911
        %v1790 = vmul.f32 %v1782, 0.3275911
        %v1791 = vadd.f32 %v1783, 1.0
        %v1792 = vadd.f32 %v1784, 1.0
        %v1793 = vadd.f32 %v1785, 1.0
        %v1794 = vadd.f32 %v1786, 1.0
        %v1795 = vadd.f32 %v1787, 1.0
        %v1796 = vadd.f32 %v1788, 1.0
        %v1797 = vadd.f32 %v1789, 1.0
        %v1798 = vadd.f32 %v1790, 1.0
        %v1799 = vrcp.pop %v1791
        %v1800 = vmul.f32 1.0, %v1799
        %v1801 = vrcp.pop %v1792
        %v1802 = vmul.f32 1.0, %v1801
        %v1803 = vrcp.pop %v1793
        %v1804 = vmul.f32 1.0, %v1803
        %v1805 = vrcp.pop %v1794
        %v1806 = vmul.f32 1.0, %v1805
        %v1807 = vrcp.pop %v1795
        %v1808 = vmul.f32 1.0, %v1807
        %v1809 = vrcp.pop %v1796
        %v1810 = vmul.f32 1.0, %v1809
        %v1811 = vrcp.pop %v1797
        %v1812 = vmul.f32 1.0, %v1811
        %v1813 = vrcp.pop %v1798
        %v1814 = vmul.f32 1.0, %v1813
        %v1815 = vmul.f32 %v1800, 1.0614054
        %v1816 = vmul.f32 %v1802, 1.0614054
        %v1817 = vmul.f32 %v1804, 1.0614054
        %v1818 = vmul.f32 %v1806, 1.0614054
        %v1819 = vmul.f32 %v1808, 1.0614054
        %v1820 = vmul.f32 %v1810, 1.0614054
        %v1821 = vmul.f32 %v1812, 1.0614054
        %v1822 = vmul.f32 %v1814, 1.0614054
        %v1823 = vadd.f32 %v1815, -1.4531521
        %v1824 = vadd.f32 %v1816, -1.4531521
        %v1825 = vadd.f32 %v1817, -1.4531521
        %v1826 = vadd.f32 %v1818, -1.4531521
        %v1827 = vadd.f32 %v1819, -1.4531521
        %v1828 = vadd.f32 %v1820, -1.4531521
        %v1829 = vadd.f32 %v1821, -1.4531521
        %v1830 = vadd.f32 %v1822, -1.4531521
        %v1831 = vmul.f32 %v1823, %v1800
        %v1832 = vmul.f32 %v1824, %v1802
        %v1833 = vmul.f32 %v1825, %v1804
        %v1834 = vmul.f32 %v1826, %v1806
        %v1835 = vmul.f32 %v1827, %v1808
        %v1836 = vmul.f32 %v1828, %v1810
        %v1837 = vmul.f32 %v1829, %v1812
        %v1838 = vmul.f32 %v1830, %v1814
        %v1839 = vadd.f32 %v1831, 1.4214138
        %v1840 = vadd.f32 %v1832, 1.4214138
        %v1841 = vadd.f32 %v1833, 1.4214138
        %v1842 = vadd.f32 %v1834, 1.4214138
        %v1843 = vadd.f32 %v1835, 1.4214138
        %v1844 = vadd.f32 %v1836, 1.4214138
        %v1845 = vadd.f32 %v1837, 1.4214138
        %v1846 = vadd.f32 %v1838, 1.4214138
        %v1847 = vmul.f32 %v1839, %v1800
        %v1848 = vmul.f32 %v1840, %v1802
        %v1849 = vmul.f32 %v1841, %v1804
        %v1850 = vmul.f32 %v1842, %v1806
        %v1851 = vmul.f32 %v1843, %v1808
        %v1852 = vmul.f32 %v1844, %v1810
        %v1853 = vmul.f32 %v1845, %v1812
        %v1854 = vmul.f32 %v1846, %v1814
        %v1855 = vadd.f32 %v1847, -0.28449672
        %v1856 = vadd.f32 %v1848, -0.28449672
        %v1857 = vadd.f32 %v1849, -0.28449672
        %v1858 = vadd.f32 %v1850, -0.28449672
        %v1859 = vadd.f32 %v1851, -0.28449672
        %v1860 = vadd.f32 %v1852, -0.28449672
        %v1861 = vadd.f32 %v1853, -0.28449672
        %v1862 = vadd.f32 %v1854, -0.28449672
        %v1863 = vmul.f32 %v1855, %v1800
        %v1864 = vmul.f32 %v1856, %v1802
        %v1865 = vmul.f32 %v1857, %v1804
        %v1866 = vmul.f32 %v1858, %v1806
        %v1867 = vmul.f32 %v1859, %v1808
        %v1868 = vmul.f32 %v1860, %v1810
        %v1869 = vmul.f32 %v1861, %v1812
        %v1870 = vmul.f32 %v1862, %v1814
        %v1871 = vadd.f32 %v1863, 0.2548296
        %v1872 = vadd.f32 %v1864, 0.2548296
        %v1873 = vadd.f32 %v1865, 0.2548296
        %v1874 = vadd.f32 %v1866, 0.2548296
        %v1875 = vadd.f32 %v1867, 0.2548296
        %v1876 = vadd.f32 %v1868, 0.2548296
        %v1877 = vadd.f32 %v1869, 0.2548296
        %v1878 = vadd.f32 %v1870, 0.2548296
        %v1879 = vmul.f32 %v1871, %v1800
        %v1880 = vmul.f32 %v1872, %v1802
        %v1881 = vmul.f32 %v1873, %v1804
        %v1882 = vmul.f32 %v1874, %v1806
        %v1883 = vmul.f32 %v1875, %v1808
        %v1884 = vmul.f32 %v1876, %v1810
        %v1885 = vmul.f32 %v1877, %v1812
        %v1886 = vmul.f32 %v1878, %v1814
        %v1887 = vsub.f32 0.0, %v1775
        %v1888 = vsub.f32 0.0, %v1776
        %v1889 = vsub.f32 0.0, %v1777
        %v1890 = vsub.f32 0.0, %v1778
        %v1891 = vsub.f32 0.0, %v1779
        %v1892 = vsub.f32 0.0, %v1780
        %v1893 = vsub.f32 0.0, %v1781
        %v1894 = vsub.f32 0.0, %v1782
        %v1895 = vmul.f32 %v1887, %v1775
        %v1896 = vmul.f32 %v1888, %v1776
        %v1897 = vmul.f32 %v1889, %v1777
        %v1898 = vmul.f32 %v1890, %v1778
        %v1899 = vmul.f32 %v1891, %v1779
        %v1900 = vmul.f32 %v1892, %v1780
        %v1901 = vmul.f32 %v1893, %v1781
        %v1902 = vmul.f32 %v1894, %v1782
        %v1903 = vmul.f32 %v1895, 1.442695
        %v1904 = vpow.pop %v1903
        %v1905 = vmul.f32 %v1896, 1.442695
        %v1906 = vpow.pop %v1905
        %v1907 = vmul.f32 %v1897, 1.442695
        %v1908 = vpow.pop %v1907
        %v1909 = vmul.f32 %v1898, 1.442695
        %v1910 = vpow.pop %v1909
        %v1911 = vmul.f32 %v1899, 1.442695
        %v1912 = vpow.pop %v1911
        %v1913 = vmul.f32 %v1900, 1.442695
        %v1914 = vpow.pop %v1913
        %v1915 = vmul.f32 %v1901, 1.442695
        %v1916 = vpow.pop %v1915
        %v1917 = vmul.f32 %v1902, 1.442695
        %v1918 = vpow.pop %v1917
        %v1919 = vmul.f32 %v1879, %v1904
        %v1920 = vmul.f32 %v1880, %v1906
        %v1921 = vmul.f32 %v1881, %v1908
        %v1922 = vmul.f32 %v1882, %v1910
        %v1923 = vmul.f32 %v1883, %v1912
        %v1924 = vmul.f32 %v1884, %v1914
        %v1925 = vmul.f32 %v1885, %v1916
        %v1926 = vmul.f32 %v1886, %v1918
        %v1927 = vsub.f32 1.0, %v1919
        %v1928 = vsub.f32 1.0, %v1920
        %v1929 = vsub.f32 1.0, %v1921
        %v1930 = vsub.f32 1.0, %v1922
        %v1931 = vsub.f32 1.0, %v1923
        %v1932 = vsub.f32 1.0, %v1924
        %v1933 = vsub.f32 1.0, %v1925
        %v1934 = vsub.f32 1.0, %v1926
        %vm1935 = vcmp.lt.f32.partialorder %v1767, 0.0
        %vm1936 = vcmp.lt.f32.partialorder %v1768, 0.0
        %vm1937 = vcmp.lt.f32.partialorder %v1769, 0.0
        %vm1938 = vcmp.lt.f32.partialorder %v1770, 0.0
        %vm1939 = vcmp.lt.f32.partialorder %v1771, 0.0
        %vm1940 = vcmp.lt.f32.partialorder %v1772, 0.0
        %vm1941 = vcmp.lt.f32.partialorder %v1773, 0.0
        %vm1942 = vcmp.lt.f32.partialorder %v1774, 0.0
        %v1943 = vsub.f32 0.0, %v1927
        %v1944 = vsub.f32 0.0, %v1928
        %v1945 = vsub.f32 0.0, %v1929
        %v1946 = vsub.f32 0.0, %v1930
        %v1947 = vsub.f32 0.0, %v1931
        %v1948 = vsub.f32 0.0, %v1932
        %v1949 = vsub.f32 0.0, %v1933
        %v1950 = vsub.f32 0.0, %v1934
        %v1951 = vsel %vm1935, %v1943, %v1927
        %v1952 = vsel %vm1936, %v1944, %v1928
        %v1953 = vsel %vm1937, %v1945, %v1929
        %v1954 = vsel %vm1938, %v1946, %v1930
        %v1955 = vsel %vm1939, %v1947, %v1931
        %v1956 = vsel %vm1940, %v1948, %v1932
        %v1957 = vsel %vm1941, %v1949, %v1933
        %v1958 = vsel %vm1942, %v1950, %v1934
        %v1959 = vadd.f32 %v1951, 1.0
        %v1960 = vadd.f32 %v1952, 1.0
        %v1961 = vadd.f32 %v1953, 1.0
        %v1962 = vadd.f32 %v1954, 1.0
        %v1963 = vadd.f32 %v1955, 1.0
        %v1964 = vadd.f32 %v1956, 1.0
        %v1965 = vadd.f32 %v1957, 1.0
        %v1966 = vadd.f32 %v1958, 1.0
        %v1967 = vmul.f32 %v1759, %v1959
        %v1968 = vmul.f32 %v1760, %v1960
        %v1969 = vmul.f32 %v1761, %v1961
        %v1970 = vmul.f32 %v1762, %v1962
        %v1971 = vmul.f32 %v1763, %v1963
        %v1972 = vmul.f32 %v1764, %v1964
        %v1973 = vmul.f32 %v1765, %v1965
        %v1974 = vmul.f32 %v1766, %v1966
        %v1975 = vpack.c.bf16 %v1971, %v1967
        %v1976 = vpack.c.bf16 %v1972, %v1968
        %v1977 = vpack.c.bf16 %v1973, %v1969
        %v1978 = vpack.c.bf16 %v1974, %v1970
        %v1979 = vld [vmem:[#allocation6] sm:$0xf]
        %v1980 = vld [vmem:[#allocation6 + $0x4] sm:$0xf]
        %v1981 = vld [vmem:[#allocation6 + $0x8] sm:$0xf]
        %v1982 = vld [vmem:[#allocation6 + $0xc] sm:$0xf]
        %v1983 = vld [vmem:[#allocation6 + $0x10] sm:$0xf]
        %v1984 = vld [vmem:[#allocation6 + $0x14] sm:$0xf]
        %v1985 = vld [vmem:[#allocation6 + $0x18] sm:$0xf]
        %v1986 = vld [vmem:[#allocation6 + $0x1c] sm:$0xf]
        %v1987 = vld [vmem:[#allocation6 + $0x20] sm:$0xf]
        %v1988 = vld [vmem:[#allocation6 + $0x24] sm:$0xf]
        %v1989 = vld [vmem:[#allocation6 + $0x28] sm:$0xf]
        %v1990 = vld [vmem:[#allocation6 + $0x2c] sm:$0xf]
        %v1991 = vld [vmem:[#allocation6 + $0x30] sm:$0xf]
        %v1992 = vld [vmem:[#allocation6 + $0x34] sm:$0xf]
        %v1993 = vld [vmem:[#allocation6 + $0x38] sm:$0xf]
        %v1994 = vld [vmem:[#allocation6 + $0x3c] sm:$0xf]
        %v1995 = vld [vmem:[#allocation6 + $0x40] sm:$0xf]
        %v1996 = vld [vmem:[#allocation6 + $0x44] sm:$0xf]
        %v1997 = vld [vmem:[#allocation6 + $0x48] sm:$0xf]
        %v1998 = vld [vmem:[#allocation6 + $0x4c] sm:$0xf]
        %v1999 = vld [vmem:[#allocation6 + $0x50] sm:$0xf]
        %v2000 = vld [vmem:[#allocation6 + $0x54] sm:$0xf]
        %v2001 = vld [vmem:[#allocation6 + $0x58] sm:$0xf]
        %v2002 = vld [vmem:[#allocation6 + $0x5c] sm:$0xf]
        %v2003 = vld [vmem:[#allocation6 + $0x60] sm:$0xf]
        %v2004 = vld [vmem:[#allocation6 + $0x64] sm:$0xf]
        %v2005 = vld [vmem:[#allocation6 + $0x68] sm:$0xf]
        %v2006 = vld [vmem:[#allocation6 + $0x6c] sm:$0xf]
        %v2007 = vld [vmem:[#allocation6 + $0x70] sm:$0xf]
        %v2008 = vld [vmem:[#allocation6 + $0x74] sm:$0xf]
        %v2009 = vld [vmem:[#allocation6 + $0x78] sm:$0xf]
        %v2010 = vld [vmem:[#allocation6 + $0x7c] sm:$0xf]
        %v2011 = vld [vmem:[#allocation6 + $0x80] sm:$0xf]
        %v2012 = vld [vmem:[#allocation6 + $0x84] sm:$0xf]
        %v2013 = vld [vmem:[#allocation6 + $0x88] sm:$0xf]
        %v2014 = vld [vmem:[#allocation6 + $0x8c] sm:$0xf]
        %v2015 = vld [vmem:[#allocation6 + $0x90] sm:$0xf]
        %v2016 = vld [vmem:[#allocation6 + $0x94] sm:$0xf]
        %v2017 = vld [vmem:[#allocation6 + $0x98] sm:$0xf]
        %v2018 = vld [vmem:[#allocation6 + $0x9c] sm:$0xf]
        %v2019 = vld [vmem:[#allocation6 + $0xa0] sm:$0xf]
        %v2020 = vld [vmem:[#allocation6 + $0xa4] sm:$0xf]
        %v2021 = vld [vmem:[#allocation6 + $0xa8] sm:$0xf]
        %v2022 = vld [vmem:[#allocation6 + $0xac] sm:$0xf]
        %v2023 = vld [vmem:[#allocation6 + $0xb0] sm:$0xf]
        %v2024 = vld [vmem:[#allocation6 + $0xb4] sm:$0xf]
        %v2025 = vld [vmem:[#allocation6 + $0xb8] sm:$0xf]
        %v2026 = vld [vmem:[#allocation6 + $0xbc] sm:$0xf]
        %v2027 = vld [vmem:[#allocation6 + $0xc0] sm:$0xf]
        %v2028 = vld [vmem:[#allocation6 + $0xc4] sm:$0xf]
        %v2029 = vld [vmem:[#allocation6 + $0xc8] sm:$0xf]
        %v2030 = vld [vmem:[#allocation6 + $0xcc] sm:$0xf]
        %v2031 = vld [vmem:[#allocation6 + $0xd0] sm:$0xf]
        %v2032 = vld [vmem:[#allocation6 + $0xd4] sm:$0xf]
        %v2033 = vld [vmem:[#allocation6 + $0xd8] sm:$0xf]
        %v2034 = vld [vmem:[#allocation6 + $0xdc] sm:$0xf]
        %v2035 = vld [vmem:[#allocation6 + $0xe0] sm:$0xf]
        %v2036 = vld [vmem:[#allocation6 + $0xe4] sm:$0xf]
        %v2037 = vld [vmem:[#allocation6 + $0xe8] sm:$0xf]
        %v2038 = vld [vmem:[#allocation6 + $0xec] sm:$0xf]
        %v2039 = vld [vmem:[#allocation6 + $0xf0] sm:$0xf]
        %v2040 = vld [vmem:[#allocation6 + $0xf4] sm:$0xf]
        %v2041 = vld [vmem:[#allocation6 + $0xf8] sm:$0xf]
        %v2042 = vld [vmem:[#allocation6 + $0xfc] sm:$0xf]
        %v2043 = vld [vmem:[%s13] sm:$0x1]
        %v2045 = vlaneseq
        %v2046 = vshrl.u32 %v2045, 7
        %v2047 = vsub.s32 0, %v2046
        %v2048 = vrot.slane %v2043, %v2047
        %v2114 = vunpack.c.l.b16 %v1979
        %v2115 = vunpack.c.l.b16 %v1980
        %v2116 = vunpack.c.l.b16 %v1981
        %v2117 = vunpack.c.l.b16 %v1982
        %v2118 = vunpack.c.l.b16 %v1983
        %v2119 = vunpack.c.l.b16 %v1984
        %v2120 = vunpack.c.l.b16 %v1985
        %v2121 = vunpack.c.l.b16 %v1986
        %v2122 = vunpack.c.l.b16 %v1987
        %v2123 = vunpack.c.l.b16 %v1988
        %v2124 = vunpack.c.l.b16 %v1989
        %v2125 = vunpack.c.l.b16 %v1990
        %v2126 = vunpack.c.l.b16 %v1991
        %v2127 = vunpack.c.l.b16 %v1992
        %v2128 = vunpack.c.l.b16 %v1993
        %v2129 = vunpack.c.l.b16 %v1994
        %v2130 = vunpack.c.l.b16 %v1995
        %v2131 = vunpack.c.l.b16 %v1996
        %v2132 = vunpack.c.l.b16 %v1997
        %v2133 = vunpack.c.l.b16 %v1998
        %v2134 = vunpack.c.l.b16 %v1999
        %v2135 = vunpack.c.l.b16 %v2000
        %v2136 = vunpack.c.l.b16 %v2001
        %v2137 = vunpack.c.l.b16 %v2002
        %v2138 = vunpack.c.l.b16 %v2003
        %v2139 = vunpack.c.l.b16 %v2004
        %v2140 = vunpack.c.l.b16 %v2005
        %v2141 = vunpack.c.l.b16 %v2006
        %v2142 = vunpack.c.l.b16 %v2007
        %v2143 = vunpack.c.l.b16 %v2008
        %v2144 = vunpack.c.l.b16 %v2009
        %v2145 = vunpack.c.l.b16 %v2010
        %v2146 = vunpack.c.l.b16 %v2011
        %v2147 = vunpack.c.l.b16 %v2012
        %v2148 = vunpack.c.l.b16 %v2013
        %v2149 = vunpack.c.l.b16 %v2014
        %v2150 = vunpack.c.l.b16 %v2015
        %v2151 = vunpack.c.l.b16 %v2016
        %v2152 = vunpack.c.l.b16 %v2017
        %v2153 = vunpack.c.l.b16 %v2018
        %v2154 = vunpack.c.l.b16 %v2019
        %v2155 = vunpack.c.l.b16 %v2020
        %v2156 = vunpack.c.l.b16 %v2021
        %v2157 = vunpack.c.l.b16 %v2022
        %v2158 = vunpack.c.l.b16 %v2023
        %v2159 = vunpack.c.l.b16 %v2024
        %v2160 = vunpack.c.l.b16 %v2025
        %v2161 = vunpack.c.l.b16 %v2026
        %v2162 = vunpack.c.l.b16 %v2027
        %v2163 = vunpack.c.l.b16 %v2028
        %v2164 = vunpack.c.l.b16 %v2029
        %v2165 = vunpack.c.l.b16 %v2030
        %v2166 = vunpack.c.l.b16 %v2031
        %v2167 = vunpack.c.l.b16 %v2032
        %v2168 = vunpack.c.l.b16 %v2033
        %v2169 = vunpack.c.l.b16 %v2034
        %v2170 = vunpack.c.l.b16 %v2035
        %v2171 = vunpack.c.l.b16 %v2036
        %v2172 = vunpack.c.l.b16 %v2037
        %v2173 = vunpack.c.l.b16 %v2038
        %v2174 = vunpack.c.l.b16 %v2039
        %v2175 = vunpack.c.l.b16 %v2040
        %v2176 = vunpack.c.l.b16 %v2041
        %v2177 = vunpack.c.l.b16 %v2042
        %v2178 = vpack.c.b16 %v2115, %v2114
        %v2179 = vpack.c.b16 %v2117, %v2116
        %v2180 = vpack.c.b16 %v2119, %v2118
        %v2181 = vpack.c.b16 %v2121, %v2120
        %v2182 = vpack.c.b16 %v2123, %v2122
        %v2183 = vpack.c.b16 %v2125, %v2124
        %v2184 = vpack.c.b16 %v2127, %v2126
        %v2185 = vpack.c.b16 %v2129, %v2128
        %v2186 = vpack.c.b16 %v2131, %v2130
        %v2187 = vpack.c.b16 %v2133, %v2132
        %v2188 = vpack.c.b16 %v2135, %v2134
        %v2189 = vpack.c.b16 %v2137, %v2136
        %v2190 = vpack.c.b16 %v2139, %v2138
        %v2191 = vpack.c.b16 %v2141, %v2140
        %v2192 = vpack.c.b16 %v2143, %v2142
        %v2193 = vpack.c.b16 %v2145, %v2144
        %v2194 = vpack.c.b16 %v2147, %v2146
        %v2195 = vpack.c.b16 %v2149, %v2148
        %v2196 = vpack.c.b16 %v2151, %v2150
        %v2197 = vpack.c.b16 %v2153, %v2152
        %v2198 = vpack.c.b16 %v2155, %v2154
        %v2199 = vpack.c.b16 %v2157, %v2156
        %v2200 = vpack.c.b16 %v2159, %v2158
        %v2201 = vpack.c.b16 %v2161, %v2160
        %v2202 = vpack.c.b16 %v2163, %v2162
        %v2203 = vpack.c.b16 %v2165, %v2164
        %v2204 = vpack.c.b16 %v2167, %v2166
        %v2205 = vpack.c.b16 %v2169, %v2168
        %v2206 = vpack.c.b16 %v2171, %v2170
        %v2207 = vpack.c.b16 %v2173, %v2172
        %v2208 = vpack.c.b16 %v2175, %v2174
        %v2209 = vpack.c.b16 %v2177, %v2176
        %2242 = vmatprep.subr.bf16.mxu0 0
        %2243 = vmatpush1.bf16.msra.mxu0 %v2178
        %2244 = vmatprep.subr.bf16.mxu0 0
        %2245 = vmatpush1.bf16.msra.mxu0 %v2179
        %2246 = vmatprep.subr.bf16.mxu0 0
        %2247 = vmatpush1.bf16.msra.mxu0 %v2180
        %2248 = vmatprep.subr.bf16.mxu0 0
        %2249 = vmatpush1.bf16.msra.mxu0 %v2181
        %2250 = vmatprep.subr.bf16.mxu0 0
        %2251 = vmatpush1.bf16.msra.mxu0 %v2182
        %2252 = vmatprep.subr.bf16.mxu0 0
        %2253 = vmatpush1.bf16.msra.mxu0 %v2183
        %2254 = vmatprep.subr.bf16.mxu0 0
        %2255 = vmatpush1.bf16.msra.mxu0 %v2184
        %2256 = vmatprep.subr.bf16.mxu0 0
        %2257 = vmatpush1.bf16.msra.mxu0 %v2185
        %2258 = vmatprep.subr.bf16.mxu0 0
        %2259 = vmatpush1.bf16.msra.mxu0 %v2186
        %2260 = vmatprep.subr.bf16.mxu0 0
        %2261 = vmatpush1.bf16.msra.mxu0 %v2187
        %2262 = vmatprep.subr.bf16.mxu0 0
        %2263 = vmatpush1.bf16.msra.mxu0 %v2188
        %2264 = vmatprep.subr.bf16.mxu0 0
        %2265 = vmatpush1.bf16.msra.mxu0 %v2189
        %2266 = vmatprep.subr.bf16.mxu0 0
        %2267 = vmatpush1.bf16.msra.mxu0 %v2190
        %2268 = vmatprep.subr.bf16.mxu0 0
        %2269 = vmatpush1.bf16.msra.mxu0 %v2191
        %2270 = vmatprep.subr.bf16.mxu0 0
        %2271 = vmatpush1.bf16.msra.mxu0 %v2192
        %2272 = vmatprep.subr.bf16.mxu0 0
        %2273 = vmatpush1.bf16.msra.mxu0 %v2193
        %2274 = vmatprep.mubr.bf16.mxu0 %v1976
        %2275 = vmatmul.mubr.bf16.gmra.mrb[0].mxu0 %v1975
        %v2276 = vpop.f32.mrb[0].mxu0
        %v2277 = vadd.f32 %v2048, %v2276
        %v2278 = vpop.f32.mrb[0].mxu0
        %v2279 = vpop.f32.mrb[0].mxu0
        %v2280 = vadd.f32 %v2048, %v2279
        %v2281 = vpop.f32.mrb[0].mxu0
        %2282 = vdwg.mxu0
        %2283 = vmatprep.subr.bf16.mxu0 0
        %2284 = vmatpush1.bf16.msra.mxu0 %v2194
        %2285 = vmatprep.subr.bf16.mxu0 0
        %2286 = vmatpush1.bf16.msra.mxu0 %v2195
        %2287 = vmatprep.subr.bf16.mxu0 0
        %2288 = vmatpush1.bf16.msra.mxu0 %v2196
        %2289 = vmatprep.subr.bf16.mxu0 0
        %2290 = vmatpush1.bf16.msra.mxu0 %v2197
        %2291 = vmatprep.subr.bf16.mxu0 0
        %2292 = vmatpush1.bf16.msra.mxu0 %v2198
        %2293 = vmatprep.subr.bf16.mxu0 0
        %2294 = vmatpush1.bf16.msra.mxu0 %v2199
        %2295 = vmatprep.subr.bf16.mxu0 0
        %2296 = vmatpush1.bf16.msra.mxu0 %v2200
        %2297 = vmatprep.subr.bf16.mxu0 0
        %2298 = vmatpush1.bf16.msra.mxu0 %v2201
        %2299 = vmatprep.subr.bf16.mxu0 0
        %2300 = vmatpush1.bf16.msra.mxu0 %v2202
        %2301 = vmatprep.subr.bf16.mxu0 0
        %2302 = vmatpush1.bf16.msra.mxu0 %v2203
        %2303 = vmatprep.subr.bf16.mxu0 0
        %2304 = vmatpush1.bf16.msra.mxu0 %v2204
        %2305 = vmatprep.subr.bf16.mxu0 0
        %2306 = vmatpush1.bf16.msra.mxu0 %v2205
        %2307 = vmatprep.subr.bf16.mxu0 0
        %2308 = vmatpush1.bf16.msra.mxu0 %v2206
        %2309 = vmatprep.subr.bf16.mxu0 0
        %2310 = vmatpush1.bf16.msra.mxu0 %v2207
        %2311 = vmatprep.subr.bf16.mxu0 0
        %2312 = vmatpush1.bf16.msra.mxu0 %v2208
        %2313 = vmatprep.subr.bf16.mxu0 0
        %2314 = vmatpush1.bf16.msra.mxu0 %v2209
        %2315 = vmatprep.mubr.bf16.mxu0 %v1978
        %2316 = vmatmul.mubr.bf16.gmra.mrb[0].mxu0 %v1977
        %v2317 = vpop.f32.mrb[0].mxu0
        %v2318 = vadd.f32 %v2277, %v2317
        %v2319 = vpop.f32.mrb[0].mxu0
        %v2320 = vpop.f32.mrb[0].mxu0
        %v2321 = vadd.f32 %v2280, %v2320
        %v2322 = vpop.f32.mrb[0].mxu0
        %2323 = vdwg.mxu0
        %v2324 = vadd.f32 %v2318, %v1456
        %v2325 = vadd.f32 %v2321, %v1457
        %v2326 = vld [vmem:[#allocation7] sm:$0x1]
        %v2327 = vld [vmem:[#allocation9] sm:$0x1]
        %2328 = vadd.xlane.f32.xlu0 %v2324
        %v2329 = vpop.xlane.xlu0 %2328
        %2330 = vadd.xlane.f32.xlu0 %v2325
        %v2331 = vpop.xlane.xlu0 %2330
        %v2332 = vmul.f32 %v2329, %v688
        %v2333 = vmul.f32 %v2331, %v688
        %v2334 = vmul.f32 %v2324, %v2324
        %v2335 = vmul.f32 %v2325, %v2325
        %2336 = vadd.xlane.f32.xlu0 %v2334
        %v2337 = vpop.xlane.xlu0 %2336
        %2338 = vadd.xlane.f32.xlu0 %v2335
        %v2339 = vpop.xlane.xlu0 %2338
        %v2340 = vmul.f32 %v2337, %v688
        %v2341 = vmul.f32 %v2339, %v688
        %v2342 = vmul.f32 %v2332, %v2332
        %v2343 = vmul.f32 %v2333, %v2333
        %v2344 = vsub.f32 %v2340, %v2342
        %v2345 = vsub.f32 %v2341, %v2343
        %v2346 = vsub.f32 %v2324, %v2332
        %v2347 = vsub.f32 %v2325, %v2333
        %v2348 = vadd.f32 %v2344, 1e-12
        %v2349 = vadd.f32 %v2345, 1e-12
        %v2350 = vrsqrt.pop %v2348
        %v2351 = vrsqrt.pop %v2349
        %v2352 = vmul.f32 %v2346, %v2350
        %v2353 = vmul.f32 %v2347, %v2351
        %v2355 = vlaneseq
        %v2356 = vshrl.u32 %v2355, 7
        %v2357 = vsub.s32 0, %v2356
        %v2358 = vrot.slane %v2326, %v2357
        %v2360 = vmul.f32 %v2352, %v2358
        %v2361 = vmul.f32 %v2353, %v2358
        %v2363 = vlaneseq
        %v2364 = vshrl.u32 %v2363, 7
        %v2365 = vsub.s32 0, %v2364
        %v2366 = vrot.slane %v2327, %v2365
        %v2368 = vadd.f32 %v2360, %v2366
        %v2369 = vadd.f32 %v2361, %v2366
        %v2370 = vpack.c.bf16 %v2369, %v2368
        %s2371 = scalar_lea.vmem [#allocation2], 192
        %v2372 = vld [vmem:[%s2371] sm:$0xff]
        %v2373 = vld [vmem:[%s2371 + $0x8] sm:$0xf]
        %v2374 = vld [vmem:[%s2371 + $0xc] sm:$0xff]
        %v2375 = vld [vmem:[%s2371 + $0x14] sm:$0xf]
        %v2376 = vld [vmem:[%s2371 + $0x18] sm:$0xff]
        %v2377 = vld [vmem:[%s2371 + $0x20] sm:$0xf]
        %v2378 = vld [vmem:[%s2371 + $0x24] sm:$0xff]
        %v2379 = vld [vmem:[%s2371 + $0x2c] sm:$0xf]
        %v2380 = vld [vmem:[%s2371 + $0x30] sm:$0xff]
        %v2381 = vld [vmem:[%s2371 + $0x38] sm:$0xf]
        %v2382 = vld [vmem:[%s2371 + $0x3c] sm:$0xff]
        %v2383 = vld [vmem:[%s2371 + $0x44] sm:$0xf]
        %v2384 = vld [vmem:[%s2371 + $0x48] sm:$0xff]
        %v2385 = vld [vmem:[%s2371 + $0x50] sm:$0xf]
        %v2386 = vld [vmem:[%s2371 + $0x54] sm:$0xff]
        %v2387 = vld [vmem:[%s2371 + $0x5c] sm:$0xf]
        %v2388 = vld [vmem:[%s2371 + $0x60] sm:$0xff]
        %v2389 = vld [vmem:[%s2371 + $0x68] sm:$0xf]
        %v2390 = vld [vmem:[%s2371 + $0x6c] sm:$0xff]
        %v2391 = vld [vmem:[%s2371 + $0x74] sm:$0xf]
        %v2392 = vld [vmem:[%s2371 + $0x78] sm:$0xff]
        %v2393 = vld [vmem:[%s2371 + $0x80] sm:$0xf]
        %v2394 = vld [vmem:[%s2371 + $0x84] sm:$0xff]
        %v2395 = vld [vmem:[%s2371 + $0x8c] sm:$0xf]
        %v2396 = vld [vmem:[%s2371 + $0x90] sm:$0xff]
        %v2397 = vld [vmem:[%s2371 + $0x98] sm:$0xf]
        %v2398 = vld [vmem:[%s2371 + $0x9c] sm:$0xff]
        %v2399 = vld [vmem:[%s2371 + $0xa4] sm:$0xf]
        %v2400 = vld [vmem:[%s2371 + $0xa8] sm:$0xff]
        %v2401 = vld [vmem:[%s2371 + $0xb0] sm:$0xf]
        %v2402 = vld [vmem:[%s2371 + $0xb4] sm:$0xff]
        %v2403 = vld [vmem:[%s2371 + $0xbc] sm:$0xf]
        %s2404 = scalar_lea.vmem %s5, 3
        %v2405 = vld [vmem:[%s2404] sm:$0x7]
        %v2407 = vlaneseq
        %v2408 = vshrl.u32 %v2407, 7
        %v2409 = vsub.s32 0, %v2408
        %v2410 = vrot.slane %v2405, %v2409
        %v2411 = vlaneseq
        %v2412 = vshrl.u32 %v2411, 7
        %v2413 = vsub.s32 1, %v2412
        %v2414 = vrot.slane %v2405, %v2413
        %v2415 = vlaneseq
        %v2416 = vshrl.u32 %v2415, 7
        %v2417 = vsub.s32 2, %v2416
        %v2418 = vrot.slane %v2405, %v2417
        %v2454 = vunpack.c.l.b16 %v2372
        %v2455 = vunpack.c.h.b16 %v2372
        %v2456 = vunpack.c.l.b16 %v2373
        %v2457 = vunpack.c.l.b16 %v2374
        %v2458 = vunpack.c.h.b16 %v2374
        %v2459 = vunpack.c.l.b16 %v2375
        %v2460 = vunpack.c.l.b16 %v2376
        %v2461 = vunpack.c.h.b16 %v2376
        %v2462 = vunpack.c.l.b16 %v2377
        %v2463 = vunpack.c.l.b16 %v2378
        %v2464 = vunpack.c.h.b16 %v2378
        %v2465 = vunpack.c.l.b16 %v2379
        %v2466 = vunpack.c.l.b16 %v2380
        %v2467 = vunpack.c.h.b16 %v2380
        %v2468 = vunpack.c.l.b16 %v2381
        %v2469 = vunpack.c.l.b16 %v2382
        %v2470 = vunpack.c.h.b16 %v2382
        %v2471 = vunpack.c.l.b16 %v2383
        %v2472 = vunpack.c.l.b16 %v2384
        %v2473 = vunpack.c.h.b16 %v2384
        %v2474 = vunpack.c.l.b16 %v2385
        %v2475 = vunpack.c.l.b16 %v2386
        %v2476 = vunpack.c.h.b16 %v2386
        %v2477 = vunpack.c.l.b16 %v2387
        %v2478 = vunpack.c.l.b16 %v2388
        %v2479 = vunpack.c.h.b16 %v2388
        %v2480 = vunpack.c.l.b16 %v2389
        %v2481 = vunpack.c.l.b16 %v2390
        %v2482 = vunpack.c.h.b16 %v2390
        %v2483 = vunpack.c.l.b16 %v2391
        %v2484 = vunpack.c.l.b16 %v2392
        %v2485 = vunpack.c.h.b16 %v2392
        %v2486 = vunpack.c.l.b16 %v2393
        %v2487 = vunpack.c.l.b16 %v2394
        %v2488 = vunpack.c.h.b16 %v2394
        %v2489 = vunpack.c.l.b16 %v2395
        %v2490 = vunpack.c.l.b16 %v2396
        %v2491 = vunpack.c.h.b16 %v2396
        %v2492 = vunpack.c.l.b16 %v2397
        %v2493 = vunpack.c.l.b16 %v2398
        %v2494 = vunpack.c.h.b16 %v2398
        %v2495 = vunpack.c.l.b16 %v2399
        %v2496 = vunpack.c.l.b16 %v2400
        %v2497 = vunpack.c.h.b16 %v2400
        %v2498 = vunpack.c.l.b16 %v2401
        %v2499 = vunpack.c.l.b16 %v2402
        %v2500 = vunpack.c.h.b16 %v2402
        %v2501 = vunpack.c.l.b16 %v2403
        %v2502 = vpack.c.b16 %v2457, %v2454
        %v2503 = vpack.c.b16 %v2458, %v2455
        %v2504 = vpack.c.b16 %v2459, %v2456
        %v2505 = vpack.c.b16 %v2463, %v2460
        %v2506 = vpack.c.b16 %v2464, %v2461
        %v2507 = vpack.c.b16 %v2465, %v2462
        %v2508 = vpack.c.b16 %v2469, %v2466
        %v2509 = vpack.c.b16 %v2470, %v2467
        %v2510 = vpack.c.b16 %v2471, %v2468
        %v2511 = vpack.c.b16 %v2475, %v2472
        %v2512 = vpack.c.b16 %v2476, %v2473
        %v2513 = vpack.c.b16 %v2477, %v2474
        %v2514 = vpack.c.b16 %v2481, %v2478
        %v2515 = vpack.c.b16 %v2482, %v2479
        %v2516 = vpack.c.b16 %v2483, %v2480
        %v2517 = vpack.c.b16 %v2487, %v2484
        %v2518 = vpack.c.b16 %v2488, %v2485
        %v2519 = vpack.c.b16 %v2489, %v2486
        %v2520 = vpack.c.b16 %v2493, %v2490
        %v2521 = vpack.c.b16 %v2494, %v2491
        %v2522 = vpack.c.b16 %v2495, %v2492
        %v2523 = vpack.c.b16 %v2499, %v2496
        %v2524 = vpack.c.b16 %v2500, %v2497
        %v2525 = vpack.c.b16 %v2501, %v2498
        %2550 = vmatprep.subr.bf16.mxu0 %v2503
        %2551 = vmatpush1.bf16.msra.mxu0 %v2502
        %2552 = vmatprep.subr.bf16.mxu0 %v2506
        %2553 = vmatpush1.bf16.msra.mxu0 %v2505
        %2554 = vmatprep.subr.bf16.mxu0 %v2509
        %2555 = vmatpush1.bf16.msra.mxu0 %v2508
        %2556 = vmatprep.subr.bf16.mxu0 %v2512
        %2557 = vmatpush1.bf16.msra.mxu0 %v2511
        %2558 = vmatprep.subr.bf16.mxu0 %v2515
        %2559 = vmatpush1.bf16.msra.mxu0 %v2514
        %2560 = vmatprep.subr.bf16.mxu0 %v2518
        %2561 = vmatpush1.bf16.msra.mxu0 %v2517
        %2562 = vmatprep.subr.bf16.mxu0 %v2521
        %2563 = vmatpush1.bf16.msra.mxu0 %v2520
        %2564 = vmatprep.subr.bf16.mxu0 %v2524
        %2565 = vmatpush1.bf16.msra.mxu0 %v2523
        %2566 = vmatprep.subr.bf16.mxu0 0
        %2567 = vmatpush1.bf16.msra.mxu0 0
        %2568 = vmatprep.subr.bf16.mxu0 0
        %2569 = vmatpush1.bf16.msra.mxu0 0
        %2570 = vmatprep.subr.bf16.mxu0 0
        %2571 = vmatpush1.bf16.msra.mxu0 0
        %2572 = vmatprep.subr.bf16.mxu0 0
        %2573 = vmatpush1.bf16.msra.mxu0 0
        %2574 = vmatprep.subr.bf16.mxu0 0
        %2575 = vmatpush1.bf16.msra.mxu0 0
        %2576 = vmatprep.subr.bf16.mxu0 0
        %2577 = vmatpush1.bf16.msra.mxu0 0
        %2578 = vmatprep.subr.bf16.mxu0 0
        %2579 = vmatpush1.bf16.msra.mxu0 0
        %2580 = vmatprep.subr.bf16.mxu0 0
        %2581 = vmatpush1.bf16.msra.mxu0 0
        %2582 = vmatprep.mubr.bf16.mxu0 0
        %2583 = vmatmul.mubr.bf16.gmra.mrb[0].mxu0 %v2370
        %v2584 = vpop.f32.mrb[0].mxu0
        %v2585 = vadd.f32 %v2410, %v2584
        %v2586 = vpop.f32.mrb[0].mxu0
        %v2587 = vadd.f32 %v2414, %v2586
        %v2588 = vpop.f32.mrb[0].mxu0
        %v2589 = vadd.f32 %v2410, %v2588
        %v2590 = vpop.f32.mrb[0].mxu0
        %v2591 = vadd.f32 %v2414, %v2590
        %2592 = vdwg.mxu0
        %2593 = vmatprep.subr.bf16.mxu0 0
        %2594 = vmatpush1.bf16.msra.mxu0 %v2504
        %2595 = vmatprep.subr.bf16.mxu0 0
        %2596 = vmatpush1.bf16.msra.mxu0 %v2507
        %2597 = vmatprep.subr.bf16.mxu0 0
        %2598 = vmatpush1.bf16.msra.mxu0 %v2510
        %2599 = vmatprep.subr.bf16.mxu0 0
        %2600 = vmatpush1.bf16.msra.mxu0 %v2513
        %2601 = vmatprep.subr.bf16.mxu0 0
        %2602 = vmatpush1.bf16.msra.mxu0 %v2516
        %2603 = vmatprep.subr.bf16.mxu0 0
        %2604 = vmatpush1.bf16.msra.mxu0 %v2519
        %2605 = vmatprep.subr.bf16.mxu0 0
        %2606 = vmatpush1.bf16.msra.mxu0 %v2522
        %2607 = vmatprep.subr.bf16.mxu0 0
        %2608 = vmatpush1.bf16.msra.mxu0 %v2525
        %2609 = vmatprep.subr.bf16.mxu0 0
        %2610 = vmatpush1.bf16.msra.mxu0 0
        %2611 = vmatprep.subr.bf16.mxu0 0
        %2612 = vmatpush1.bf16.msra.mxu0 0
        %2613 = vmatprep.subr.bf16.mxu0 0
        %2614 = vmatpush1.bf16.msra.mxu0 0
        %2615 = vmatprep.subr.bf16.mxu0 0
        %2616 = vmatpush1.bf16.msra.mxu0 0
        %2617 = vmatprep.subr.bf16.mxu0 0
        %2618 = vmatpush1.bf16.msra.mxu0 0
        %2619 = vmatprep.subr.bf16.mxu0 0
        %2620 = vmatpush1.bf16.msra.mxu0 0
        %2621 = vmatprep.subr.bf16.mxu0 0
        %2622 = vmatpush1.bf16.msra.mxu0 0
        %2623 = vmatprep.subr.bf16.mxu0 0
        %2624 = vmatpush1.bf16.msra.mxu0 0
        %2625 = vmatprep.mubr.bf16.mxu0 0
        %2626 = vmatmul.mubr.bf16.gmra.mrb[0].mxu0 %v2370
        %v2627 = vpop.f32.mrb[0].mxu0
        %v2628 = vadd.f32 %v2418, %v2627
        %v2629 = vpop.f32.mrb[0].mxu0
        %v2630 = vpop.f32.mrb[0].mxu0
        %v2631 = vadd.f32 %v2418, %v2630
        %v2632 = vpop.f32.mrb[0].mxu0
        %2633 = vdwg.mxu0
        %s2634 = scalar_lea.vmem %s7, 1
        %v2635 = vld [vmem:[%s2634] sm:$0x1]
        %v2636 = vpack.c.bf16 %v2589, %v2585
        %v2637 = vpack.c.bf16 %v2591, %v2587
        %v2638 = vpack.c.bf16 %v2631, %v2628
        %v2640 = vsel %vm994, %v2636, 0
        %v2643 = vsel %vm994, %v2637, 0
        %2645 = vmatprep.subr.bf16.mxu0 0
        %2646 = vmatpush1.bf16.xpose.msra.mxu0 %v2643
        %2647 = vmatprep.subr.bf16.mxu0 0
        %2648 = vmatpush1.bf16.xpose.msra.mxu0 0
        %2649 = vmatprep.subr.bf16.mxu0 0
        %2650 = vmatpush1.bf16.xpose.msra.mxu0 0
        %2651 = vmatprep.subr.bf16.mxu0 0
        %2652 = vmatpush1.bf16.xpose.msra.mxu0 0
        %2653 = vmatprep.subr.bf16.mxu0 0
        %2654 = vmatpush1.bf16.xpose.msra.mxu0 0
        %2655 = vmatprep.subr.bf16.mxu0 0
        %2656 = vmatpush1.bf16.xpose.msra.mxu0 0
        %2657 = vmatprep.subr.bf16.mxu0 0
        %2658 = vmatpush1.bf16.xpose.msra.mxu0 0
        %2659 = vmatprep.subr.bf16.mxu0 0
        %2660 = vmatpush1.bf16.xpose.msra.mxu0 0
        %2661 = vmatprep.subr.bf16.mxu0 0
        %2662 = vmatpush1.bf16.xpose.msra.mxu0 0
        %2663 = vmatprep.subr.bf16.mxu0 0
        %2664 = vmatpush1.bf16.xpose.msra.mxu0 0
        %2665 = vmatprep.subr.bf16.mxu0 0
        %2666 = vmatpush1.bf16.xpose.msra.mxu0 0
        %2667 = vmatprep.subr.bf16.mxu0 0
        %2668 = vmatpush1.bf16.xpose.msra.mxu0 0
        %2669 = vmatprep.subr.bf16.mxu0 0
        %2670 = vmatpush1.bf16.xpose.msra.mxu0 0
        %2671 = vmatprep.subr.bf16.mxu0 0
        %2672 = vmatpush1.bf16.xpose.msra.mxu0 0
        %2673 = vmatprep.subr.bf16.mxu0 0
        %2674 = vmatpush1.bf16.xpose.msra.mxu0 0
        %2675 = vmatprep.subr.bf16.mxu0 0
        %2676 = vmatpush1.bf16.xpose.msra.mxu0 0
        %2677 = vmatprep.mubr.bf16.mxu0 0
        %2678 = vmatmul.mubr.bf16.gmra.mrb[0].mxu0 %v2640
        %v2679 = vpop.f32.mrb[0].mxu0
        %v2680 = vadd.f32 0.0, %v2679
        %v2681 = vpop.f32.mrb[0].mxu0
        %v2682 = vpop.f32.mrb[0].mxu0
        %v2683 = vadd.f32 0.0, %v2682
        %v2684 = vpop.f32.mrb[0].mxu0
        %2685 = vdwg.mxu0
        %v2686 = vmul.f32 %v2680, 0.125
        %v2687 = vmul.f32 %v2683, 0.125
        %v2688 = vadd.f32 %v2686, %v1048
        %v2689 = vadd.f32 %v2687, %v1048
        %v2690 = vsel %vm1052, %v2688, -inf
        %2691 = vmax.xlane.f32.xlu0 %v2690
        %v2692 = vpop.xlane.xlu0 %2691
        %v2693 = vsel %vm1052, %v2689, -inf
        %2694 = vmax.xlane.f32.xlu0 %v2693
        %v2695 = vpop.xlane.xlu0 %2694
        %v2696 = vsub.f32 %v2688, %v2692
        %v2697 = vsub.f32 %v2689, %v2695
        %v2698 = vmul.f32 %v2696, 1.442695
        %v2699 = vpow.pop %v2698
        %v2700 = vmul.f32 %v2697, 1.442695
        %v2701 = vpow.pop %v2700
        %v2702 = vsel %vm1052, %v2699, 0.0
        %2703 = vadd.xlane.f32.xlu0 %v2702
        %v2704 = vpop.xlane.xlu0 %2703
        %v2705 = vsel %vm1052, %v2701, 0.0
        %2706 = vadd.xlane.f32.xlu0 %v2705
        %v2707 = vpop.xlane.xlu0 %2706
        %v2708 = vrcp.pop %v2704
        %v2709 = vmul.f32 %v2699, %v2708
        %v2710 = vrcp.pop %v2707
        %v2711 = vmul.f32 %v2701, %v2710
        %v2712 = vpack.c.bf16 %v2711, %v2709
        %v2714 = vsel %vm1052, %v2712, 0
        %2716 = vmatprep.subr.bf16.mxu0 0
        %2717 = vmatpush1.bf16.msra.mxu0 %v2638
        %2718 = vmatprep.subr.bf16.mxu0 0
        %2719 = vmatpush1.bf16.msra.mxu0 0
        %2720 = vmatprep.subr.bf16.mxu0 0
        %2721 = vmatpush1.bf16.msra.mxu0 0
        %2722 = vmatprep.subr.bf16.mxu0 0
        %2723 = vmatpush1.bf16.msra.mxu0 0
        %2724 = vmatprep.subr.bf16.mxu0 0
        %2725 = vmatpush1.bf16.msra.mxu0 0
        %2726 = vmatprep.subr.bf16.mxu0 0
        %2727 = vmatpush1.bf16.msra.mxu0 0
        %2728 = vmatprep.subr.bf16.mxu0 0
        %2729 = vmatpush1.bf16.msra.mxu0 0
        %2730 = vmatprep.subr.bf16.mxu0 0
        %2731 = vmatpush1.bf16.msra.mxu0 0
        %2732 = vmatprep.subr.bf16.mxu0 0
        %2733 = vmatpush1.bf16.msra.mxu0 0
        %2734 = vmatprep.subr.bf16.mxu0 0
        %2735 = vmatpush1.bf16.msra.mxu0 0
        %2736 = vmatprep.subr.bf16.mxu0 0
        %2737 = vmatpush1.bf16.msra.mxu0 0
        %2738 = vmatprep.subr.bf16.mxu0 0
        %2739 = vmatpush1.bf16.msra.mxu0 0
        %2740 = vmatprep.subr.bf16.mxu0 0
        %2741 = vmatpush1.bf16.msra.mxu0 0
        %2742 = vmatprep.subr.bf16.mxu0 0
        %2743 = vmatpush1.bf16.msra.mxu0 0
        %2744 = vmatprep.subr.bf16.mxu0 0
        %2745 = vmatpush1.bf16.msra.mxu0 0
        %2746 = vmatprep.subr.bf16.mxu0 0
        %2747 = vmatpush1.bf16.msra.mxu0 0
        %2748 = vmatprep.mubr.bf16.mxu0 0
        %2749 = vmatmul.mubr.bf16.gmra.mrb[0].mxu0 %v2714
        %v2750 = vpop.f32.mrb[0].mxu0
        %v2751 = vadd.f32 0.0, %v2750
        %v2752 = vpop.f32.mrb[0].mxu0
        %v2753 = vpop.f32.mrb[0].mxu0
        %v2754 = vadd.f32 0.0, %v2753
        %v2755 = vpop.f32.mrb[0].mxu0
        %2756 = vdwg.mxu0
        %v2757 = vpack.c.bf16 %v2754, %v2751
        %s2758 = scalar_lea.vmem [#allocation4], 64
        %v2759 = vld [vmem:[%s2758] sm:$0xf]
        %v2760 = vld [vmem:[%s2758 + $0x4] sm:$0xf]
        %v2761 = vld [vmem:[%s2758 + $0x8] sm:$0xf]
        %v2762 = vld [vmem:[%s2758 + $0xc] sm:$0xf]
        %v2763 = vld [vmem:[%s2758 + $0x10] sm:$0xf]
        %v2764 = vld [vmem:[%s2758 + $0x14] sm:$0xf]
        %v2765 = vld [vmem:[%s2758 + $0x18] sm:$0xf]
        %v2766 = vld [vmem:[%s2758 + $0x1c] sm:$0xf]
        %v2775 = vunpack.c.l.b16 %v2759
        %v2776 = vunpack.c.l.b16 %v2760
        %v2777 = vunpack.c.l.b16 %v2761
        %v2778 = vunpack.c.l.b16 %v2762
        %v2779 = vunpack.c.l.b16 %v2763
        %v2780 = vunpack.c.l.b16 %v2764
        %v2781 = vunpack.c.l.b16 %v2765
        %v2782 = vunpack.c.l.b16 %v2766
        %v2783 = vpack.c.b16 %v2776, %v2775
        %v2784 = vpack.c.b16 %v2778, %v2777
        %v2785 = vpack.c.b16 %v2780, %v2779
        %v2786 = vpack.c.b16 %v2782, %v2781
        %v2792 = vsel %vm994, %v2757, 0
        %2794 = vmatprep.subr.bf16.mxu0 0
        %2795 = vmatpush1.bf16.msra.mxu0 %v2783
        %2796 = vmatprep.subr.bf16.mxu0 0
        %2797 = vmatpush1.bf16.msra.mxu0 %v2784
        %2798 = vmatprep.subr.bf16.mxu0 0
        %2799 = vmatpush1.bf16.msra.mxu0 %v2785
        %2800 = vmatprep.subr.bf16.mxu0 0
        %2801 = vmatpush1.bf16.msra.mxu0 %v2786
        %2802 = vmatprep.subr.bf16.mxu0 0
        %2803 = vmatpush1.bf16.msra.mxu0 0
        %2804 = vmatprep.subr.bf16.mxu0 0
        %2805 = vmatpush1.bf16.msra.mxu0 0
        %2806 = vmatprep.subr.bf16.mxu0 0
        %2807 = vmatpush1.bf16.msra.mxu0 0
        %2808 = vmatprep.subr.bf16.mxu0 0
        %2809 = vmatpush1.bf16.msra.mxu0 0
        %2810 = vmatprep.subr.bf16.mxu0 0
        %2811 = vmatpush1.bf16.msra.mxu0 0
        %2812 = vmatprep.subr.bf16.mxu0 0
        %2813 = vmatpush1.bf16.msra.mxu0 0
        %2814 = vmatprep.subr.bf16.mxu0 0
        %2815 = vmatpush1.bf16.msra.mxu0 0
        %2816 = vmatprep.subr.bf16.mxu0 0
        %2817 = vmatpush1.bf16.msra.mxu0 0
        %2818 = vmatprep.subr.bf16.mxu0 0
        %2819 = vmatpush1.bf16.msra.mxu0 0
        %2820 = vmatprep.subr.bf16.mxu0 0
        %2821 = vmatpush1.bf16.msra.mxu0 0
        %2822 = vmatprep.subr.bf16.mxu0 0
        %2823 = vmatpush1.bf16.msra.mxu0 0
        %2824 = vmatprep.subr.bf16.mxu0 0
        %2825 = vmatpush1.bf16.msra.mxu0 0
        %2826 = vmatprep.mubr.bf16.mxu0 0
        %2827 = vmatmul.mubr.bf16.gmra.mrb[0].mxu0 %v2792
        %v2828 = vpop.f32.mrb[0].mxu0
        %v2829 = vadd.f32 0.0, %v2828
        %v2830 = vpop.f32.mrb[0].mxu0
        %v2831 = vpop.f32.mrb[0].mxu0
        %v2832 = vadd.f32 0.0, %v2831
        %v2833 = vpop.f32.mrb[0].mxu0
        %2834 = vdwg.mxu0
        %v2836 = vlaneseq
        %v2837 = vshrl.u32 %v2836, 7
        %v2838 = vsub.s32 0, %v2837
        %v2839 = vrot.slane %v2635, %v2838
        %v2841 = vadd.f32 %v2839, %v2829
        %v2842 = vadd.f32 %v2839, %v2832
        %2844 = vrot.lane.b32.xlu0 %v2636, 64
        %v2845 = vpop.permute.xlu0 %2844
        %2847 = vrot.lane.b32.xlu0 %v2637, 64
        %v2848 = vpop.permute.xlu0 %2847
        %v2850 = vsel %vm994, %v2845, 0
        %v2853 = vsel %vm994, %v2848, 0
        %2855 = vmatprep.subr.bf16.mxu0 0
        %2856 = vmatpush1.bf16.xpose.msra.mxu0 %v2853
        %2857 = vmatprep.subr.bf16.mxu0 0
        %2858 = vmatpush1.bf16.xpose.msra.mxu0 0
        %2859 = vmatprep.subr.bf16.mxu0 0
        %2860 = vmatpush1.bf16.xpose.msra.mxu0 0
        %2861 = vmatprep.subr.bf16.mxu0 0
        %2862 = vmatpush1.bf16.xpose.msra.mxu0 0
        %2863 = vmatprep.subr.bf16.mxu0 0
        %2864 = vmatpush1.bf16.xpose.msra.mxu0 0
        %2865 = vmatprep.subr.bf16.mxu0 0
        %2866 = vmatpush1.bf16.xpose.msra.mxu0 0
        %2867 = vmatprep.subr.bf16.mxu0 0
        %2868 = vmatpush1.bf16.xpose.msra.mxu0 0
        %2869 = vmatprep.subr.bf16.mxu0 0
        %2870 = vmatpush1.bf16.xpose.msra.mxu0 0
        %2871 = vmatprep.subr.bf16.mxu0 0
        %2872 = vmatpush1.bf16.xpose.msra.mxu0 0
        %2873 = vmatprep.subr.bf16.mxu0 0
        %2874 = vmatpush1.bf16.xpose.msra.mxu0 0
        %2875 = vmatprep.subr.bf16.mxu0 0
        %2876 = vmatpush1.bf16.xpose.msra.mxu0 0
        %2877 = vmatprep.subr.bf16.mxu0 0
        %2878 = vmatpush1.bf16.xpose.msra.mxu0 0
        %2879 = vmatprep.subr.bf16.mxu0 0
        %2880 = vmatpush1.bf16.xpose.msra.mxu0 0
        %2881 = vmatprep.subr.bf16.mxu0 0
        %2882 = vmatpush1.bf16.xpose.msra.mxu0 0
        %2883 = vmatprep.subr.bf16.mxu0 0
        %2884 = vmatpush1.bf16.xpose.msra.mxu0 0
        %2885 = vmatprep.subr.bf16.mxu0 0
        %2886 = vmatpush1.bf16.xpose.msra.mxu0 0
        %2887 = vmatprep.mubr.bf16.mxu0 0
        %2888 = vmatmul.mubr.bf16.gmra.mrb[0].mxu0 %v2850
        %v2889 = vpop.f32.mrb[0].mxu0
        %v2890 = vadd.f32 0.0, %v2889
        %v2891 = vpop.f32.mrb[0].mxu0
        %v2892 = vpop.f32.mrb[0].mxu0
        %v2893 = vadd.f32 0.0, %v2892
        %v2894 = vpop.f32.mrb[0].mxu0
        %2895 = vdwg.mxu0
        %v2896 = vmul.f32 %v2890, 0.125
        %v2897 = vmul.f32 %v2893, 0.125
        %v2898 = vadd.f32 %v2896, %v1048
        %v2899 = vadd.f32 %v2897, %v1048
        %v2900 = vsel %vm1052, %v2898, -inf
        %2901 = vmax.xlane.f32.xlu0 %v2900
        %v2902 = vpop.xlane.xlu0 %2901
        %v2903 = vsel %vm1052, %v2899, -inf
        %2904 = vmax.xlane.f32.xlu0 %v2903
        %v2905 = vpop.xlane.xlu0 %2904
        %v2906 = vsub.f32 %v2898, %v2902
        %v2907 = vsub.f32 %v2899, %v2905
        %v2908 = vmul.f32 %v2906, 1.442695
        %v2909 = vpow.pop %v2908
        %v2910 = vmul.f32 %v2907, 1.442695
        %v2911 = vpow.pop %v2910
        %v2912 = vsel %vm1052, %v2909, 0.0
        %2913 = vadd.xlane.f32.xlu0 %v2912
        %v2914 = vpop.xlane.xlu0 %2913
        %v2915 = vsel %vm1052, %v2911, 0.0
        %2916 = vadd.xlane.f32.xlu0 %v2915
        %v2917 = vpop.xlane.xlu0 %2916
        %v2918 = vrcp.pop %v2914
        %v2919 = vmul.f32 %v2909, %v2918
        %v2920 = vrcp.pop %v2917
        %v2921 = vmul.f32 %v2911, %v2920
        %v2922 = vpack.c.bf16 %v2921, %v2919
        %2924 = vrot.lane.b32.xlu0 %v2638, 64
        %v2925 = vpop.permute.xlu0 %2924
        %v2928 = vsel %vm1052, %v2922, 0
        %2930 = vmatprep.subr.bf16.mxu0 0
        %2931 = vmatpush1.bf16.msra.mxu0 %v2925
        %2932 = vmatprep.subr.bf16.mxu0 0
        %2933 = vmatpush1.bf16.msra.mxu0 0
        %2934 = vmatprep.subr.bf16.mxu0 0
        %2935 = vmatpush1.bf16.msra.mxu0 0
        %2936 = vmatprep.subr.bf16.mxu0 0
        %2937 = vmatpush1.bf16.msra.mxu0 0
        %2938 = vmatprep.subr.bf16.mxu0 0
        %2939 = vmatpush1.bf16.msra.mxu0 0
        %2940 = vmatprep.subr.bf16.mxu0 0
        %2941 = vmatpush1.bf16.msra.mxu0 0
        %2942 = vmatprep.subr.bf16.mxu0 0
        %2943 = vmatpush1.bf16.msra.mxu0 0
        %2944 = vmatprep.subr.bf16.mxu0 0
        %2945 = vmatpush1.bf16.msra.mxu0 0
        %2946 = vmatprep.subr.bf16.mxu0 0
        %2947 = vmatpush1.bf16.msra.mxu0 0
        %2948 = vmatprep.subr.bf16.mxu0 0
        %2949 = vmatpush1.bf16.msra.mxu0 0
        %2950 = vmatprep.subr.bf16.mxu0 0
        %2951 = vmatpush1.bf16.msra.mxu0 0
        %2952 = vmatprep.subr.bf16.mxu0 0
        %2953 = vmatpush1.bf16.msra.mxu0 0
        %2954 = vmatprep.subr.bf16.mxu0 0
        %2955 = vmatpush1.bf16.msra.mxu0 0
        %2956 = vmatprep.subr.bf16.mxu0 0
        %2957 = vmatpush1.bf16.msra.mxu0 0
        %2958 = vmatprep.subr.bf16.mxu0 0
        %2959 = vmatpush1.bf16.msra.mxu0 0
        %2960 = vmatprep.subr.bf16.mxu0 0
        %2961 = vmatpush1.bf16.msra.mxu0 0
        %2962 = vmatprep.mubr.bf16.mxu0 0
        %2963 = vmatmul.mubr.bf16.gmra.mrb[0].mxu0 %v2928
        %v2964 = vpop.f32.mrb[0].mxu0
        %v2965 = vadd.f32 0.0, %v2964
        %v2966 = vpop.f32.mrb[0].mxu0
        %v2967 = vpop.f32.mrb[0].mxu0
        %v2968 = vadd.f32 0.0, %v2967
        %v2969 = vpop.f32.mrb[0].mxu0
        %2970 = vdwg.mxu0
        %v2971 = vpack.c.bf16 %v2968, %v2965
        %v2972 = vld [vmem:[%s2758 + $0x20] sm:$0xf]
        %v2973 = vld [vmem:[%s2758 + $0x24] sm:$0xf]
        %v2974 = vld [vmem:[%s2758 + $0x28] sm:$0xf]
        %v2975 = vld [vmem:[%s2758 + $0x2c] sm:$0xf]
        %v2976 = vld [vmem:[%s2758 + $0x30] sm:$0xf]
        %v2977 = vld [vmem:[%s2758 + $0x34] sm:$0xf]
        %v2978 = vld [vmem:[%s2758 + $0x38] sm:$0xf]
        %v2979 = vld [vmem:[%s2758 + $0x3c] sm:$0xf]
        %v2988 = vunpack.c.l.b16 %v2972
        %v2989 = vunpack.c.l.b16 %v2973
        %v2990 = vunpack.c.l.b16 %v2974
        %v2991 = vunpack.c.l.b16 %v2975
        %v2992 = vunpack.c.l.b16 %v2976
        %v2993 = vunpack.c.l.b16 %v2977
        %v2994 = vunpack.c.l.b16 %v2978
        %v2995 = vunpack.c.l.b16 %v2979
        %v2996 = vpack.c.b16 %v2989, %v2988
        %v2997 = vpack.c.b16 %v2991, %v2990
        %v2998 = vpack.c.b16 %v2993, %v2992
        %v2999 = vpack.c.b16 %v2995, %v2994
        %v3005 = vsel %vm994, %v2971, 0
        %3007 = vmatprep.subr.bf16.mxu0 0
        %3008 = vmatpush1.bf16.msra.mxu0 %v2996
        %3009 = vmatprep.subr.bf16.mxu0 0
        %3010 = vmatpush1.bf16.msra.mxu0 %v2997
        %3011 = vmatprep.subr.bf16.mxu0 0
        %3012 = vmatpush1.bf16.msra.mxu0 %v2998
        %3013 = vmatprep.subr.bf16.mxu0 0
        %3014 = vmatpush1.bf16.msra.mxu0 %v2999
        %3015 = vmatprep.subr.bf16.mxu0 0
        %3016 = vmatpush1.bf16.msra.mxu0 0
        %3017 = vmatprep.subr.bf16.mxu0 0
        %3018 = vmatpush1.bf16.msra.mxu0 0
        %3019 = vmatprep.subr.bf16.mxu0 0
        %3020 = vmatpush1.bf16.msra.mxu0 0
        %3021 = vmatprep.subr.bf16.mxu0 0
        %3022 = vmatpush1.bf16.msra.mxu0 0
        %3023 = vmatprep.subr.bf16.mxu0 0
        %3024 = vmatpush1.bf16.msra.mxu0 0
        %3025 = vmatprep.subr.bf16.mxu0 0
        %3026 = vmatpush1.bf16.msra.mxu0 0
        %3027 = vmatprep.subr.bf16.mxu0 0
        %3028 = vmatpush1.bf16.msra.mxu0 0
        %3029 = vmatprep.subr.bf16.mxu0 0
        %3030 = vmatpush1.bf16.msra.mxu0 0
        %3031 = vmatprep.subr.bf16.mxu0 0
        %3032 = vmatpush1.bf16.msra.mxu0 0
        %3033 = vmatprep.subr.bf16.mxu0 0
        %3034 = vmatpush1.bf16.msra.mxu0 0
        %3035 = vmatprep.subr.bf16.mxu0 0
        %3036 = vmatpush1.bf16.msra.mxu0 0
        %3037 = vmatprep.subr.bf16.mxu0 0
        %3038 = vmatpush1.bf16.msra.mxu0 0
        %3039 = vmatprep.mubr.bf16.mxu0 0
        %3040 = vmatmul.mubr.bf16.gmra.mrb[0].mxu0 %v3005
        %v3041 = vpop.f32.mrb[0].mxu0
        %v3042 = vadd.f32 0.0, %v3041
        %v3043 = vpop.f32.mrb[0].mxu0
        %v3044 = vpop.f32.mrb[0].mxu0
        %v3045 = vadd.f32 0.0, %v3044
        %v3046 = vpop.f32.mrb[0].mxu0
        %3047 = vdwg.mxu0
        %v3048 = vadd.f32 %v2841, %v3042
        %v3049 = vadd.f32 %v2842, %v3045
        %v3050 = vadd.f32 %v3048, %v2368
        %v3051 = vadd.f32 %v3049, %v2369
        %s3052 = scalar_lea.vmem %s8, 1
        %v3053 = vld [vmem:[%s3052] sm:$0x1]
        %s3054 = scalar_lea.vmem %s9, 1
        %v3055 = vld [vmem:[%s3054] sm:$0x1]
        %3056 = vadd.xlane.f32.xlu0 %v3050
        %v3057 = vpop.xlane.xlu0 %3056
        %3058 = vadd.xlane.f32.xlu0 %v3051
        %v3059 = vpop.xlane.xlu0 %3058
        %v3060 = vmul.f32 %v3057, %v688
        %v3061 = vmul.f32 %v3059, %v688
        %v3062 = vmul.f32 %v3050, %v3050
        %v3063 = vmul.f32 %v3051, %v3051
        %3064 = vadd.xlane.f32.xlu0 %v3062
        %v3065 = vpop.xlane.xlu0 %3064
        %3066 = vadd.xlane.f32.xlu0 %v3063
        %v3067 = vpop.xlane.xlu0 %3066
        %v3068 = vmul.f32 %v3065, %v688
        %v3069 = vmul.f32 %v3067, %v688
        %v3070 = vmul.f32 %v3060, %v3060
        %v3071 = vmul.f32 %v3061, %v3061
        %v3072 = vsub.f32 %v3068, %v3070
        %v3073 = vsub.f32 %v3069, %v3071
        %v3074 = vsub.f32 %v3050, %v3060
        %v3075 = vsub.f32 %v3051, %v3061
        %v3076 = vadd.f32 %v3072, 1e-12
        %v3077 = vadd.f32 %v3073, 1e-12
        %v3078 = vrsqrt.pop %v3076
        %v3079 = vrsqrt.pop %v3077
        %v3080 = vmul.f32 %v3074, %v3078
        %v3081 = vmul.f32 %v3075, %v3079
        %v3083 = vlaneseq
        %v3084 = vshrl.u32 %v3083, 7
        %v3085 = vsub.s32 0, %v3084
        %v3086 = vrot.slane %v3053, %v3085
        %v3088 = vmul.f32 %v3080, %v3086
        %v3089 = vmul.f32 %v3081, %v3086
        %v3091 = vlaneseq
        %v3092 = vshrl.u32 %v3091, 7
        %v3093 = vsub.s32 0, %v3092
        %v3094 = vrot.slane %v3055, %v3093
        %v3096 = vadd.f32 %v3088, %v3094
        %v3097 = vadd.f32 %v3089, %v3094
        %v3098 = vpack.c.bf16 %v3097, %v3096
        %s3099 = scalar_lea.vmem %s10, 256
        %v3100 = vld [vmem:[%s3099] sm:$0xff]
        %v3101 = vld [vmem:[%s3099 + $0x8] sm:$0xff]
        %v3102 = vld [vmem:[%s3099 + $0x10] sm:$0xff]
        %v3103 = vld [vmem:[%s3099 + $0x18] sm:$0xff]
        %v3104 = vld [vmem:[%s3099 + $0x20] sm:$0xff]
        %v3105 = vld [vmem:[%s3099 + $0x28] sm:$0xff]
        %v3106 = vld [vmem:[%s3099 + $0x30] sm:$0xff]
        %v3107 = vld [vmem:[%s3099 + $0x38] sm:$0xff]
        %v3108 = vld [vmem:[%s3099 + $0x40] sm:$0xff]
        %v3109 = vld [vmem:[%s3099 + $0x48] sm:$0xff]
        %v3110 = vld [vmem:[%s3099 + $0x50] sm:$0xff]
        %v3111 = vld [vmem:[%s3099 + $0x58] sm:$0xff]
        %v3112 = vld [vmem:[%s3099 + $0x60] sm:$0xff]
        %v3113 = vld [vmem:[%s3099 + $0x68] sm:$0xff]
        %v3114 = vld [vmem:[%s3099 + $0x70] sm:$0xff]
        %v3115 = vld [vmem:[%s3099 + $0x78] sm:$0xff]
        %v3116 = vld [vmem:[%s3099 + $0x80] sm:$0xff]
        %v3117 = vld [vmem:[%s3099 + $0x88] sm:$0xff]
        %v3118 = vld [vmem:[%s3099 + $0x90] sm:$0xff]
        %v3119 = vld [vmem:[%s3099 + $0x98] sm:$0xff]
        %v3120 = vld [vmem:[%s3099 + $0xa0] sm:$0xff]
        %v3121 = vld [vmem:[%s3099 + $0xa8] sm:$0xff]
        %v3122 = vld [vmem:[%s3099 + $0xb0] sm:$0xff]
        %v3123 = vld [vmem:[%s3099 + $0xb8] sm:$0xff]
        %v3124 = vld [vmem:[%s3099 + $0xc0] sm:$0xff]
        %v3125 = vld [vmem:[%s3099 + $0xc8] sm:$0xff]
        %v3126 = vld [vmem:[%s3099 + $0xd0] sm:$0xff]
        %v3127 = vld [vmem:[%s3099 + $0xd8] sm:$0xff]
        %v3128 = vld [vmem:[%s3099 + $0xe0] sm:$0xff]
        %v3129 = vld [vmem:[%s3099 + $0xe8] sm:$0xff]
        %v3130 = vld [vmem:[%s3099 + $0xf0] sm:$0xff]
        %v3131 = vld [vmem:[%s3099 + $0xf8] sm:$0xff]
        %s3132 = scalar_lea.vmem %s11, 4
        %v3133 = vld [vmem:[%s3132] sm:$0xf]
        %v3135 = vlaneseq
        %v3136 = vshrl.u32 %v3135, 7
        %v3137 = vsub.s32 0, %v3136
        %v3138 = vrot.slane %v3133, %v3137
        %v3139 = vlaneseq
        %v3140 = vshrl.u32 %v3139, 7
        %v3141 = vsub.s32 1, %v3140
        %v3142 = vrot.slane %v3133, %v3141
        %v3143 = vlaneseq
        %v3144 = vshrl.u32 %v3143, 7
        %v3145 = vsub.s32 2, %v3144
        %v3146 = vrot.slane %v3133, %v3145
        %v3147 = vlaneseq
        %v3148 = vshrl.u32 %v3147, 7
        %v3149 = vsub.s32 3, %v3148
        %v3150 = vrot.slane %v3133, %v3149
        %v3187 = vunpack.c.l.b16 %v3100
        %v3188 = vunpack.c.h.b16 %v3100
        %v3189 = vunpack.c.l.b16 %v3101
        %v3190 = vunpack.c.h.b16 %v3101
        %v3191 = vunpack.c.l.b16 %v3102
        %v3192 = vunpack.c.h.b16 %v3102
        %v3193 = vunpack.c.l.b16 %v3103
        %v3194 = vunpack.c.h.b16 %v3103
        %v3195 = vunpack.c.l.b16 %v3104
        %v3196 = vunpack.c.h.b16 %v3104
        %v3197 = vunpack.c.l.b16 %v3105
        %v3198 = vunpack.c.h.b16 %v3105
        %v3199 = vunpack.c.l.b16 %v3106
        %v3200 = vunpack.c.h.b16 %v3106
        %v3201 = vunpack.c.l.b16 %v3107
        %v3202 = vunpack.c.h.b16 %v3107
        %v3203 = vunpack.c.l.b16 %v3108
        %v3204 = vunpack.c.h.b16 %v3108
        %v3205 = vunpack.c.l.b16 %v3109
        %v3206 = vunpack.c.h.b16 %v3109
        %v3207 = vunpack.c.l.b16 %v3110
        %v3208 = vunpack.c.h.b16 %v3110
        %v3209 = vunpack.c.l.b16 %v3111
        %v3210 = vunpack.c.h.b16 %v3111
        %v3211 = vunpack.c.l.b16 %v3112
        %v3212 = vunpack.c.h.b16 %v3112
        %v3213 = vunpack.c.l.b16 %v3113
        %v3214 = vunpack.c.h.b16 %v3113
        %v3215 = vunpack.c.l.b16 %v3114
        %v3216 = vunpack.c.h.b16 %v3114
        %v3217 = vunpack.c.l.b16 %v3115
        %v3218 = vunpack.c.h.b16 %v3115
        %v3219 = vunpack.c.l.b16 %v3116
        %v3220 = vunpack.c.h.b16 %v3116
        %v3221 = vunpack.c.l.b16 %v3117
        %v3222 = vunpack.c.h.b16 %v3117
        %v3223 = vunpack.c.l.b16 %v3118
        %v3224 = vunpack.c.h.b16 %v3118
        %v3225 = vunpack.c.l.b16 %v3119
        %v3226 = vunpack.c.h.b16 %v3119
        %v3227 = vunpack.c.l.b16 %v3120
        %v3228 = vunpack.c.h.b16 %v3120
        %v3229 = vunpack.c.l.b16 %v3121
        %v3230 = vunpack.c.h.b16 %v3121
        %v3231 = vunpack.c.l.b16 %v3122
        %v3232 = vunpack.c.h.b16 %v3122
        %v3233 = vunpack.c.l.b16 %v3123
        %v3234 = vunpack.c.h.b16 %v3123
        %v3235 = vunpack.c.l.b16 %v3124
        %v3236 = vunpack.c.h.b16 %v3124
        %v3237 = vunpack.c.l.b16 %v3125
        %v3238 = vunpack.c.h.b16 %v3125
        %v3239 = vunpack.c.l.b16 %v3126
        %v3240 = vunpack.c.h.b16 %v3126
        %v3241 = vunpack.c.l.b16 %v3127
        %v3242 = vunpack.c.h.b16 %v3127
        %v3243 = vunpack.c.l.b16 %v3128
        %v3244 = vunpack.c.h.b16 %v3128
        %v3245 = vunpack.c.l.b16 %v3129
        %v3246 = vunpack.c.h.b16 %v3129
        %v3247 = vunpack.c.l.b16 %v3130
        %v3248 = vunpack.c.h.b16 %v3130
        %v3249 = vunpack.c.l.b16 %v3131
        %v3250 = vunpack.c.h.b16 %v3131
        %v3251 = vpack.c.b16 %v3191, %v3187
        %v3252 = vpack.c.b16 %v3192, %v3188
        %v3253 = vpack.c.b16 %v3193, %v3189
        %v3254 = vpack.c.b16 %v3194, %v3190
        %v3255 = vpack.c.b16 %v3199, %v3195
        %v3256 = vpack.c.b16 %v3200, %v3196
        %v3257 = vpack.c.b16 %v3201, %v3197
        %v3258 = vpack.c.b16 %v3202, %v3198
        %v3259 = vpack.c.b16 %v3207, %v3203
        %v3260 = vpack.c.b16 %v3208, %v3204
        %v3261 = vpack.c.b16 %v3209, %v3205
        %v3262 = vpack.c.b16 %v3210, %v3206
        %v3263 = vpack.c.b16 %v3215, %v3211
        %v3264 = vpack.c.b16 %v3216, %v3212
        %v3265 = vpack.c.b16 %v3217, %v3213
        %v3266 = vpack.c.b16 %v3218, %v3214
        %v3267 = vpack.c.b16 %v3223, %v3219
        %v3268 = vpack.c.b16 %v3224, %v3220
        %v3269 = vpack.c.b16 %v3225, %v3221
        %v3270 = vpack.c.b16 %v3226, %v3222
        %v3271 = vpack.c.b16 %v3231, %v3227
        %v3272 = vpack.c.b16 %v3232, %v3228
        %v3273 = vpack.c.b16 %v3233, %v3229
        %v3274 = vpack.c.b16 %v3234, %v3230
        %v3275 = vpack.c.b16 %v3239, %v3235
        %v3276 = vpack.c.b16 %v3240, %v3236
        %v3277 = vpack.c.b16 %v3241, %v3237
        %v3278 = vpack.c.b16 %v3242, %v3238
        %v3279 = vpack.c.b16 %v3247, %v3243
        %v3280 = vpack.c.b16 %v3248, %v3244
        %v3281 = vpack.c.b16 %v3249, %v3245
        %v3282 = vpack.c.b16 %v3250, %v3246
        %3315 = vmatprep.subr.bf16.mxu0 %v3252
        %3316 = vmatpush1.bf16.msra.mxu0 %v3251
        %3317 = vmatprep.subr.bf16.mxu0 %v3256
        %3318 = vmatpush1.bf16.msra.mxu0 %v3255
        %3319 = vmatprep.subr.bf16.mxu0 %v3260
        %3320 = vmatpush1.bf16.msra.mxu0 %v3259
        %3321 = vmatprep.subr.bf16.mxu0 %v3264
        %3322 = vmatpush1.bf16.msra.mxu0 %v3263
        %3323 = vmatprep.subr.bf16.mxu0 %v3268
        %3324 = vmatpush1.bf16.msra.mxu0 %v3267
        %3325 = vmatprep.subr.bf16.mxu0 %v3272
        %3326 = vmatpush1.bf16.msra.mxu0 %v3271
        %3327 = vmatprep.subr.bf16.mxu0 %v3276
        %3328 = vmatpush1.bf16.msra.mxu0 %v3275
        %3329 = vmatprep.subr.bf16.mxu0 %v3280
        %3330 = vmatpush1.bf16.msra.mxu0 %v3279
        %3331 = vmatprep.subr.bf16.mxu0 0
        %3332 = vmatpush1.bf16.msra.mxu0 0
        %3333 = vmatprep.subr.bf16.mxu0 0
        %3334 = vmatpush1.bf16.msra.mxu0 0
        %3335 = vmatprep.subr.bf16.mxu0 0
        %3336 = vmatpush1.bf16.msra.mxu0 0
        %3337 = vmatprep.subr.bf16.mxu0 0
        %3338 = vmatpush1.bf16.msra.mxu0 0
        %3339 = vmatprep.subr.bf16.mxu0 0
        %3340 = vmatpush1.bf16.msra.mxu0 0
        %3341 = vmatprep.subr.bf16.mxu0 0
        %3342 = vmatpush1.bf16.msra.mxu0 0
        %3343 = vmatprep.subr.bf16.mxu0 0
        %3344 = vmatpush1.bf16.msra.mxu0 0
        %3345 = vmatprep.subr.bf16.mxu0 0
        %3346 = vmatpush1.bf16.msra.mxu0 0
        %3347 = vmatprep.mubr.bf16.mxu0 0
        %3348 = vmatmul.mubr.bf16.gmra.mrb[0].mxu0 %v3098
        %v3349 = vpop.f32.mrb[0].mxu0
        %v3350 = vadd.f32 %v3138, %v3349
        %v3351 = vpop.f32.mrb[0].mxu0
        %v3352 = vadd.f32 %v3142, %v3351
        %v3353 = vpop.f32.mrb[0].mxu0
        %v3354 = vadd.f32 %v3138, %v3353
        %v3355 = vpop.f32.mrb[0].mxu0
        %v3356 = vadd.f32 %v3142, %v3355
        %3357 = vdwg.mxu0
        %3358 = vmatprep.subr.bf16.mxu0 %v3254
        %3359 = vmatpush1.bf16.msra.mxu0 %v3253
        %3360 = vmatprep.subr.bf16.mxu0 %v3258
        %3361 = vmatpush1.bf16.msra.mxu0 %v3257
        %3362 = vmatprep.subr.bf16.mxu0 %v3262
        %3363 = vmatpush1.bf16.msra.mxu0 %v3261
        %3364 = vmatprep.subr.bf16.mxu0 %v3266
        %3365 = vmatpush1.bf16.msra.mxu0 %v3265
        %3366 = vmatprep.subr.bf16.mxu0 %v3270
        %3367 = vmatpush1.bf16.msra.mxu0 %v3269
        %3368 = vmatprep.subr.bf16.mxu0 %v3274
        %3369 = vmatpush1.bf16.msra.mxu0 %v3273
        %3370 = vmatprep.subr.bf16.mxu0 %v3278
        %3371 = vmatpush1.bf16.msra.mxu0 %v3277
        %3372 = vmatprep.subr.bf16.mxu0 %v3282
        %3373 = vmatpush1.bf16.msra.mxu0 %v3281
        %3374 = vmatprep.subr.bf16.mxu0 0
        %3375 = vmatpush1.bf16.msra.mxu0 0
        %3376 = vmatprep.subr.bf16.mxu0 0
        %3377 = vmatpush1.bf16.msra.mxu0 0
        %3378 = vmatprep.subr.bf16.mxu0 0
        %3379 = vmatpush1.bf16.msra.mxu0 0
        %3380 = vmatprep.subr.bf16.mxu0 0
        %3381 = vmatpush1.bf16.msra.mxu0 0
        %3382 = vmatprep.subr.bf16.mxu0 0
        %3383 = vmatpush1.bf16.msra.mxu0 0
        %3384 = vmatprep.subr.bf16.mxu0 0
        %3385 = vmatpush1.bf16.msra.mxu0 0
        %3386 = vmatprep.subr.bf16.mxu0 0
        %3387 = vmatpush1.bf16.msra.mxu0 0
        %3388 = vmatprep.subr.bf16.mxu0 0
        %3389 = vmatpush1.bf16.msra.mxu0 0
        %3390 = vmatprep.mubr.bf16.mxu0 0
        %3391 = vmatmul.mubr.bf16.gmra.mrb[0].mxu0 %v3098
        %v3392 = vpop.f32.mrb[0].mxu0
        %v3393 = vadd.f32 %v3146, %v3392
        %v3394 = vpop.f32.mrb[0].mxu0
        %v3395 = vadd.f32 %v3150, %v3394
        %v3396 = vpop.f32.mrb[0].mxu0
        %v3397 = vadd.f32 %v3146, %v3396
        %v3398 = vpop.f32.mrb[0].mxu0
        %v3399 = vadd.f32 %v3150, %v3398
        %3400 = vdwg.mxu0
        %v3401 = vmul.f32 %v3350, 0.5
        %v3402 = vmul.f32 %v3352, 0.5
        %v3403 = vmul.f32 %v3393, 0.5
        %v3404 = vmul.f32 %v3395, 0.5
        %v3405 = vmul.f32 %v3354, 0.5
        %v3406 = vmul.f32 %v3356, 0.5
        %v3407 = vmul.f32 %v3397, 0.5
        %v3408 = vmul.f32 %v3399, 0.5
        %v3409 = vmul.f32 %v3350, 0.70710677
        %v3410 = vmul.f32 %v3352, 0.70710677
        %v3411 = vmul.f32 %v3393, 0.70710677
        %v3412 = vmul.f32 %v3395, 0.70710677
        %v3413 = vmul.f32 %v3354, 0.70710677
        %v3414 = vmul.f32 %v3356, 0.70710677
        %v3415 = vmul.f32 %v3397, 0.70710677
        %v3416 = vmul.f32 %v3399, 0.70710677
        %v3417 = vand.u32 2147483647, %v3409
        %v3418 = vand.u32 2147483647, %v3410
        %v3419 = vand.u32 2147483647, %v3411
        %v3420 = vand.u32 2147483647, %v3412
        %v3421 = vand.u32 2147483647, %v3413
        %v3422 = vand.u32 2147483647, %v3414
        %v3423 = vand.u32 2147483647, %v3415
        %v3424 = vand.u32 2147483647, %v3416
        %v3425 = vmul.f32 %v3417, 0.3275911
        %v3426 = vmul.f32 %v3418, 0.3275911
        %v3427 = vmul.f32 %v3419, 0.3275911
        %v3428 = vmul.f32 %v3420, 0.3275911
        %v3429 = vmul.f32 %v3421, 0.3275911
        %v3430 = vmul.f32 %v3422, 0.3275911
        %v3431 = vmul.f32 %v3423, 0.3275911
        %v3432 = vmul.f32 %v3424, 0.3275911
        %v3433 = vadd.f32 %v3425, 1.0
        %v3434 = vadd.f32 %v3426, 1.0
        %v3435 = vadd.f32 %v3427, 1.0
        %v3436 = vadd.f32 %v3428, 1.0
        %v3437 = vadd.f32 %v3429, 1.0
        %v3438 = vadd.f32 %v3430, 1.0
        %v3439 = vadd.f32 %v3431, 1.0
        %v3440 = vadd.f32 %v3432, 1.0
        %v3441 = vrcp.pop %v3433
        %v3442 = vmul.f32 1.0, %v3441
        %v3443 = vrcp.pop %v3434
        %v3444 = vmul.f32 1.0, %v3443
        %v3445 = vrcp.pop %v3435
        %v3446 = vmul.f32 1.0, %v3445
        %v3447 = vrcp.pop %v3436
        %v3448 = vmul.f32 1.0, %v3447
        %v3449 = vrcp.pop %v3437
        %v3450 = vmul.f32 1.0, %v3449
        %v3451 = vrcp.pop %v3438
        %v3452 = vmul.f32 1.0, %v3451
        %v3453 = vrcp.pop %v3439
        %v3454 = vmul.f32 1.0, %v3453
        %v3455 = vrcp.pop %v3440
        %v3456 = vmul.f32 1.0, %v3455
        %v3457 = vmul.f32 %v3442, 1.0614054
        %v3458 = vmul.f32 %v3444, 1.0614054
        %v3459 = vmul.f32 %v3446, 1.0614054
        %v3460 = vmul.f32 %v3448, 1.0614054
        %v3461 = vmul.f32 %v3450, 1.0614054
        %v3462 = vmul.f32 %v3452, 1.0614054
        %v3463 = vmul.f32 %v3454, 1.0614054
        %v3464 = vmul.f32 %v3456, 1.0614054
        %v3465 = vadd.f32 %v3457, -1.4531521
        %v3466 = vadd.f32 %v3458, -1.4531521
        %v3467 = vadd.f32 %v3459, -1.4531521
        %v3468 = vadd.f32 %v3460, -1.4531521
        %v3469 = vadd.f32 %v3461, -1.4531521
        %v3470 = vadd.f32 %v3462, -1.4531521
        %v3471 = vadd.f32 %v3463, -1.4531521
        %v3472 = vadd.f32 %v3464, -1.4531521
        %v3473 = vmul.f32 %v3465, %v3442
        %v3474 = vmul.f32 %v3466, %v3444
        %v3475 = vmul.f32 %v3467, %v3446
        %v3476 = vmul.f32 %v3468, %v3448
        %v3477 = vmul.f32 %v3469, %v3450
        %v3478 = vmul.f32 %v3470, %v3452
        %v3479 = vmul.f32 %v3471, %v3454
        %v3480 = vmul.f32 %v3472, %v3456
        %v3481 = vadd.f32 %v3473, 1.4214138
        %v3482 = vadd.f32 %v3474, 1.4214138
        %v3483 = vadd.f32 %v3475, 1.4214138
        %v3484 = vadd.f32 %v3476, 1.4214138
        %v3485 = vadd.f32 %v3477, 1.4214138
        %v3486 = vadd.f32 %v3478, 1.4214138
        %v3487 = vadd.f32 %v3479, 1.4214138
        %v3488 = vadd.f32 %v3480, 1.4214138
        %v3489 = vmul.f32 %v3481, %v3442
        %v3490 = vmul.f32 %v3482, %v3444
        %v3491 = vmul.f32 %v3483, %v3446
        %v3492 = vmul.f32 %v3484, %v3448
        %v3493 = vmul.f32 %v3485, %v3450
        %v3494 = vmul.f32 %v3486, %v3452
        %v3495 = vmul.f32 %v3487, %v3454
        %v3496 = vmul.f32 %v3488, %v3456
        %v3497 = vadd.f32 %v3489, -0.28449672
        %v3498 = vadd.f32 %v3490, -0.28449672
        %v3499 = vadd.f32 %v3491, -0.28449672
        %v3500 = vadd.f32 %v3492, -0.28449672
        %v3501 = vadd.f32 %v3493, -0.28449672
        %v3502 = vadd.f32 %v3494, -0.28449672
        %v3503 = vadd.f32 %v3495, -0.28449672
        %v3504 = vadd.f32 %v3496, -0.28449672
        %v3505 = vmul.f32 %v3497, %v3442
        %v3506 = vmul.f32 %v3498, %v3444
        %v3507 = vmul.f32 %v3499, %v3446
        %v3508 = vmul.f32 %v3500, %v3448
        %v3509 = vmul.f32 %v3501, %v3450
        %v3510 = vmul.f32 %v3502, %v3452
        %v3511 = vmul.f32 %v3503, %v3454
        %v3512 = vmul.f32 %v3504, %v3456
        %v3513 = vadd.f32 %v3505, 0.2548296
        %v3514 = vadd.f32 %v3506, 0.2548296
        %v3515 = vadd.f32 %v3507, 0.2548296
        %v3516 = vadd.f32 %v3508, 0.2548296
        %v3517 = vadd.f32 %v3509, 0.2548296
        %v3518 = vadd.f32 %v3510, 0.2548296
        %v3519 = vadd.f32 %v3511, 0.2548296
        %v3520 = vadd.f32 %v3512, 0.2548296
        %v3521 = vmul.f32 %v3513, %v3442
        %v3522 = vmul.f32 %v3514, %v3444
        %v3523 = vmul.f32 %v3515, %v3446
        %v3524 = vmul.f32 %v3516, %v3448
        %v3525 = vmul.f32 %v3517, %v3450
        %v3526 = vmul.f32 %v3518, %v3452
        %v3527 = vmul.f32 %v3519, %v3454
        %v3528 = vmul.f32 %v3520, %v3456
        %v3529 = vsub.f32 0.0, %v3417
        %v3530 = vsub.f32 0.0, %v3418
        %v3531 = vsub.f32 0.0, %v3419
        %v3532 = vsub.f32 0.0, %v3420
        %v3533 = vsub.f32 0.0, %v3421
        %v3534 = vsub.f32 0.0, %v3422
        %v3535 = vsub.f32 0.0, %v3423
        %v3536 = vsub.f32 0.0, %v3424
        %v3537 = vmul.f32 %v3529, %v3417
        %v3538 = vmul.f32 %v3530, %v3418
        %v3539 = vmul.f32 %v3531, %v3419
        %v3540 = vmul.f32 %v3532, %v3420
        %v3541 = vmul.f32 %v3533, %v3421
        %v3542 = vmul.f32 %v3534, %v3422
        %v3543 = vmul.f32 %v3535, %v3423
        %v3544 = vmul.f32 %v3536, %v3424
        %v3545 = vmul.f32 %v3537, 1.442695
        %v3546 = vpow.pop %v3545
        %v3547 = vmul.f32 %v3538, 1.442695
        %v3548 = vpow.pop %v3547
        %v3549 = vmul.f32 %v3539, 1.442695
        %v3550 = vpow.pop %v3549
        %v3551 = vmul.f32 %v3540, 1.442695
        %v3552 = vpow.pop %v3551
        %v3553 = vmul.f32 %v3541, 1.442695
        %v3554 = vpow.pop %v3553
        %v3555 = vmul.f32 %v3542, 1.442695
        %v3556 = vpow.pop %v3555
        %v3557 = vmul.f32 %v3543, 1.442695
        %v3558 = vpow.pop %v3557
        %v3559 = vmul.f32 %v3544, 1.442695
        %v3560 = vpow.pop %v3559
        %v3561 = vmul.f32 %v3521, %v3546
        %v3562 = vmul.f32 %v3522, %v3548
        %v3563 = vmul.f32 %v3523, %v3550
        %v3564 = vmul.f32 %v3524, %v3552
        %v3565 = vmul.f32 %v3525, %v3554
        %v3566 = vmul.f32 %v3526, %v3556
        %v3567 = vmul.f32 %v3527, %v3558
        %v3568 = vmul.f32 %v3528, %v3560
        %v3569 = vsub.f32 1.0, %v3561
        %v3570 = vsub.f32 1.0, %v3562
        %v3571 = vsub.f32 1.0, %v3563
        %v3572 = vsub.f32 1.0, %v3564
        %v3573 = vsub.f32 1.0, %v3565
        %v3574 = vsub.f32 1.0, %v3566
        %v3575 = vsub.f32 1.0, %v3567
        %v3576 = vsub.f32 1.0, %v3568
        %vm3577 = vcmp.lt.f32.partialorder %v3409, 0.0
        %vm3578 = vcmp.lt.f32.partialorder %v3410, 0.0
        %vm3579 = vcmp.lt.f32.partialorder %v3411, 0.0
        %vm3580 = vcmp.lt.f32.partialorder %v3412, 0.0
        %vm3581 = vcmp.lt.f32.partialorder %v3413, 0.0
        %vm3582 = vcmp.lt.f32.partialorder %v3414, 0.0
        %vm3583 = vcmp.lt.f32.partialorder %v3415, 0.0
        %vm3584 = vcmp.lt.f32.partialorder %v3416, 0.0
        %v3585 = vsub.f32 0.0, %v3569
        %v3586 = vsub.f32 0.0, %v3570
        %v3587 = vsub.f32 0.0, %v3571
        %v3588 = vsub.f32 0.0, %v3572
        %v3589 = vsub.f32 0.0, %v3573
        %v3590 = vsub.f32 0.0, %v3574
        %v3591 = vsub.f32 0.0, %v3575
        %v3592 = vsub.f32 0.0, %v3576
        %v3593 = vsel %vm3577, %v3585, %v3569
        %v3594 = vsel %vm3578, %v3586, %v3570
        %v3595 = vsel %vm3579, %v3587, %v3571
        %v3596 = vsel %vm3580, %v3588, %v3572
        %v3597 = vsel %vm3581, %v3589, %v3573
        %v3598 = vsel %vm3582, %v3590, %v3574
        %v3599 = vsel %vm3583, %v3591, %v3575
        %v3600 = vsel %vm3584, %v3592, %v3576
        %v3601 = vadd.f32 %v3593, 1.0
        %v3602 = vadd.f32 %v3594, 1.0
        %v3603 = vadd.f32 %v3595, 1.0
        %v3604 = vadd.f32 %v3596, 1.0
        %v3605 = vadd.f32 %v3597, 1.0
        %v3606 = vadd.f32 %v3598, 1.0
        %v3607 = vadd.f32 %v3599, 1.0
        %v3608 = vadd.f32 %v3600, 1.0
        %v3609 = vmul.f32 %v3401, %v3601
        %v3610 = vmul.f32 %v3402, %v3602
        %v3611 = vmul.f32 %v3403, %v3603
        %v3612 = vmul.f32 %v3404, %v3604
        %v3613 = vmul.f32 %v3405, %v3605
        %v3614 = vmul.f32 %v3406, %v3606
        %v3615 = vmul.f32 %v3407, %v3607
        %v3616 = vmul.f32 %v3408, %v3608
        %v3617 = vpack.c.bf16 %v3613, %v3609
        %v3618 = vpack.c.bf16 %v3614, %v3610
        %v3619 = vpack.c.bf16 %v3615, %v3611
        %v3620 = vpack.c.bf16 %v3616, %v3612
        %s3621 = scalar_lea.vmem [#allocation6], 256
        %v3622 = vld [vmem:[%s3621] sm:$0xf]
        %v3623 = vld [vmem:[%s3621 + $0x4] sm:$0xf]
        %v3624 = vld [vmem:[%s3621 + $0x8] sm:$0xf]
        %v3625 = vld [vmem:[%s3621 + $0xc] sm:$0xf]
        %v3626 = vld [vmem:[%s3621 + $0x10] sm:$0xf]
        %v3627 = vld [vmem:[%s3621 + $0x14] sm:$0xf]
        %v3628 = vld [vmem:[%s3621 + $0x18] sm:$0xf]
        %v3629 = vld [vmem:[%s3621 + $0x1c] sm:$0xf]
        %v3630 = vld [vmem:[%s3621 + $0x20] sm:$0xf]
        %v3631 = vld [vmem:[%s3621 + $0x24] sm:$0xf]
        %v3632 = vld [vmem:[%s3621 + $0x28] sm:$0xf]
        %v3633 = vld [vmem:[%s3621 + $0x2c] sm:$0xf]
        %v3634 = vld [vmem:[%s3621 + $0x30] sm:$0xf]
        %v3635 = vld [vmem:[%s3621 + $0x34] sm:$0xf]
        %v3636 = vld [vmem:[%s3621 + $0x38] sm:$0xf]
        %v3637 = vld [vmem:[%s3621 + $0x3c] sm:$0xf]
        %v3638 = vld [vmem:[%s3621 + $0x40] sm:$0xf]
        %v3639 = vld [vmem:[%s3621 + $0x44] sm:$0xf]
        %v3640 = vld [vmem:[%s3621 + $0x48] sm:$0xf]
        %v3641 = vld [vmem:[%s3621 + $0x4c] sm:$0xf]
        %v3642 = vld [vmem:[%s3621 + $0x50] sm:$0xf]
        %v3643 = vld [vmem:[%s3621 + $0x54] sm:$0xf]
        %v3644 = vld [vmem:[%s3621 + $0x58] sm:$0xf]
        %v3645 = vld [vmem:[%s3621 + $0x5c] sm:$0xf]
        %v3646 = vld [vmem:[%s3621 + $0x60] sm:$0xf]
        %v3647 = vld [vmem:[%s3621 + $0x64] sm:$0xf]
        %v3648 = vld [vmem:[%s3621 + $0x68] sm:$0xf]
        %v3649 = vld [vmem:[%s3621 + $0x6c] sm:$0xf]
        %v3650 = vld [vmem:[%s3621 + $0x70] sm:$0xf]
        %v3651 = vld [vmem:[%s3621 + $0x74] sm:$0xf]
        %v3652 = vld [vmem:[%s3621 + $0x78] sm:$0xf]
        %v3653 = vld [vmem:[%s3621 + $0x7c] sm:$0xf]
        %v3654 = vld [vmem:[%s3621 + $0x80] sm:$0xf]
        %v3655 = vld [vmem:[%s3621 + $0x84] sm:$0xf]
        %v3656 = vld [vmem:[%s3621 + $0x88] sm:$0xf]
        %v3657 = vld [vmem:[%s3621 + $0x8c] sm:$0xf]
        %v3658 = vld [vmem:[%s3621 + $0x90] sm:$0xf]
        %v3659 = vld [vmem:[%s3621 + $0x94] sm:$0xf]
        %v3660 = vld [vmem:[%s3621 + $0x98] sm:$0xf]
        %v3661 = vld [vmem:[%s3621 + $0x9c] sm:$0xf]
        %v3662 = vld [vmem:[%s3621 + $0xa0] sm:$0xf]
        %v3663 = vld [vmem:[%s3621 + $0xa4] sm:$0xf]
        %v3664 = vld [vmem:[%s3621 + $0xa8] sm:$0xf]
        %v3665 = vld [vmem:[%s3621 + $0xac] sm:$0xf]
        %v3666 = vld [vmem:[%s3621 + $0xb0] sm:$0xf]
        %v3667 = vld [vmem:[%s3621 + $0xb4] sm:$0xf]
        %v3668 = vld [vmem:[%s3621 + $0xb8] sm:$0xf]
        %v3669 = vld [vmem:[%s3621 + $0xbc] sm:$0xf]
        %v3670 = vld [vmem:[%s3621 + $0xc0] sm:$0xf]
        %v3671 = vld [vmem:[%s3621 + $0xc4] sm:$0xf]
        %v3672 = vld [vmem:[%s3621 + $0xc8] sm:$0xf]
        %v3673 = vld [vmem:[%s3621 + $0xcc] sm:$0xf]
        %v3674 = vld [vmem:[%s3621 + $0xd0] sm:$0xf]
        %v3675 = vld [vmem:[%s3621 + $0xd4] sm:$0xf]
        %v3676 = vld [vmem:[%s3621 + $0xd8] sm:$0xf]
        %v3677 = vld [vmem:[%s3621 + $0xdc] sm:$0xf]
        %v3678 = vld [vmem:[%s3621 + $0xe0] sm:$0xf]
        %v3679 = vld [vmem:[%s3621 + $0xe4] sm:$0xf]
        %v3680 = vld [vmem:[%s3621 + $0xe8] sm:$0xf]
        %v3681 = vld [vmem:[%s3621 + $0xec] sm:$0xf]
        %v3682 = vld [vmem:[%s3621 + $0xf0] sm:$0xf]
        %v3683 = vld [vmem:[%s3621 + $0xf4] sm:$0xf]
        %v3684 = vld [vmem:[%s3621 + $0xf8] sm:$0xf]
        %v3685 = vld [vmem:[%s3621 + $0xfc] sm:$0xf]
        %s3686 = scalar_lea.vmem %s13, 1
        %v3687 = vld [vmem:[%s3686] sm:$0x1]
        %v3689 = vlaneseq
        %v3690 = vshrl.u32 %v3689, 7
        %v3691 = vsub.s32 0, %v3690
        %v3692 = vrot.slane %v3687, %v3691
        %v3758 = vunpack.c.l.b16 %v3622
        %v3759 = vunpack.c.l.b16 %v3623
        %v3760 = vunpack.c.l.b16 %v3624
        %v3761 = vunpack.c.l.b16 %v3625
        %v3762 = vunpack.c.l.b16 %v3626
        %v3763 = vunpack.c.l.b16 %v3627
        %v3764 = vunpack.c.l.b16 %v3628
        %v3765 = vunpack.c.l.b16 %v3629
        %v3766 = vunpack.c.l.b16 %v3630
        %v3767 = vunpack.c.l.b16 %v3631
        %v3768 = vunpack.c.l.b16 %v3632
        %v3769 = vunpack.c.l.b16 %v3633
        %v3770 = vunpack.c.l.b16 %v3634
        %v3771 = vunpack.c.l.b16 %v3635
        %v3772 = vunpack.c.l.b16 %v3636
        %v3773 = vunpack.c.l.b16 %v3637
        %v3774 = vunpack.c.l.b16 %v3638
        %v3775 = vunpack.c.l.b16 %v3639
        %v3776 = vunpack.c.l.b16 %v3640
        %v3777 = vunpack.c.l.b16 %v3641
        %v3778 = vunpack.c.l.b16 %v3642
        %v3779 = vunpack.c.l.b16 %v3643
        %v3780 = vunpack.c.l.b16 %v3644
        %v3781 = vunpack.c.l.b16 %v3645
        %v3782 = vunpack.c.l.b16 %v3646
        %v3783 = vunpack.c.l.b16 %v3647
        %v3784 = vunpack.c.l.b16 %v3648
        %v3785 = vunpack.c.l.b16 %v3649
        %v3786 = vunpack.c.l.b16 %v3650
        %v3787 = vunpack.c.l.b16 %v3651
        %v3788 = vunpack.c.l.b16 %v3652
        %v3789 = vunpack.c.l.b16 %v3653
        %v3790 = vunpack.c.l.b16 %v3654
        %v3791 = vunpack.c.l.b16 %v3655
        %v3792 = vunpack.c.l.b16 %v3656
        %v3793 = vunpack.c.l.b16 %v3657
        %v3794 = vunpack.c.l.b16 %v3658
        %v3795 = vunpack.c.l.b16 %v3659
        %v3796 = vunpack.c.l.b16 %v3660
        %v3797 = vunpack.c.l.b16 %v3661
        %v3798 = vunpack.c.l.b16 %v3662
        %v3799 = vunpack.c.l.b16 %v3663
        %v3800 = vunpack.c.l.b16 %v3664
        %v3801 = vunpack.c.l.b16 %v3665
        %v3802 = vunpack.c.l.b16 %v3666
        %v3803 = vunpack.c.l.b16 %v3667
        %v3804 = vunpack.c.l.b16 %v3668
        %v3805 = vunpack.c.l.b16 %v3669
        %v3806 = vunpack.c.l.b16 %v3670
        %v3807 = vunpack.c.l.b16 %v3671
        %v3808 = vunpack.c.l.b16 %v3672
        %v3809 = vunpack.c.l.b16 %v3673
        %v3810 = vunpack.c.l.b16 %v3674
        %v3811 = vunpack.c.l.b16 %v3675
        %v3812 = vunpack.c.l.b16 %v3676
        %v3813 = vunpack.c.l.b16 %v3677
        %v3814 = vunpack.c.l.b16 %v3678
        %v3815 = vunpack.c.l.b16 %v3679
        %v3816 = vunpack.c.l.b16 %v3680
        %v3817 = vunpack.c.l.b16 %v3681
        %v3818 = vunpack.c.l.b16 %v3682
        %v3819 = vunpack.c.l.b16 %v3683
        %v3820 = vunpack.c.l.b16 %v3684
        %v3821 = vunpack.c.l.b16 %v3685
        %v3822 = vpack.c.b16 %v3759, %v3758
        %v3823 = vpack.c.b16 %v3761, %v3760
        %v3824 = vpack.c.b16 %v3763, %v3762
        %v3825 = vpack.c.b16 %v3765, %v3764
        %v3826 = vpack.c.b16 %v3767, %v3766
        %v3827 = vpack.c.b16 %v3769, %v3768
        %v3828 = vpack.c.b16 %v3771, %v3770
        %v3829 = vpack.c.b16 %v3773, %v3772
        %v3830 = vpack.c.b16 %v3775, %v3774
        %v3831 = vpack.c.b16 %v3777, %v3776
        %v3832 = vpack.c.b16 %v3779, %v3778
        %v3833 = vpack.c.b16 %v3781, %v3780
        %v3834 = vpack.c.b16 %v3783, %v3782
        %v3835 = vpack.c.b16 %v3785, %v3784
        %v3836 = vpack.c.b16 %v3787, %v3786
        %v3837 = vpack.c.b16 %v3789, %v3788
        %v3838 = vpack.c.b16 %v3791, %v3790
        %v3839 = vpack.c.b16 %v3793, %v3792
        %v3840 = vpack.c.b16 %v3795, %v3794
        %v3841 = vpack.c.b16 %v3797, %v3796
        %v3842 = vpack.c.b16 %v3799, %v3798
        %v3843 = vpack.c.b16 %v3801, %v3800
        %v3844 = vpack.c.b16 %v3803, %v3802
        %v3845 = vpack.c.b16 %v3805, %v3804
        %v3846 = vpack.c.b16 %v3807, %v3806
        %v3847 = vpack.c.b16 %v3809, %v3808
        %v3848 = vpack.c.b16 %v3811, %v3810
        %v3849 = vpack.c.b16 %v3813, %v3812
        %v3850 = vpack.c.b16 %v3815, %v3814
        %v3851 = vpack.c.b16 %v3817, %v3816
        %v3852 = vpack.c.b16 %v3819, %v3818
        %v3853 = vpack.c.b16 %v3821, %v3820
        %3886 = vmatprep.subr.bf16.mxu0 0
        %3887 = vmatpush1.bf16.msra.mxu0 %v3822
        %3888 = vmatprep.subr.bf16.mxu0 0
        %3889 = vmatpush1.bf16.msra.mxu0 %v3823
        %3890 = vmatprep.subr.bf16.mxu0 0
        %3891 = vmatpush1.bf16.msra.mxu0 %v3824
        %3892 = vmatprep.subr.bf16.mxu0 0
        %3893 = vmatpush1.bf16.msra.mxu0 %v3825
        %3894 = vmatprep.subr.bf16.mxu0 0
        %3895 = vmatpush1.bf16.msra.mxu0 %v3826
        %3896 = vmatprep.subr.bf16.mxu0 0
        %3897 = vmatpush1.bf16.msra.mxu0 %v3827
        %3898 = vmatprep.subr.bf16.mxu0 0
        %3899 = vmatpush1.bf16.msra.mxu0 %v3828
        %3900 = vmatprep.subr.bf16.mxu0 0
        %3901 = vmatpush1.bf16.msra.mxu0 %v3829
        %3902 = vmatprep.subr.bf16.mxu0 0
        %3903 = vmatpush1.bf16.msra.mxu0 %v3830
        %3904 = vmatprep.subr.bf16.mxu0 0
        %3905 = vmatpush1.bf16.msra.mxu0 %v3831
        %3906 = vmatprep.subr.bf16.mxu0 0
        %3907 = vmatpush1.bf16.msra.mxu0 %v3832
        %3908 = vmatprep.subr.bf16.mxu0 0
        %3909 = vmatpush1.bf16.msra.mxu0 %v3833
        %3910 = vmatprep.subr.bf16.mxu0 0
        %3911 = vmatpush1.bf16.msra.mxu0 %v3834
        %3912 = vmatprep.subr.bf16.mxu0 0
        %3913 = vmatpush1.bf16.msra.mxu0 %v3835
        %3914 = vmatprep.subr.bf16.mxu0 0
        %3915 = vmatpush1.bf16.msra.mxu0 %v3836
        %3916 = vmatprep.subr.bf16.mxu0 0
        %3917 = vmatpush1.bf16.msra.mxu0 %v3837
        %3918 = vmatprep.mubr.bf16.mxu0 %v3618
        %3919 = vmatmul.mubr.bf16.gmra.mrb[0].mxu0 %v3617
        %v3920 = vpop.f32.mrb[0].mxu0
        %v3921 = vadd.f32 %v3692, %v3920
        %v3922 = vpop.f32.mrb[0].mxu0
        %v3923 = vpop.f32.mrb[0].mxu0
        %v3924 = vadd.f32 %v3692, %v3923
        %v3925 = vpop.f32.mrb[0].mxu0
        %3926 = vdwg.mxu0
        %3927 = vmatprep.subr.bf16.mxu0 0
        %3928 = vmatpush1.bf16.msra.mxu0 %v3838
        %3929 = vmatprep.subr.bf16.mxu0 0
        %3930 = vmatpush1.bf16.msra.mxu0 %v3839
        %3931 = vmatprep.subr.bf16.mxu0 0
        %3932 = vmatpush1.bf16.msra.mxu0 %v3840
        %3933 = vmatprep.subr.bf16.mxu0 0
        %3934 = vmatpush1.bf16.msra.mxu0 %v3841
        %3935 = vmatprep.subr.bf16.mxu0 0
        %3936 = vmatpush1.bf16.msra.mxu0 %v3842
        %3937 = vmatprep.subr.bf16.mxu0 0
        %3938 = vmatpush1.bf16.msra.mxu0 %v3843
        %3939 = vmatprep.subr.bf16.mxu0 0
        %3940 = vmatpush1.bf16.msra.mxu0 %v3844
        %3941 = vmatprep.subr.bf16.mxu0 0
        %3942 = vmatpush1.bf16.msra.mxu0 %v3845
        %3943 = vmatprep.subr.bf16.mxu0 0
        %3944 = vmatpush1.bf16.msra.mxu0 %v3846
        %3945 = vmatprep.subr.bf16.mxu0 0
        %3946 = vmatpush1.bf16.msra.mxu0 %v3847
        %3947 = vmatprep.subr.bf16.mxu0 0
        %3948 = vmatpush1.bf16.msra.mxu0 %v3848
        %3949 = vmatprep.subr.bf16.mxu0 0
        %3950 = vmatpush1.bf16.msra.mxu0 %v3849
        %3951 = vmatprep.subr.bf16.mxu0 0
        %3952 = vmatpush1.bf16.msra.mxu0 %v3850
        %3953 = vmatprep.subr.bf16.mxu0 0
        %3954 = vmatpush1.bf16.msra.mxu0 %v3851
        %3955 = vmatprep.subr.bf16.mxu0 0
        %3956 = vmatpush1.bf16.msra.mxu0 %v3852
        %3957 = vmatprep.subr.bf16.mxu0 0
        %3958 = vmatpush1.bf16.msra.mxu0 %v3853
        %3959 = vmatprep.mubr.bf16.mxu0 %v3620
        %3960 = vmatmul.mubr.bf16.gmra.mrb[0].mxu0 %v3619
        %v3961 = vpop.f32.mrb[0].mxu0
        %v3962 = vadd.f32 %v3921, %v3961
        %v3963 = vpop.f32.mrb[0].mxu0
        %v3964 = vpop.f32.mrb[0].mxu0
        %v3965 = vadd.f32 %v3924, %v3964
        %v3966 = vpop.f32.mrb[0].mxu0
        %3967 = vdwg.mxu0
        %v3968 = vadd.f32 %v3962, %v3096
        %v3969 = vadd.f32 %v3965, %v3097
        %s3970 = scalar_lea.vmem [#allocation7], 1
        %v3971 = vld [vmem:[%s3970] sm:$0x1]
        %s3972 = scalar_lea.vmem [#allocation9], 1
        %v3973 = vld [vmem:[%s3972] sm:$0x1]
        %3974 = vadd.xlane.f32.xlu0 %v3968
        %v3975 = vpop.xlane.xlu0 %3974
        %3976 = vadd.xlane.f32.xlu0 %v3969
        %v3977 = vpop.xlane.xlu0 %3976
        %v3978 = vmul.f32 %v3975, %v688
        %v3979 = vmul.f32 %v3977, %v688
        %v3980 = vmul.f32 %v3968, %v3968
        %v3981 = vmul.f32 %v3969, %v3969
        %3982 = vadd.xlane.f32.xlu0 %v3980
        %v3983 = vpop.xlane.xlu0 %3982
        %3984 = vadd.xlane.f32.xlu0 %v3981
        %v3985 = vpop.xlane.xlu0 %3984
        %v3986 = vmul.f32 %v3983, %v688
        %v3987 = vmul.f32 %v3985, %v688
        %v3988 = vmul.f32 %v3978, %v3978
        %v3989 = vmul.f32 %v3979, %v3979
        %v3990 = vsub.f32 %v3986, %v3988
        %v3991 = vsub.f32 %v3987, %v3989
        %v3992 = vsub.f32 %v3968, %v3978
        %v3993 = vsub.f32 %v3969, %v3979
        %v3994 = vadd.f32 %v3990, 1e-12
        %v3995 = vadd.f32 %v3991, 1e-12
        %v3996 = vrsqrt.pop %v3994
        %v3997 = vrsqrt.pop %v3995
        %v3998 = vmul.f32 %v3992, %v3996
        %v3999 = vmul.f32 %v3993, %v3997
        %v4001 = vlaneseq
        %v4002 = vshrl.u32 %v4001, 7
        %v4003 = vsub.s32 0, %v4002
        %v4004 = vrot.slane %v3971, %v4003
        %v4006 = vmul.f32 %v3998, %v4004
        %v4007 = vmul.f32 %v3999, %v4004
        %v4009 = vlaneseq
        %v4010 = vshrl.u32 %v4009, 7
        %v4011 = vsub.s32 0, %v4010
        %v4012 = vrot.slane %v3973, %v4011
        %v4014 = vadd.f32 %v4006, %v4012
        %v4015 = vadd.f32 %v4007, %v4012
        %v4016 = vpack.c.bf16 %v4015, %v4014
        %v4017 = vld [vmem:[%s16] sm:$0xf]
        %v4018 = vld [vmem:[%s16 + $0x4] sm:$0xf]
        %v4019 = vld [vmem:[%s16 + $0x8] sm:$0xf]
        %v4020 = vld [vmem:[%s16 + $0xc] sm:$0xf]
        %v4021 = vld [vmem:[%s16 + $0x10] sm:$0xf]
        %v4022 = vld [vmem:[%s16 + $0x14] sm:$0xf]
        %v4023 = vld [vmem:[%s16 + $0x18] sm:$0xf]
        %v4024 = vld [vmem:[%s16 + $0x1c] sm:$0xf]
        %v4025 = vld [vmem:[%s16 + $0x20] sm:$0xf]
        %v4026 = vld [vmem:[%s16 + $0x24] sm:$0xf]
        %v4027 = vld [vmem:[%s16 + $0x28] sm:$0xf]
        %v4028 = vld [vmem:[%s16 + $0x2c] sm:$0xf]
        %v4029 = vld [vmem:[%s16 + $0x30] sm:$0xf]
        %v4030 = vld [vmem:[%s16 + $0x34] sm:$0xf]
        %v4031 = vld [vmem:[%s16 + $0x38] sm:$0xf]
        %v4032 = vld [vmem:[%s16 + $0x3c] sm:$0xf]
        %v4033 = vld [vmem:[#allocation10] sm:$0x1]
        %v4035 = vlaneseq
        %v4036 = vshrl.u32 %v4035, 7
        %v4037 = vsub.s32 0, %v4036
        %v4038 = vrot.slane %v4033, %v4037
        %v4056 = vunpack.c.l.b16 %v4017
        %v4057 = vunpack.c.l.b16 %v4018
        %v4058 = vunpack.c.l.b16 %v4019
        %v4059 = vunpack.c.l.b16 %v4020
        %v4060 = vunpack.c.l.b16 %v4021
        %v4061 = vunpack.c.l.b16 %v4022
        %v4062 = vunpack.c.l.b16 %v4023
        %v4063 = vunpack.c.l.b16 %v4024
        %v4064 = vunpack.c.l.b16 %v4025
        %v4065 = vunpack.c.l.b16 %v4026
        %v4066 = vunpack.c.l.b16 %v4027
        %v4067 = vunpack.c.l.b16 %v4028
        %v4068 = vunpack.c.l.b16 %v4029
        %v4069 = vunpack.c.l.b16 %v4030
        %v4070 = vunpack.c.l.b16 %v4031
        %v4071 = vunpack.c.l.b16 %v4032
        %v4072 = vpack.c.b16 %v4057, %v4056
        %v4073 = vpack.c.b16 %v4059, %v4058
        %v4074 = vpack.c.b16 %v4061, %v4060
        %v4075 = vpack.c.b16 %v4063, %v4062
        %v4076 = vpack.c.b16 %v4065, %v4064
        %v4077 = vpack.c.b16 %v4067, %v4066
        %v4078 = vpack.c.b16 %v4069, %v4068
        %v4079 = vpack.c.b16 %v4071, %v4070
        %4088 = vmatprep.subr.bf16.mxu0 0
        %4089 = vmatpush1.bf16.msra.mxu0 %v4072
        %4090 = vmatprep.subr.bf16.mxu0 0
        %4091 = vmatpush1.bf16.msra.mxu0 %v4073
        %4092 = vmatprep.subr.bf16.mxu0 0
        %4093 = vmatpush1.bf16.msra.mxu0 %v4074
        %4094 = vmatprep.subr.bf16.mxu0 0
        %4095 = vmatpush1.bf16.msra.mxu0 %v4075
        %4096 = vmatprep.subr.bf16.mxu0 0
        %4097 = vmatpush1.bf16.msra.mxu0 %v4076
        %4098 = vmatprep.subr.bf16.mxu0 0
        %4099 = vmatpush1.bf16.msra.mxu0 %v4077
        %4100 = vmatprep.subr.bf16.mxu0 0
        %4101 = vmatpush1.bf16.msra.mxu0 %v4078
        %4102 = vmatprep.subr.bf16.mxu0 0
        %4103 = vmatpush1.bf16.msra.mxu0 %v4079
        %4104 = vmatprep.subr.bf16.mxu0 0
        %4105 = vmatpush1.bf16.msra.mxu0 0
        %4106 = vmatprep.subr.bf16.mxu0 0
        %4107 = vmatpush1.bf16.msra.mxu0 0
        %4108 = vmatprep.subr.bf16.mxu0 0
        %4109 = vmatpush1.bf16.msra.mxu0 0
        %4110 = vmatprep.subr.bf16.mxu0 0
        %4111 = vmatpush1.bf16.msra.mxu0 0
        %4112 = vmatprep.subr.bf16.mxu0 0
        %4113 = vmatpush1.bf16.msra.mxu0 0
        %4114 = vmatprep.subr.bf16.mxu0 0
        %4115 = vmatpush1.bf16.msra.mxu0 0
        %4116 = vmatprep.subr.bf16.mxu0 0
        %4117 = vmatpush1.bf16.msra.mxu0 0
        %4118 = vmatprep.subr.bf16.mxu0 0
        %4119 = vmatpush1.bf16.msra.mxu0 0
        %4120 = vmatprep.mubr.bf16.mxu0 0
        %4121 = vmatmul.mubr.bf16.gmra.mrb[0].mxu0 %v4016
        %v4122 = vpop.f32.mrb[0].mxu0
        %v4123 = vadd.f32 %v4038, %v4122
        %v4124 = vpop.f32.mrb[0].mxu0
        %v4125 = vpop.f32.mrb[0].mxu0
        %v4126 = vadd.f32 %v4038, %v4125
        %v4127 = vpop.f32.mrb[0].mxu0
        %4128 = vdwg.mxu0
        %4129 = vst [vmem:[%s677] sm:$0xff] %v4123
        %4130 = vst [vmem:[%s677 + $0x8] sm:$0xff] %v4126
        %s4131 = smul.u32 2, %s33
        %p4132 = scmp.lt.s32.totalorder %s4131, 3
        %s4133 = scalar_select %p4132, %s4131, 3
        %s4134 = smul.addr %s4133, 8
        %s4135 = scalar_lea.vmem %s18, %s4134
        // Predicated region
        $region117: #{electra_qa_forward.1} parent=91 // pred_check
          %p4136 = pneg %p439
        $region118: #{electra_qa_forward.1} parent=91 // pred_check_branch
          %4138 = sbr.rel (%p4136) target = $region120
        $region119: #{electra_qa_forward.1} parent=91 // pred_region
          %s4139 = smul.u32 2, %s33
        $region120: #{electra_qa_forward.1} parent=91 // pred_fallthru
          _
      $region92: #{electra_qa_forward.1} parent=5 // pred_fallthru
        _
      %p4140 = scmp.le.s32.totalorder 2, %s28
      // Predicated region
      $region121: #{electra_qa_forward.1} parent=5 // pred_check
        %p4141 = pneg %p4140
      $region122: #{electra_qa_forward.1} parent=5 // pred_check_branch
        %4143 = sbr.rel (%p4141) target = $region124
      $region123: #{electra_qa_forward.1} parent=5 // pred_region
        %s4144 = ssub.s32 %s28, 2
        // Predicated region
        $region125: #{electra_qa_forward.1} parent=123 // pred_check
          %p4145 = pneg %p445
        $region126: #{electra_qa_forward.1} parent=123 // pred_check_branch
          %4147 = sbr.rel (%p4145) target = $region128
        $region127: #{electra_qa_forward.1} parent=123 // pred_region
          %s4148 = smul.u32 2, %s34
          %p4149 = scmp.lt.s32.totalorder %s4148, 3
          %s4150 = scalar_select %p4149, %s4148, 3
          %s4151 = smul.addr %s4150, 8
          %s4152 = scalar_lea.vmem %s18, %s4151
        $region128: #{electra_qa_forward.1} parent=123 // pred_fallthru
          _
      $region124: #{electra_qa_forward.1} parent=5 // pred_fallthru
        _
    $region6: #{electra_qa_forward.1} parent=1 // loop_footer
      %s32 = sadd.s32 1, %s28
    $region7: #{electra_qa_forward.1} parent=1 // loop_footer_branch
      %27 = sbr.rel target = $region3
    $region8: #{electra_qa_forward.1} parent=1 // loop_exit
      _
    %4153 = vsyncpa [#allocation3], 1
    %s4154 = scalar_lea.sflag [#allocation3], 1
    %4155 = vsyncpa %s4154, 1
    %4156 = vsyncpa [#allocation5], 1
    %4157 = vsyncpa [#allocation8], 1
    %4158 = vsyncpa [#allocation11], 1

</llo_original>
